<compile_context>
chip_gen: v7x
topology: tpu7x:2x2x1
jax: 0.10.0
libtpu: 0.0.40
codegen_flags: <defaults>
</compile_context>

<pallas_src>
from functools import partial

import numpy as np
import jax
import jax.numpy as jnp
from jax.experimental import pallas as pl
from jax.experimental.pallas import tpu as pltpu

LANE = 128
_VMEM = pl.BlockSpec(memory_space=pltpu.MemorySpace.VMEM)


def _round_up(n, m):
    return ((n + m - 1) // m) * m


# ----------------------------------------------------------------------------
# Compile-time constants: one-hot tap-gather matrices, block-diagonal over the
# batch, so the batch can stay flattened into the GEMM M dimension.
# mats[t] @ X  (X: (n*hi*wi, C), row-major spatial per image) realises the
# (dy, dx) im2col tap of a k x k / stride / pad window for every image at once.
# ----------------------------------------------------------------------------
def _batched_gather_mats(n, hi, wi, ho, wo, k, stride, pad, dtype=jnp.bfloat16):
    mats = np.zeros((k * k, n * ho * wo, n * hi * wi), np.float32)
    for dy in range(k):
        for dx in range(k):
            t = dy * k + dx
            for b in range(n):
                for yo in range(ho):
                    for xo in range(wo):
                        yi = yo * stride + dy - pad
                        xi = xo * stride + dx - pad
                        if 0 <= yi < hi and 0 <= xi < wi:
                            mats[t, b * ho * wo + yo * wo + xo,
                                 b * hi * wi + yi * wi + xi] = 1.0
    return jnp.asarray(mats, dtype)


# ----------------------------------------------------------------------------
# The single fused kernel
# ----------------------------------------------------------------------------
def _fused_resnet_kernel(*refs, plan, inv_hw_final):
    patch_ref = refs[-1]        # VMEM im2col staging scratch
    out_ref = refs[-2]          # (8k, 128k) f32 logits
    it = iter(refs[:-2])

    def im2col(x_bf16, a_ref):
        # Per review: write each tap's one-hot gather result into an in-VMEM
        # im2col scratch at lane offset t*C, then do ONE wide GEMM per conv.
        n_taps, m, _ = a_ref.shape
        c = x_bf16.shape[-1]
        for t in range(n_taps):
            g = jnp.dot(a_ref[t], x_bf16, preferred_element_type=jnp.float32)
            patch_ref[0:m, t * c:(t + 1) * c] = g.astype(jnp.bfloat16)
        return patch_ref[0:m, 0:n_taps * c]          # (M, 9*C) bf16, true width

    # ---- stem: conv7x7/s2 (BN folded into W) + bias + ReLU, fused maxpool --
    stem_p_ref, w_stem_ref, b_stem_ref, a_pool_ref = (next(it) for _ in range(4))
    h = jnp.dot(stem_p_ref[...], w_stem_ref[...],
                preferred_element_type=jnp.float32)
    h = jnp.maximum(h + b_stem_ref[...], 0.0).astype(jnp.bfloat16)   # (N*HW, C0)
    mx = None
    for t in range(a_pool_ref.shape[0]):
        # post-ReLU h >= 0, so all-zero (out-of-bounds) gather rows never win
        g = jnp.dot(a_pool_ref[t], h, preferred_element_type=jnp.float32)
        mx = g if mx is None else jnp.maximum(mx, g)
    x = mx.astype(jnp.bfloat16)                       # (N*rows, C0), true width

    # ---- residual BasicBlocks: everything stays in VMEM / vregs ------------
    for has_ds in plan:
        a1_ref, a2_ref, w1_ref, b1_ref, w2_ref, b2_ref = (
            next(it) for _ in range(6))
        if has_ds:
            wd_ref, bd_ref = next(it), next(it)

        p1 = im2col(x, a1_ref)                                     # (M, 9*Cin)
        h1 = jnp.dot(p1, w1_ref[...],
                     preferred_element_type=jnp.float32) + b1_ref[...]
        h1 = jnp.maximum(h1, 0.0).astype(jnp.bfloat16)             # (M, Cout)
        p2 = im2col(h1, a2_ref)                                    # (M, 9*Cout)
        h2 = jnp.dot(p2, w2_ref[...],
                     preferred_element_type=jnp.float32) + b2_ref[...]

        if has_ds:
            # a1[4] (centre tap) is exactly the 1x1/stride-s sampling pattern.
            xs = jnp.dot(a1_ref[4], x, preferred_element_type=jnp.float32)
            ident = jnp.dot(xs.astype(jnp.bfloat16), wd_ref[...],
                            preferred_element_type=jnp.float32) + bd_ref[...]
        else:
            ident = x.astype(jnp.float32)

        # index_add_(1, indices, identity) with indices == arange(C): plain add.
        # TODO(synk): a genuinely pruned index subset would need a column scatter.
        x = jnp.maximum(h2 + ident, 0.0).astype(jnp.bfloat16)

    # ---- head: global average pool (constant indicator matmul) + FC --------
    avg_ref, fc_w_ref, fc_b_ref = (next(it) for _ in range(3))
    pooled = jnp.dot(avg_ref[...], x, preferred_element_type=jnp.float32)
    pooled = (pooled * inv_hw_final).astype(jnp.bfloat16)          # (8k, Cf)
    out_ref[...] = jnp.dot(pooled, fc_w_ref[...],
                           preferred_element_type=jnp.float32) + fc_b_ref[...]


# ----------------------------------------------------------------------------
# Parameter folding / packing (done once, outside the hot path)
# ----------------------------------------------------------------------------
def _fold_bn(bn, eps=1e-5):
    scale = bn["gamma"] / jnp.sqrt(bn["var"] + eps)
    return scale, bn["beta"] - bn["mean"] * scale


def _fold_conv_bn(w_hwio, bn, conv_bias=None):
    """Fold BN scale into the conv weight and return it as a (kh*kw*Cin, Cout)
    bf16 GEMM weight packed at the TRUE (pruned) channel width, K ordered as
    (tap, cin) to match the in-kernel tap-offset im2col scratch layout."""
    kh, kw, cin, cout = w_hwio.shape
    scale, bias = _fold_bn(bn)
    if conv_bias is not None:
        bias = bias + scale * conv_bias
    w = (w_hwio * scale).reshape(kh * kw * cin, cout).astype(jnp.bfloat16)
    return w, bias.reshape(1, cout).astype(jnp.float32)


def prepare_fused(params, n, h, w, input_dim):
    """Fold BN, pack weights and build every compile-time gather / pooling
    constant consumed by the single fused kernel."""
    args, plan = [], []

    # stem conv 7x7/s2/p3 (+bn1): im2col GEMM weight, K padded to lane multiple
    w_s, b_s = _fold_conv_bn(params["conv1_w"], params["bn1"])
    k_stem = 7 * 7 * input_dim
    k_pad = _round_up(k_stem, LANE)
    w_s = jnp.pad(w_s, ((0, k_pad - k_stem), (0, 0)))
    ho = (h + 2 * 3 - 7) // 2 + 1
    wo = (w + 2 * 3 - 7) // 2 + 1
    # fused maxpool 3x3/s2/p1
    hp = (ho + 2 - 3) // 2 + 1
    wp = (wo + 2 - 3) // 2 + 1
    a_pool = _batched_gather_mats(n, ho, wo, hp, wp, k=3, stride=2, pad=1)
    args += [w_s, b_s, a_pool]

    max_m, max_k = n * hp * wp, 1
    hi, wi = hp, wp
    for layer in params["layers"]:
        for blk in layer:
            s = blk["stride"]
            ho2 = (hi + 2 - 3) // s + 1
            wo2 = (wi + 2 - 3) // s + 1
            a1 = _batched_gather_mats(n, hi, wi, ho2, wo2, k=3, stride=s, pad=1)
            a2 = _batched_gather_mats(n, ho2, wo2, ho2, wo2, k=3, stride=1, pad=1)
            w1, b1 = _fold_conv_bn(blk["w1"], blk["bn1"])
            w2, b2 = _fold_conv_bn(blk["w2"], blk["bn2"])
            args += [a1, a2, w1, b1, w2, b2]
            has_ds = blk["downsample"] is not None
            if has_ds:
                ds = blk["downsample"]
                wd, bd = _fold_conv_bn(ds["w"], ds["bn"], conv_bias=ds["b"])
                args += [wd, bd]
            plan.append(has_ds)
            max_m = max(max_m, n * ho2 * wo2)
            max_k = max(max_k, w1.shape[0], w2.shape[0])
            hi, wi = ho2, wo2

    # head: global average pool as a constant block indicator, FC lane-padded
    rows_f = hi * wi
    m_out = _round_up(n, 8)                     # sublane-dense final store
    avg = np.zeros((m_out, n * rows_f), np.float32)
    for b in range(n):
        avg[b, b * rows_f:(b + 1) * rows_f] = 1.0
    _, ncls = params["fc_w"].shape
    ncls_p = _round_up(ncls, LANE)
    fc_w = jnp.pad(params["fc_w"], ((0, 0), (0, ncls_p - ncls))).astype(jnp.bfloat16)
    fc_b = jnp.pad(params["fc_b"], (0, ncls_p - ncls)).reshape(1, ncls_p).astype(jnp.float32)
    args += [jnp.asarray(avg, jnp.bfloat16), fc_w, fc_b]

    return {
        "args": args,
        "plan": tuple(plan),
        "stem_k_pad": k_pad,
        "inv_hw_final": 1.0 / float(rows_f),
        "out_shape": (m_out, ncls_p),
        "patch_scratch": (_round_up(max_m, 16), _round_up(max_k, LANE)),
    }


def _stem_im2col(x_bf16, k_pad):
    """Wrapper-side im2col for the 7x7/s2/p3 stem conv (tiny at these sizes).
    TODO(synk): for large inputs build the 49 taps in-kernel via halo'd slices
    instead of this wrapper-side 49x expansion."""
    n, h, w, cin = x_bf16.shape
    k, s, p = 7, 2, 3
    ho = (h + 2 * p - k) // s + 1
    wo = (w + 2 * p - k) // s + 1
    xp = jnp.pad(x_bf16, ((0, 0), (p, p), (p, p), (0, 0)))
    cols = [xp[:, dy:dy + s * ho:s, dx:dx + s * wo:s, :]
            for dy in range(k) for dx in range(k)]
    patches = jnp.concatenate(cols, axis=-1).reshape(n * ho * wo, k * k * cin)
    return jnp.pad(patches, ((0, 0), (0, k_pad - k * k * cin)))


def pruned_resnet_forward(x_nhwc, prep, num_classes):
    n = x_nhwc.shape[0]
    patches = _stem_im2col(x_nhwc.astype(jnp.bfloat16), prep["stem_k_pad"])
    args = [patches] + list(prep["args"])
    out = pl.pallas_call(
        partial(_fused_resnet_kernel, plan=prep["plan"],
                inv_hw_final=prep["inv_hw_final"]),
        in_specs=[_VMEM] * len(args),
        out_specs=_VMEM,
        out_shape=jax.ShapeDtypeStruct(prep["out_shape"], jnp.float32),
        scratch_shapes=[pltpu.VMEM(prep["patch_scratch"], jnp.bfloat16)],
        compiler_params=pltpu.CompilerParams(
            vmem_limit_bytes=32 * 1024 * 1024),
    )(*args)
    return out[:n, :num_classes]


# ----------------------------------------------------------------------------
# Pure-JAX f32 reference (tolerance check, per review)
# ----------------------------------------------------------------------------
def reference_forward(x_nhwc, params, eps=1e-5):
    def conv(x, w, stride, pad, bias=None):
        y = jax.lax.conv_general_dilated(
            x, w, window_strides=(stride, stride),
            padding=((pad, pad), (pad, pad)),
            dimension_numbers=("NHWC", "HWIO", "NHWC"))
        return y if bias is None else y + bias

    def bn(x, p):
        return (x - p["mean"]) / jnp.sqrt(p["var"] + eps) * p["gamma"] + p["beta"]

    x = jax.nn.relu(bn(conv(x_nhwc, params["conv1_w"], 2, 3), params["bn1"]))
    x = jax.lax.reduce_window(x, -jnp.inf, jax.lax.max,
                              (1, 3, 3, 1), (1, 2, 2, 1),
                              ((0, 0), (1, 1), (1, 1), (0, 0)))
    for layer in params["layers"]:
        for blk in layer:
            ident = x
            h = jax.nn.relu(bn(conv(x, blk["w1"], blk["stride"], 1), blk["bn1"]))
            h = bn(conv(h, blk["w2"], 1, 1), blk["bn2"])
            if blk["downsample"] is not None:
                ds = blk["downsample"]
                ident = bn(conv(x, ds["w"], blk["stride"], 0, bias=ds["b"]), ds["bn"])
            x = jax.nn.relu(h + ident)
    pooled = jnp.mean(x, axis=(1, 2))
    return pooled @ params["fc_w"] + params["fc_b"]


# ----------------------------------------------------------------------------
# Deterministic raw parameter init (mirrors PrunedResNet.__init__/_make_layer)
# ----------------------------------------------------------------------------
def _conv_w(key, kh, kw, cin, cout):
    return jax.random.normal(key, (kh, kw, cin, cout), jnp.float32) * 0.1


def _bn_params(key, c):
    k1, k2, k3 = jax.random.split(key, 3)
    return {
        "gamma": jax.random.uniform(k1, (c,), jnp.float32, 0.5, 1.5),
        "beta": jax.random.normal(k2, (c,), jnp.float32) * 0.1,
        "mean": jax.random.normal(k3, (c,), jnp.float32) * 0.1,
        "var": jnp.ones((c,), jnp.float32),
    }


def build_params(key, input_dim, num_classes, custom_params, depth):
    expansion = 1  # BasicBlock.expansion
    keys = iter(jax.random.split(key, 256))
    in_ch = custom_params["initial_conv_output_dim"]
    params = {
        "conv1_w": _conv_w(next(keys), 7, 7, input_dim, in_ch),
        "bn1": _bn_params(next(keys), in_ch),
        "layers": [],
    }
    for layer_idx in range(depth["layers"]):
        n_blocks = depth["blocks_per_layer"][layer_idx]
        out_ch = custom_params["sizes_per_layer"][layer_idx] * expansion
        layer_stride = custom_params["strides_per_layer"][layer_idx]
        layer = []
        for b in range(n_blocks):
            s = layer_stride if b == 0 else 1
            cin = in_ch if b == 0 else out_ch
            blk = {
                "stride": s,
                "w1": _conv_w(next(keys), 3, 3, cin, out_ch),
                "bn1": _bn_params(next(keys), out_ch),
                "w2": _conv_w(next(keys), 3, 3, out_ch, out_ch),
                "bn2": _bn_params(next(keys), out_ch),
                "downsample": None,
            }
            if b == 0 and (s != 1 or cin != out_ch):
                blk["downsample"] = {
                    "w": _conv_w(next(keys), 1, 1, cin, out_ch),
                    "b": jax.random.normal(next(keys), (out_ch,), jnp.float32) * 0.1,
                    "bn": _bn_params(next(keys), out_ch),
                }
            layer.append(blk)
        params["layers"].append(layer)
        in_ch = out_ch
    params["fc_w"] = jax.random.normal(next(keys), (in_ch, num_classes), jnp.float32) * 0.1
    params["fc_b"] = jax.random.normal(next(keys), (num_classes,), jnp.float32) * 0.1
    return params


# ----------------------------------------------------------------------------
if __name__ == "__main__":
    key = jax.random.PRNGKey(0)
    kx, kp = jax.random.split(key)

    # PyTorch input would be NCHW (2, 4, 16, 16); we use NHWC (2, 16, 16, 4).
    N, H, W, C_IN = 2, 16, 16, 4
    NUM_CLASSES = 10
    x = jax.random.normal(kx, (N, H, W, C_IN), jnp.float32)

    custom_params = {
        "initial_conv_output_dim": 8,
        "block": "BasicBlock",
        "sizes_per_layer": [8, 16],
        "strides_per_layer": [1, 2],
    }
    depth = {"layers": 2, "blocks_per_layer": [1, 1]}

    params = build_params(kp, C_IN, NUM_CLASSES, custom_params, depth)
    prep = prepare_fused(params, N, H, W, C_IN)

    fwd = jax.jit(lambda inp: pruned_resnet_forward(inp, prep, NUM_CLASSES))
    out = jax.block_until_ready(fwd(x))

    assert out.shape == (N, NUM_CLASSES), out.shape
    assert bool(jnp.all(jnp.isfinite(out)))

    # Tolerance-based check vs pure-JAX f32 reference (bf16 kernel => ~1e-2 drift).
    ref = jax.jit(partial(reference_forward, params=params))(x)
    np.testing.assert_allclose(np.asarray(out), np.asarray(ref),
                               rtol=1e-1, atol=1e-1)

    print("KERNEL_OK")
</pallas_src>

<mosaic_0001>
module attributes {stable_mosaic.version = 11 : i64} {
  func.func @_fused_resnet_kernel(%arg0: memref<128x256xbf16, #tpu.memory_space<vmem>>, %arg1: memref<256x8xbf16, #tpu.memory_space<vmem>>, %arg2: memref<1x8xf32, #tpu.memory_space<vmem>>, %arg3: memref<9x32x128xbf16, #tpu.memory_space<vmem>>, %arg4: memref<9x32x32xbf16, #tpu.memory_space<vmem>>, %arg5: memref<9x32x32xbf16, #tpu.memory_space<vmem>>, %arg6: memref<72x8xbf16, #tpu.memory_space<vmem>>, %arg7: memref<1x8xf32, #tpu.memory_space<vmem>>, %arg8: memref<72x8xbf16, #tpu.memory_space<vmem>>, %arg9: memref<1x8xf32, #tpu.memory_space<vmem>>, %arg10: memref<9x8x32xbf16, #tpu.memory_space<vmem>>, %arg11: memref<9x8x8xbf16, #tpu.memory_space<vmem>>, %arg12: memref<72x16xbf16, #tpu.memory_space<vmem>>, %arg13: memref<1x16xf32, #tpu.memory_space<vmem>>, %arg14: memref<144x16xbf16, #tpu.memory_space<vmem>>, %arg15: memref<1x16xf32, #tpu.memory_space<vmem>>, %arg16: memref<8x16xbf16, #tpu.memory_space<vmem>>, %arg17: memref<1x16xf32, #tpu.memory_space<vmem>>, %arg18: memref<8x8xbf16, #tpu.memory_space<vmem>>, %arg19: memref<16x128xbf16, #tpu.memory_space<vmem>>, %arg20: memref<1x128xf32, #tpu.memory_space<vmem>>, %arg21: memref<8x128xf32, #tpu.memory_space<vmem>>, %arg22: memref<32x256xbf16, #tpu.memory_space<vmem>>) attributes {dimension_semantics = [], scalar_prefetch = 0 : i64, scratch_operands = 1 : i64, tpu.core_type = #tpu.core_type<tc>} {
    %c0 = arith.constant 0 : index
    %c0_0 = arith.constant 0 : index
    %0 = vector.load %arg0[%c0, %c0_0] : memref<128x256xbf16, #tpu.memory_space<vmem>>, vector<128x256xbf16>
    %c0_1 = arith.constant 0 : index
    %c0_2 = arith.constant 0 : index
    %1 = vector.load %arg1[%c0_1, %c0_2] : memref<256x8xbf16, #tpu.memory_space<vmem>>, vector<256x8xbf16>
    %cst = arith.constant dense<0.000000e+00> : vector<128x8xf32>
    %2 = tpu.matmul %0, %1, %cst {dimension_numbers = #tpu.dot_dimension_numbers<[1], [0], [0], [1], [0, 0, 1, 1], [], []>} : vector<128x256xbf16>, vector<256x8xbf16>, vector<128x8xf32> -> vector<128x8xf32>
    %c0_3 = arith.constant 0 : index
    %c0_4 = arith.constant 0 : index
    %3 = vector.load %arg2[%c0_3, %c0_4] : memref<1x8xf32, #tpu.memory_space<vmem>>, vector<1x8xf32>
    %4 = vector.broadcast %3 : vector<1x8xf32> to vector<128x8xf32>
    %5 = arith.addf %2, %4 : vector<128x8xf32>
    %cst_5 = arith.constant 0.000000e+00 : f32
    %6 = vector.broadcast %cst_5 : f32 to vector<128x8xf32>
    %7 = arith.maximumf %5, %6 : vector<128x8xf32>
    %8 = arith.truncf %7 : vector<128x8xf32> to vector<128x8xbf16>
    %c0_6 = arith.constant 0 : index
    %c0_7 = arith.constant 0 : index
    %c0_8 = arith.constant 0 : index
    %9 = vector.load %arg3[%c0_6, %c0_7, %c0_8] : memref<9x32x128xbf16, #tpu.memory_space<vmem>>, vector<1x32x128xbf16>
    %10 = vector.shape_cast %9 : vector<1x32x128xbf16> to vector<32x128xbf16>
    %cst_9 = arith.constant dense<0.000000e+00> : vector<32x8xf32>
    %11 = tpu.matmul %10, %8, %cst_9 {dimension_numbers = #tpu.dot_dimension_numbers<[1], [0], [0], [1], [0, 0, 1, 1], [], []>} : vector<32x128xbf16>, vector<128x8xbf16>, vector<32x8xf32> -> vector<32x8xf32>
    %c1 = arith.constant 1 : index
    %c0_10 = arith.constant 0 : index
    %c0_11 = arith.constant 0 : index
    %12 = vector.load %arg3[%c1, %c0_10, %c0_11] : memref<9x32x128xbf16, #tpu.memory_space<vmem>>, vector<1x32x128xbf16>
    %13 = vector.shape_cast %12 : vector<1x32x128xbf16> to vector<32x128xbf16>
    %cst_12 = arith.constant dense<0.000000e+00> : vector<32x8xf32>
    %14 = tpu.matmul %13, %8, %cst_12 {dimension_numbers = #tpu.dot_dimension_numbers<[1], [0], [0], [1], [0, 0, 1, 1], [], []>} : vector<32x128xbf16>, vector<128x8xbf16>, vector<32x8xf32> -> vector<32x8xf32>
    %15 = arith.maximumf %11, %14 : vector<32x8xf32>
    %c2 = arith.constant 2 : index
    %c0_13 = arith.constant 0 : index
    %c0_14 = arith.constant 0 : index
    %16 = vector.load %arg3[%c2, %c0_13, %c0_14] : memref<9x32x128xbf16, #tpu.memory_space<vmem>>, vector<1x32x128xbf16>
    %17 = vector.shape_cast %16 : vector<1x32x128xbf16> to vector<32x128xbf16>
    %cst_15 = arith.constant dense<0.000000e+00> : vector<32x8xf32>
    %18 = tpu.matmul %17, %8, %cst_15 {dimension_numbers = #tpu.dot_dimension_numbers<[1], [0], [0], [1], [0, 0, 1, 1], [], []>} : vector<32x128xbf16>, vector<128x8xbf16>, vector<32x8xf32> -> vector<32x8xf32>
    %19 = arith.maximumf %15, %18 : vector<32x8xf32>
    %c3 = arith.constant 3 : index
    %c0_16 = arith.constant 0 : index
    %c0_17 = arith.constant 0 : index
    %20 = vector.load %arg3[%c3, %c0_16, %c0_17] : memref<9x32x128xbf16, #tpu.memory_space<vmem>>, vector<1x32x128xbf16>
    %21 = vector.shape_cast %20 : vector<1x32x128xbf16> to vector<32x128xbf16>
    %cst_18 = arith.constant dense<0.000000e+00> : vector<32x8xf32>
    %22 = tpu.matmul %21, %8, %cst_18 {dimension_numbers = #tpu.dot_dimension_numbers<[1], [0], [0], [1], [0, 0, 1, 1], [], []>} : vector<32x128xbf16>, vector<128x8xbf16>, vector<32x8xf32> -> vector<32x8xf32>
    %23 = arith.maximumf %19, %22 : vector<32x8xf32>
    %c4 = arith.constant 4 : index
    %c0_19 = arith.constant 0 : index
    %c0_20 = arith.constant 0 : index
    %24 = vector.load %arg3[%c4, %c0_19, %c0_20] : memref<9x32x128xbf16, #tpu.memory_space<vmem>>, vector<1x32x128xbf16>
    %25 = vector.shape_cast %24 : vector<1x32x128xbf16> to vector<32x128xbf16>
    %cst_21 = arith.constant dense<0.000000e+00> : vector<32x8xf32>
    %26 = tpu.matmul %25, %8, %cst_21 {dimension_numbers = #tpu.dot_dimension_numbers<[1], [0], [0], [1], [0, 0, 1, 1], [], []>} : vector<32x128xbf16>, vector<128x8xbf16>, vector<32x8xf32> -> vector<32x8xf32>
    %27 = arith.maximumf %23, %26 : vector<32x8xf32>
    %c5 = arith.constant 5 : index
    %c0_22 = arith.constant 0 : index
    %c0_23 = arith.constant 0 : index
    %28 = vector.load %arg3[%c5, %c0_22, %c0_23] : memref<9x32x128xbf16, #tpu.memory_space<vmem>>, vector<1x32x128xbf16>
    %29 = vector.shape_cast %28 : vector<1x32x128xbf16> to vector<32x128xbf16>
    %cst_24 = arith.constant dense<0.000000e+00> : vector<32x8xf32>
    %30 = tpu.matmul %29, %8, %cst_24 {dimension_numbers = #tpu.dot_dimension_numbers<[1], [0], [0], [1], [0, 0, 1, 1], [], []>} : vector<32x128xbf16>, vector<128x8xbf16>, vector<32x8xf32> -> vector<32x8xf32>
    %31 = arith.maximumf %27, %30 : vector<32x8xf32>
    %c6 = arith.constant 6 : index
    %c0_25 = arith.constant 0 : index
    %c0_26 = arith.constant 0 : index
    %32 = vector.load %arg3[%c6, %c0_25, %c0_26] : memref<9x32x128xbf16, #tpu.memory_space<vmem>>, vector<1x32x128xbf16>
    %33 = vector.shape_cast %32 : vector<1x32x128xbf16> to vector<32x128xbf16>
    %cst_27 = arith.constant dense<0.000000e+00> : vector<32x8xf32>
    %34 = tpu.matmul %33, %8, %cst_27 {dimension_numbers = #tpu.dot_dimension_numbers<[1], [0], [0], [1], [0, 0, 1, 1], [], []>} : vector<32x128xbf16>, vector<128x8xbf16>, vector<32x8xf32> -> vector<32x8xf32>
    %35 = arith.maximumf %31, %34 : vector<32x8xf32>
    %c7 = arith.constant 7 : index
    %c0_28 = arith.constant 0 : index
    %c0_29 = arith.constant 0 : index
    %36 = vector.load %arg3[%c7, %c0_28, %c0_29] : memref<9x32x128xbf16, #tpu.memory_space<vmem>>, vector<1x32x128xbf16>
    %37 = vector.shape_cast %36 : vector<1x32x128xbf16> to vector<32x128xbf16>
    %cst_30 = arith.constant dense<0.000000e+00> : vector<32x8xf32>
    %38 = tpu.matmul %37, %8, %cst_30 {dimension_numbers = #tpu.dot_dimension_numbers<[1], [0], [0], [1], [0, 0, 1, 1], [], []>} : vector<32x128xbf16>, vector<128x8xbf16>, vector<32x8xf32> -> vector<32x8xf32>
    %39 = arith.maximumf %35, %38 : vector<32x8xf32>
    %c8 = arith.constant 8 : index
    %c0_31 = arith.constant 0 : index
    %c0_32 = arith.constant 0 : index
    %40 = vector.load %arg3[%c8, %c0_31, %c0_32] : memref<9x32x128xbf16, #tpu.memory_space<vmem>>, vector<1x32x128xbf16>
    %41 = vector.shape_cast %40 : vector<1x32x128xbf16> to vector<32x128xbf16>
    %cst_33 = arith.constant dense<0.000000e+00> : vector<32x8xf32>
    %42 = tpu.matmul %41, %8, %cst_33 {dimension_numbers = #tpu.dot_dimension_numbers<[1], [0], [0], [1], [0, 0, 1, 1], [], []>} : vector<32x128xbf16>, vector<128x8xbf16>, vector<32x8xf32> -> vector<32x8xf32>
    %43 = arith.maximumf %39, %42 : vector<32x8xf32>
    %44 = arith.truncf %43 : vector<32x8xf32> to vector<32x8xbf16>
    %c0_34 = arith.constant 0 : index
    %c0_35 = arith.constant 0 : index
    %c0_36 = arith.constant 0 : index
    %45 = vector.load %arg4[%c0_34, %c0_35, %c0_36] : memref<9x32x32xbf16, #tpu.memory_space<vmem>>, vector<1x32x32xbf16>
    %46 = vector.shape_cast %45 : vector<1x32x32xbf16> to vector<32x32xbf16>
    %cst_37 = arith.constant dense<0.000000e+00> : vector<32x8xf32>
    %47 = tpu.matmul %46, %44, %cst_37 {dimension_numbers = #tpu.dot_dimension_numbers<[1], [0], [0], [1], [0, 0, 1, 1], [], []>} : vector<32x32xbf16>, vector<32x8xbf16>, vector<32x8xf32> -> vector<32x8xf32>
    %48 = arith.truncf %47 : vector<32x8xf32> to vector<32x8xbf16>
    %c0_38 = arith.constant 0 : index
    %c0_39 = arith.constant 0 : index
    %49 = vector.load %arg22[%c0_38, %c0_39] : memref<32x256xbf16, #tpu.memory_space<vmem>>, vector<32x8xbf16>
    tpu.vector_store %arg22[%c0_38, %c0_39], %48 {strides = array<i32>} : memref<32x256xbf16, #tpu.memory_space<vmem>>, vector<32x8xbf16>,
    %c1_40 = arith.constant 1 : index
    %c0_41 = arith.constant 0 : index
    %c0_42 = arith.constant 0 : index
    %50 = vector.load %arg4[%c1_40, %c0_41, %c0_42] : memref<9x32x32xbf16, #tpu.memory_space<vmem>>, vector<1x32x32xbf16>
    %51 = vector.shape_cast %50 : vector<1x32x32xbf16> to vector<32x32xbf16>
    %cst_43 = arith.constant dense<0.000000e+00> : vector<32x8xf32>
    %52 = tpu.matmul %51, %44, %cst_43 {dimension_numbers = #tpu.dot_dimension_numbers<[1], [0], [0], [1], [0, 0, 1, 1], [], []>} : vector<32x32xbf16>, vector<32x8xbf16>, vector<32x8xf32> -> vector<32x8xf32>
    %53 = arith.truncf %52 : vector<32x8xf32> to vector<32x8xbf16>
    %c0_44 = arith.constant 0 : index
    %c8_45 = arith.constant 8 : index
    %54 = vector.load %arg22[%c0_44, %c8_45] : memref<32x256xbf16, #tpu.memory_space<vmem>>, vector<32x8xbf16>
    tpu.vector_store %arg22[%c0_44, %c8_45], %53 {strides = array<i32>} : memref<32x256xbf16, #tpu.memory_space<vmem>>, vector<32x8xbf16>,
    %c2_46 = arith.constant 2 : index
    %c0_47 = arith.constant 0 : index
    %c0_48 = arith.constant 0 : index
    %55 = vector.load %arg4[%c2_46, %c0_47, %c0_48] : memref<9x32x32xbf16, #tpu.memory_space<vmem>>, vector<1x32x32xbf16>
    %56 = vector.shape_cast %55 : vector<1x32x32xbf16> to vector<32x32xbf16>
    %cst_49 = arith.constant dense<0.000000e+00> : vector<32x8xf32>
    %57 = tpu.matmul %56, %44, %cst_49 {dimension_numbers = #tpu.dot_dimension_numbers<[1], [0], [0], [1], [0, 0, 1, 1], [], []>} : vector<32x32xbf16>, vector<32x8xbf16>, vector<32x8xf32> -> vector<32x8xf32>
    %58 = arith.truncf %57 : vector<32x8xf32> to vector<32x8xbf16>
    %c0_50 = arith.constant 0 : index
    %c16 = arith.constant 16 : index
    %59 = vector.load %arg22[%c0_50, %c16] : memref<32x256xbf16, #tpu.memory_space<vmem>>, vector<32x8xbf16>
    tpu.vector_store %arg22[%c0_50, %c16], %58 {strides = array<i32>} : memref<32x256xbf16, #tpu.memory_space<vmem>>, vector<32x8xbf16>,
    %c3_51 = arith.constant 3 : index
    %c0_52 = arith.constant 0 : index
    %c0_53 = arith.constant 0 : index
    %60 = vector.load %arg4[%c3_51, %c0_52, %c0_53] : memref<9x32x32xbf16, #tpu.memory_space<vmem>>, vector<1x32x32xbf16>
    %61 = vector.shape_cast %60 : vector<1x32x32xbf16> to vector<32x32xbf16>
    %cst_54 = arith.constant dense<0.000000e+00> : vector<32x8xf32>
    %62 = tpu.matmul %61, %44, %cst_54 {dimension_numbers = #tpu.dot_dimension_numbers<[1], [0], [0], [1], [0, 0, 1, 1], [], []>} : vector<32x32xbf16>, vector<32x8xbf16>, vector<32x8xf32> -> vector<32x8xf32>
    %63 = arith.truncf %62 : vector<32x8xf32> to vector<32x8xbf16>
    %c0_55 = arith.constant 0 : index
    %c24 = arith.constant 24 : index
    %64 = vector.load %arg22[%c0_55, %c24] : memref<32x256xbf16, #tpu.memory_space<vmem>>, vector<32x8xbf16>
    tpu.vector_store %arg22[%c0_55, %c24], %63 {strides = array<i32>} : memref<32x256xbf16, #tpu.memory_space<vmem>>, vector<32x8xbf16>,
    %c4_56 = arith.constant 4 : index
    %c0_57 = arith.constant 0 : index
    %c0_58 = arith.constant 0 : index
    %65 = vector.load %arg4[%c4_56, %c0_57, %c0_58] : memref<9x32x32xbf16, #tpu.memory_space<vmem>>, vector<1x32x32xbf16>
    %66 = vector.shape_cast %65 : vector<1x32x32xbf16> to vector<32x32xbf16>
    %cst_59 = arith.constant dense<0.000000e+00> : vector<32x8xf32>
    %67 = tpu.matmul %66, %44, %cst_59 {dimension_numbers = #tpu.dot_dimension_numbers<[1], [0], [0], [1], [0, 0, 1, 1], [], []>} : vector<32x32xbf16>, vector<32x8xbf16>, vector<32x8xf32> -> vector<32x8xf32>
    %68 = arith.truncf %67 : vector<32x8xf32> to vector<32x8xbf16>
    %c0_60 = arith.constant 0 : index
    %c32 = arith.constant 32 : index
    %69 = vector.load %arg22[%c0_60, %c32] : memref<32x256xbf16, #tpu.memory_space<vmem>>, vector<32x8xbf16>
    tpu.vector_store %arg22[%c0_60, %c32], %68 {strides = array<i32>} : memref<32x256xbf16, #tpu.memory_space<vmem>>, vector<32x8xbf16>,
    %c5_61 = arith.constant 5 : index
    %c0_62 = arith.constant 0 : index
    %c0_63 = arith.constant 0 : index
    %70 = vector.load %arg4[%c5_61, %c0_62, %c0_63] : memref<9x32x32xbf16, #tpu.memory_space<vmem>>, vector<1x32x32xbf16>
    %71 = vector.shape_cast %70 : vector<1x32x32xbf16> to vector<32x32xbf16>
    %cst_64 = arith.constant dense<0.000000e+00> : vector<32x8xf32>
    %72 = tpu.matmul %71, %44, %cst_64 {dimension_numbers = #tpu.dot_dimension_numbers<[1], [0], [0], [1], [0, 0, 1, 1], [], []>} : vector<32x32xbf16>, vector<32x8xbf16>, vector<32x8xf32> -> vector<32x8xf32>
    %73 = arith.truncf %72 : vector<32x8xf32> to vector<32x8xbf16>
    %c0_65 = arith.constant 0 : index
    %c40 = arith.constant 40 : index
    %74 = vector.load %arg22[%c0_65, %c40] : memref<32x256xbf16, #tpu.memory_space<vmem>>, vector<32x8xbf16>
    tpu.vector_store %arg22[%c0_65, %c40], %73 {strides = array<i32>} : memref<32x256xbf16, #tpu.memory_space<vmem>>, vector<32x8xbf16>,
    %c6_66 = arith.constant 6 : index
    %c0_67 = arith.constant 0 : index
    %c0_68 = arith.constant 0 : index
    %75 = vector.load %arg4[%c6_66, %c0_67, %c0_68] : memref<9x32x32xbf16, #tpu.memory_space<vmem>>, vector<1x32x32xbf16>
    %76 = vector.shape_cast %75 : vector<1x32x32xbf16> to vector<32x32xbf16>
    %cst_69 = arith.constant dense<0.000000e+00> : vector<32x8xf32>
    %77 = tpu.matmul %76, %44, %cst_69 {dimension_numbers = #tpu.dot_dimension_numbers<[1], [0], [0], [1], [0, 0, 1, 1], [], []>} : vector<32x32xbf16>, vector<32x8xbf16>, vector<32x8xf32> -> vector<32x8xf32>
    %78 = arith.truncf %77 : vector<32x8xf32> to vector<32x8xbf16>
    %c0_70 = arith.constant 0 : index
    %c48 = arith.constant 48 : index
    %79 = vector.load %arg22[%c0_70, %c48] : memref<32x256xbf16, #tpu.memory_space<vmem>>, vector<32x8xbf16>
    tpu.vector_store %arg22[%c0_70, %c48], %78 {strides = array<i32>} : memref<32x256xbf16, #tpu.memory_space<vmem>>, vector<32x8xbf16>,
    %c7_71 = arith.constant 7 : index
    %c0_72 = arith.constant 0 : index
    %c0_73 = arith.constant 0 : index
    %80 = vector.load %arg4[%c7_71, %c0_72, %c0_73] : memref<9x32x32xbf16, #tpu.memory_space<vmem>>, vector<1x32x32xbf16>
    %81 = vector.shape_cast %80 : vector<1x32x32xbf16> to vector<32x32xbf16>
    %cst_74 = arith.constant dense<0.000000e+00> : vector<32x8xf32>
    %82 = tpu.matmul %81, %44, %cst_74 {dimension_numbers = #tpu.dot_dimension_numbers<[1], [0], [0], [1], [0, 0, 1, 1], [], []>} : vector<32x32xbf16>, vector<32x8xbf16>, vector<32x8xf32> -> vector<32x8xf32>
    %83 = arith.truncf %82 : vector<32x8xf32> to vector<32x8xbf16>
    %c0_75 = arith.constant 0 : index
    %c56 = arith.constant 56 : index
    %84 = vector.load %arg22[%c0_75, %c56] : memref<32x256xbf16, #tpu.memory_space<vmem>>, vector<32x8xbf16>
    tpu.vector_store %arg22[%c0_75, %c56], %83 {strides = array<i32>} : memref<32x256xbf16, #tpu.memory_space<vmem>>, vector<32x8xbf16>,
    %c8_76 = arith.constant 8 : index
    %c0_77 = arith.constant 0 : index
    %c0_78 = arith.constant 0 : index
    %85 = vector.load %arg4[%c8_76, %c0_77, %c0_78] : memref<9x32x32xbf16, #tpu.memory_space<vmem>>, vector<1x32x32xbf16>
    %86 = vector.shape_cast %85 : vector<1x32x32xbf16> to vector<32x32xbf16>
    %cst_79 = arith.constant dense<0.000000e+00> : vector<32x8xf32>
    %87 = tpu.matmul %86, %44, %cst_79 {dimension_numbers = #tpu.dot_dimension_numbers<[1], [0], [0], [1], [0, 0, 1, 1], [], []>} : vector<32x32xbf16>, vector<32x8xbf16>, vector<32x8xf32> -> vector<32x8xf32>
    %88 = arith.truncf %87 : vector<32x8xf32> to vector<32x8xbf16>
    %c0_80 = arith.constant 0 : index
    %c64 = arith.constant 64 : index
    %89 = vector.load %arg22[%c0_80, %c64] : memref<32x256xbf16, #tpu.memory_space<vmem>>, vector<32x8xbf16>
    tpu.vector_store %arg22[%c0_80, %c64], %88 {strides = array<i32>} : memref<32x256xbf16, #tpu.memory_space<vmem>>, vector<32x8xbf16>,
    %c0_81 = arith.constant 0 : index
    %c0_82 = arith.constant 0 : index
    %90 = vector.load %arg22[%c0_81, %c0_82] : memref<32x256xbf16, #tpu.memory_space<vmem>>, vector<32x72xbf16>
    %c0_83 = arith.constant 0 : index
    %c0_84 = arith.constant 0 : index
    %91 = vector.load %arg6[%c0_83, %c0_84] : memref<72x8xbf16, #tpu.memory_space<vmem>>, vector<72x8xbf16>
    %cst_85 = arith.constant dense<0.000000e+00> : vector<32x8xf32>
    %92 = tpu.matmul %90, %91, %cst_85 {dimension_numbers = #tpu.dot_dimension_numbers<[1], [0], [0], [1], [0, 0, 1, 1], [], []>} : vector<32x72xbf16>, vector<72x8xbf16>, vector<32x8xf32> -> vector<32x8xf32>
    %c0_86 = arith.constant 0 : index
    %c0_87 = arith.constant 0 : index
    %93 = vector.load %arg7[%c0_86, %c0_87] : memref<1x8xf32, #tpu.memory_space<vmem>>, vector<1x8xf32>
    %94 = vector.broadcast %93 : vector<1x8xf32> to vector<32x8xf32>
    %95 = arith.addf %92, %94 : vector<32x8xf32>
    %cst_88 = arith.constant 0.000000e+00 : f32
    %96 = vector.broadcast %cst_88 : f32 to vector<32x8xf32>
    %97 = arith.maximumf %95, %96 : vector<32x8xf32>
    %98 = arith.truncf %97 : vector<32x8xf32> to vector<32x8xbf16>
    %c0_89 = arith.constant 0 : index
    %c0_90 = arith.constant 0 : index
    %c0_91 = arith.constant 0 : index
    %99 = vector.load %arg5[%c0_89, %c0_90, %c0_91] : memref<9x32x32xbf16, #tpu.memory_space<vmem>>, vector<1x32x32xbf16>
    %100 = vector.shape_cast %99 : vector<1x32x32xbf16> to vector<32x32xbf16>
    %cst_92 = arith.constant dense<0.000000e+00> : vector<32x8xf32>
    %101 = tpu.matmul %100, %98, %cst_92 {dimension_numbers = #tpu.dot_dimension_numbers<[1], [0], [0], [1], [0, 0, 1, 1], [], []>} : vector<32x32xbf16>, vector<32x8xbf16>, vector<32x8xf32> -> vector<32x8xf32>
    %102 = arith.truncf %101 : vector<32x8xf32> to vector<32x8xbf16>
    %c0_93 = arith.constant 0 : index
    %c0_94 = arith.constant 0 : index
    %103 = vector.load %arg22[%c0_93, %c0_94] : memref<32x256xbf16, #tpu.memory_space<vmem>>, vector<32x8xbf16>
    tpu.vector_store %arg22[%c0_93, %c0_94], %102 {strides = array<i32>} : memref<32x256xbf16, #tpu.memory_space<vmem>>, vector<32x8xbf16>,
    %c1_95 = arith.constant 1 : index
    %c0_96 = arith.constant 0 : index
    %c0_97 = arith.constant 0 : index
    %104 = vector.load %arg5[%c1_95, %c0_96, %c0_97] : memref<9x32x32xbf16, #tpu.memory_space<vmem>>, vector<1x32x32xbf16>
    %105 = vector.shape_cast %104 : vector<1x32x32xbf16> to vector<32x32xbf16>
    %cst_98 = arith.constant dense<0.000000e+00> : vector<32x8xf32>
    %106 = tpu.matmul %105, %98, %cst_98 {dimension_numbers = #tpu.dot_dimension_numbers<[1], [0], [0], [1], [0, 0, 1, 1], [], []>} : vector<32x32xbf16>, vector<32x8xbf16>, vector<32x8xf32> -> vector<32x8xf32>
    %107 = arith.truncf %106 : vector<32x8xf32> to vector<32x8xbf16>
    %c0_99 = arith.constant 0 : index
    %c8_100 = arith.constant 8 : index
    %108 = vector.load %arg22[%c0_99, %c8_100] : memref<32x256xbf16, #tpu.memory_space<vmem>>, vector<32x8xbf16>
    tpu.vector_store %arg22[%c0_99, %c8_100], %107 {strides = array<i32>} : memref<32x256xbf16, #tpu.memory_space<vmem>>, vector<32x8xbf16>,
    %c2_101 = arith.constant 2 : index
    %c0_102 = arith.constant 0 : index
    %c0_103 = arith.constant 0 : index
    %109 = vector.load %arg5[%c2_101, %c0_102, %c0_103] : memref<9x32x32xbf16, #tpu.memory_space<vmem>>, vector<1x32x32xbf16>
    %110 = vector.shape_cast %109 : vector<1x32x32xbf16> to vector<32x32xbf16>
    %cst_104 = arith.constant dense<0.000000e+00> : vector<32x8xf32>
    %111 = tpu.matmul %110, %98, %cst_104 {dimension_numbers = #tpu.dot_dimension_numbers<[1], [0], [0], [1], [0, 0, 1, 1], [], []>} : vector<32x32xbf16>, vector<32x8xbf16>, vector<32x8xf32> -> vector<32x8xf32>
    %112 = arith.truncf %111 : vector<32x8xf32> to vector<32x8xbf16>
    %c0_105 = arith.constant 0 : index
    %c16_106 = arith.constant 16 : index
    %113 = vector.load %arg22[%c0_105, %c16_106] : memref<32x256xbf16, #tpu.memory_space<vmem>>, vector<32x8xbf16>
    tpu.vector_store %arg22[%c0_105, %c16_106], %112 {strides = array<i32>} : memref<32x256xbf16, #tpu.memory_space<vmem>>, vector<32x8xbf16>,
    %c3_107 = arith.constant 3 : index
    %c0_108 = arith.constant 0 : index
    %c0_109 = arith.constant 0 : index
    %114 = vector.load %arg5[%c3_107, %c0_108, %c0_109] : memref<9x32x32xbf16, #tpu.memory_space<vmem>>, vector<1x32x32xbf16>
    %115 = vector.shape_cast %114 : vector<1x32x32xbf16> to vector<32x32xbf16>
    %cst_110 = arith.constant dense<0.000000e+00> : vector<32x8xf32>
    %116 = tpu.matmul %115, %98, %cst_110 {dimension_numbers = #tpu.dot_dimension_numbers<[1], [0], [0], [1], [0, 0, 1, 1], [], []>} : vector<32x32xbf16>, vector<32x8xbf16>, vector<32x8xf32> -> vector<32x8xf32>
    %117 = arith.truncf %116 : vector<32x8xf32> to vector<32x8xbf16>
    %c0_111 = arith.constant 0 : index
    %c24_112 = arith.constant 24 : index
    %118 = vector.load %arg22[%c0_111, %c24_112] : memref<32x256xbf16, #tpu.memory_space<vmem>>, vector<32x8xbf16>
    tpu.vector_store %arg22[%c0_111, %c24_112], %117 {strides = array<i32>} : memref<32x256xbf16, #tpu.memory_space<vmem>>, vector<32x8xbf16>,
    %c4_113 = arith.constant 4 : index
    %c0_114 = arith.constant 0 : index
    %c0_115 = arith.constant 0 : index
    %119 = vector.load %arg5[%c4_113, %c0_114, %c0_115] : memref<9x32x32xbf16, #tpu.memory_space<vmem>>, vector<1x32x32xbf16>
    %120 = vector.shape_cast %119 : vector<1x32x32xbf16> to vector<32x32xbf16>
    %cst_116 = arith.constant dense<0.000000e+00> : vector<32x8xf32>
    %121 = tpu.matmul %120, %98, %cst_116 {dimension_numbers = #tpu.dot_dimension_numbers<[1], [0], [0], [1], [0, 0, 1, 1], [], []>} : vector<32x32xbf16>, vector<32x8xbf16>, vector<32x8xf32> -> vector<32x8xf32>
    %122 = arith.truncf %121 : vector<32x8xf32> to vector<32x8xbf16>
    %c0_117 = arith.constant 0 : index
    %c32_118 = arith.constant 32 : index
    %123 = vector.load %arg22[%c0_117, %c32_118] : memref<32x256xbf16, #tpu.memory_space<vmem>>, vector<32x8xbf16>
    tpu.vector_store %arg22[%c0_117, %c32_118], %122 {strides = array<i32>} : memref<32x256xbf16, #tpu.memory_space<vmem>>, vector<32x8xbf16>,
    %c5_119 = arith.constant 5 : index
    %c0_120 = arith.constant 0 : index
    %c0_121 = arith.constant 0 : index
    %124 = vector.load %arg5[%c5_119, %c0_120, %c0_121] : memref<9x32x32xbf16, #tpu.memory_space<vmem>>, vector<1x32x32xbf16>
    %125 = vector.shape_cast %124 : vector<1x32x32xbf16> to vector<32x32xbf16>
    %cst_122 = arith.constant dense<0.000000e+00> : vector<32x8xf32>
    %126 = tpu.matmul %125, %98, %cst_122 {dimension_numbers = #tpu.dot_dimension_numbers<[1], [0], [0], [1], [0, 0, 1, 1], [], []>} : vector<32x32xbf16>, vector<32x8xbf16>, vector<32x8xf32> -> vector<32x8xf32>
    %127 = arith.truncf %126 : vector<32x8xf32> to vector<32x8xbf16>
    %c0_123 = arith.constant 0 : index
    %c40_124 = arith.constant 40 : index
    %128 = vector.load %arg22[%c0_123, %c40_124] : memref<32x256xbf16, #tpu.memory_space<vmem>>, vector<32x8xbf16>
    tpu.vector_store %arg22[%c0_123, %c40_124], %127 {strides = array<i32>} : memref<32x256xbf16, #tpu.memory_space<vmem>>, vector<32x8xbf16>,
    %c6_125 = arith.constant 6 : index
    %c0_126 = arith.constant 0 : index
    %c0_127 = arith.constant 0 : index
    %129 = vector.load %arg5[%c6_125, %c0_126, %c0_127] : memref<9x32x32xbf16, #tpu.memory_space<vmem>>, vector<1x32x32xbf16>
    %130 = vector.shape_cast %129 : vector<1x32x32xbf16> to vector<32x32xbf16>
    %cst_128 = arith.constant dense<0.000000e+00> : vector<32x8xf32>
    %131 = tpu.matmul %130, %98, %cst_128 {dimension_numbers = #tpu.dot_dimension_numbers<[1], [0], [0], [1], [0, 0, 1, 1], [], []>} : vector<32x32xbf16>, vector<32x8xbf16>, vector<32x8xf32> -> vector<32x8xf32>
    %132 = arith.truncf %131 : vector<32x8xf32> to vector<32x8xbf16>
    %c0_129 = arith.constant 0 : index
    %c48_130 = arith.constant 48 : index
    %133 = vector.load %arg22[%c0_129, %c48_130] : memref<32x256xbf16, #tpu.memory_space<vmem>>, vector<32x8xbf16>
    tpu.vector_store %arg22[%c0_129, %c48_130], %132 {strides = array<i32>} : memref<32x256xbf16, #tpu.memory_space<vmem>>, vector<32x8xbf16>,
    %c7_131 = arith.constant 7 : index
    %c0_132 = arith.constant 0 : index
    %c0_133 = arith.constant 0 : index
    %134 = vector.load %arg5[%c7_131, %c0_132, %c0_133] : memref<9x32x32xbf16, #tpu.memory_space<vmem>>, vector<1x32x32xbf16>
    %135 = vector.shape_cast %134 : vector<1x32x32xbf16> to vector<32x32xbf16>
    %cst_134 = arith.constant dense<0.000000e+00> : vector<32x8xf32>
    %136 = tpu.matmul %135, %98, %cst_134 {dimension_numbers = #tpu.dot_dimension_numbers<[1], [0], [0], [1], [0, 0, 1, 1], [], []>} : vector<32x32xbf16>, vector<32x8xbf16>, vector<32x8xf32> -> vector<32x8xf32>
    %137 = arith.truncf %136 : vector<32x8xf32> to vector<32x8xbf16>
    %c0_135 = arith.constant 0 : index
    %c56_136 = arith.constant 56 : index
    %138 = vector.load %arg22[%c0_135, %c56_136] : memref<32x256xbf16, #tpu.memory_space<vmem>>, vector<32x8xbf16>
    tpu.vector_store %arg22[%c0_135, %c56_136], %137 {strides = array<i32>} : memref<32x256xbf16, #tpu.memory_space<vmem>>, vector<32x8xbf16>,
    %c8_137 = arith.constant 8 : index
    %c0_138 = arith.constant 0 : index
    %c0_139 = arith.constant 0 : index
    %139 = vector.load %arg5[%c8_137, %c0_138, %c0_139] : memref<9x32x32xbf16, #tpu.memory_space<vmem>>, vector<1x32x32xbf16>
    %140 = vector.shape_cast %139 : vector<1x32x32xbf16> to vector<32x32xbf16>
    %cst_140 = arith.constant dense<0.000000e+00> : vector<32x8xf32>
    %141 = tpu.matmul %140, %98, %cst_140 {dimension_numbers = #tpu.dot_dimension_numbers<[1], [0], [0], [1], [0, 0, 1, 1], [], []>} : vector<32x32xbf16>, vector<32x8xbf16>, vector<32x8xf32> -> vector<32x8xf32>
    %142 = arith.truncf %141 : vector<32x8xf32> to vector<32x8xbf16>
    %c0_141 = arith.constant 0 : index
    %c64_142 = arith.constant 64 : index
    %143 = vector.load %arg22[%c0_141, %c64_142] : memref<32x256xbf16, #tpu.memory_space<vmem>>, vector<32x8xbf16>
    tpu.vector_store %arg22[%c0_141, %c64_142], %142 {strides = array<i32>} : memref<32x256xbf16, #tpu.memory_space<vmem>>, vector<32x8xbf16>,
    %c0_143 = arith.constant 0 : index
    %c0_144 = arith.constant 0 : index
    %144 = vector.load %arg22[%c0_143, %c0_144] : memref<32x256xbf16, #tpu.memory_space<vmem>>, vector<32x72xbf16>
    %c0_145 = arith.constant 0 : index
    %c0_146 = arith.constant 0 : index
    %145 = vector.load %arg8[%c0_145, %c0_146] : memref<72x8xbf16, #tpu.memory_space<vmem>>, vector<72x8xbf16>
    %cst_147 = arith.constant dense<0.000000e+00> : vector<32x8xf32>
    %146 = tpu.matmul %144, %145, %cst_147 {dimension_numbers = #tpu.dot_dimension_numbers<[1], [0], [0], [1], [0, 0, 1, 1], [], []>} : vector<32x72xbf16>, vector<72x8xbf16>, vector<32x8xf32> -> vector<32x8xf32>
    %c0_148 = arith.constant 0 : index
    %c0_149 = arith.constant 0 : index
    %147 = vector.load %arg9[%c0_148, %c0_149] : memref<1x8xf32, #tpu.memory_space<vmem>>, vector<1x8xf32>
    %148 = vector.broadcast %147 : vector<1x8xf32> to vector<32x8xf32>
    %149 = arith.addf %146, %148 : vector<32x8xf32>
    %150 = arith.extf %44 : vector<32x8xbf16> to vector<32x8xf32>
    %151 = arith.addf %149, %150 : vector<32x8xf32>
    %cst_150 = arith.constant 0.000000e+00 : f32
    %152 = vector.broadcast %cst_150 : f32 to vector<32x8xf32>
    %153 = arith.maximumf %151, %152 : vector<32x8xf32>
    %154 = arith.truncf %153 : vector<32x8xf32> to vector<32x8xbf16>
    %c0_151 = arith.constant 0 : index
    %c0_152 = arith.constant 0 : index
    %c0_153 = arith.constant 0 : index
    %155 = vector.load %arg10[%c0_151, %c0_152, %c0_153] : memref<9x8x32xbf16, #tpu.memory_space<vmem>>, vector<1x8x32xbf16>
    %156 = vector.shape_cast %155 : vector<1x8x32xbf16> to vector<8x32xbf16>
    %cst_154 = arith.constant dense<0.000000e+00> : vector<8x8xf32>
    %157 = tpu.matmul %156, %154, %cst_154 {dimension_numbers = #tpu.dot_dimension_numbers<[1], [0], [0], [1], [0, 0, 1, 1], [], []>} : vector<8x32xbf16>, vector<32x8xbf16>, vector<8x8xf32> -> vector<8x8xf32>
    %158 = arith.truncf %157 : vector<8x8xf32> to vector<8x8xbf16>
    %c0_155 = arith.constant 0 : index
    %c0_156 = arith.constant 0 : index
    %159 = vector.load %arg22[%c0_155, %c0_156] : memref<32x256xbf16, #tpu.memory_space<vmem>>, vector<8x8xbf16>
    tpu.vector_store %arg22[%c0_155, %c0_156], %158 {strides = array<i32>} : memref<32x256xbf16, #tpu.memory_space<vmem>>, vector<8x8xbf16>,
    %c1_157 = arith.constant 1 : index
    %c0_158 = arith.constant 0 : index
    %c0_159 = arith.constant 0 : index
    %160 = vector.load %arg10[%c1_157, %c0_158, %c0_159] : memref<9x8x32xbf16, #tpu.memory_space<vmem>>, vector<1x8x32xbf16>
    %161 = vector.shape_cast %160 : vector<1x8x32xbf16> to vector<8x32xbf16>
    %cst_160 = arith.constant dense<0.000000e+00> : vector<8x8xf32>
    %162 = tpu.matmul %161, %154, %cst_160 {dimension_numbers = #tpu.dot_dimension_numbers<[1], [0], [0], [1], [0, 0, 1, 1], [], []>} : vector<8x32xbf16>, vector<32x8xbf16>, vector<8x8xf32> -> vector<8x8xf32>
    %163 = arith.truncf %162 : vector<8x8xf32> to vector<8x8xbf16>
    %c0_161 = arith.constant 0 : index
    %c8_162 = arith.constant 8 : index
    %164 = vector.load %arg22[%c0_161, %c8_162] : memref<32x256xbf16, #tpu.memory_space<vmem>>, vector<8x8xbf16>
    tpu.vector_store %arg22[%c0_161, %c8_162], %163 {strides = array<i32>} : memref<32x256xbf16, #tpu.memory_space<vmem>>, vector<8x8xbf16>,
    %c2_163 = arith.constant 2 : index
    %c0_164 = arith.constant 0 : index
    %c0_165 = arith.constant 0 : index
    %165 = vector.load %arg10[%c2_163, %c0_164, %c0_165] : memref<9x8x32xbf16, #tpu.memory_space<vmem>>, vector<1x8x32xbf16>
    %166 = vector.shape_cast %165 : vector<1x8x32xbf16> to vector<8x32xbf16>
    %cst_166 = arith.constant dense<0.000000e+00> : vector<8x8xf32>
    %167 = tpu.matmul %166, %154, %cst_166 {dimension_numbers = #tpu.dot_dimension_numbers<[1], [0], [0], [1], [0, 0, 1, 1], [], []>} : vector<8x32xbf16>, vector<32x8xbf16>, vector<8x8xf32> -> vector<8x8xf32>
    %168 = arith.truncf %167 : vector<8x8xf32> to vector<8x8xbf16>
    %c0_167 = arith.constant 0 : index
    %c16_168 = arith.constant 16 : index
    %169 = vector.load %arg22[%c0_167, %c16_168] : memref<32x256xbf16, #tpu.memory_space<vmem>>, vector<8x8xbf16>
    tpu.vector_store %arg22[%c0_167, %c16_168], %168 {strides = array<i32>} : memref<32x256xbf16, #tpu.memory_space<vmem>>, vector<8x8xbf16>,
    %c3_169 = arith.constant 3 : index
    %c0_170 = arith.constant 0 : index
    %c0_171 = arith.constant 0 : index
    %170 = vector.load %arg10[%c3_169, %c0_170, %c0_171] : memref<9x8x32xbf16, #tpu.memory_space<vmem>>, vector<1x8x32xbf16>
    %171 = vector.shape_cast %170 : vector<1x8x32xbf16> to vector<8x32xbf16>
    %cst_172 = arith.constant dense<0.000000e+00> : vector<8x8xf32>
    %172 = tpu.matmul %171, %154, %cst_172 {dimension_numbers = #tpu.dot_dimension_numbers<[1], [0], [0], [1], [0, 0, 1, 1], [], []>} : vector<8x32xbf16>, vector<32x8xbf16>, vector<8x8xf32> -> vector<8x8xf32>
    %173 = arith.truncf %172 : vector<8x8xf32> to vector<8x8xbf16>
    %c0_173 = arith.constant 0 : index
    %c24_174 = arith.constant 24 : index
    %174 = vector.load %arg22[%c0_173, %c24_174] : memref<32x256xbf16, #tpu.memory_space<vmem>>, vector<8x8xbf16>
    tpu.vector_store %arg22[%c0_173, %c24_174], %173 {strides = array<i32>} : memref<32x256xbf16, #tpu.memory_space<vmem>>, vector<8x8xbf16>,
    %c4_175 = arith.constant 4 : index
    %c0_176 = arith.constant 0 : index
    %c0_177 = arith.constant 0 : index
    %175 = vector.load %arg10[%c4_175, %c0_176, %c0_177] : memref<9x8x32xbf16, #tpu.memory_space<vmem>>, vector<1x8x32xbf16>
    %176 = vector.shape_cast %175 : vector<1x8x32xbf16> to vector<8x32xbf16>
    %cst_178 = arith.constant dense<0.000000e+00> : vector<8x8xf32>
    %177 = tpu.matmul %176, %154, %cst_178 {dimension_numbers = #tpu.dot_dimension_numbers<[1], [0], [0], [1], [0, 0, 1, 1], [], []>} : vector<8x32xbf16>, vector<32x8xbf16>, vector<8x8xf32> -> vector<8x8xf32>
    %178 = arith.truncf %177 : vector<8x8xf32> to vector<8x8xbf16>
    %c0_179 = arith.constant 0 : index
    %c32_180 = arith.constant 32 : index
    %179 = vector.load %arg22[%c0_179, %c32_180] : memref<32x256xbf16, #tpu.memory_space<vmem>>, vector<8x8xbf16>
    tpu.vector_store %arg22[%c0_179, %c32_180], %178 {strides = array<i32>} : memref<32x256xbf16, #tpu.memory_space<vmem>>, vector<8x8xbf16>,
    %c5_181 = arith.constant 5 : index
    %c0_182 = arith.constant 0 : index
    %c0_183 = arith.constant 0 : index
    %180 = vector.load %arg10[%c5_181, %c0_182, %c0_183] : memref<9x8x32xbf16, #tpu.memory_space<vmem>>, vector<1x8x32xbf16>
    %181 = vector.shape_cast %180 : vector<1x8x32xbf16> to vector<8x32xbf16>
    %cst_184 = arith.constant dense<0.000000e+00> : vector<8x8xf32>
    %182 = tpu.matmul %181, %154, %cst_184 {dimension_numbers = #tpu.dot_dimension_numbers<[1], [0], [0], [1], [0, 0, 1, 1], [], []>} : vector<8x32xbf16>, vector<32x8xbf16>, vector<8x8xf32> -> vector<8x8xf32>
    %183 = arith.truncf %182 : vector<8x8xf32> to vector<8x8xbf16>
    %c0_185 = arith.constant 0 : index
    %c40_186 = arith.constant 40 : index
    %184 = vector.load %arg22[%c0_185, %c40_186] : memref<32x256xbf16, #tpu.memory_space<vmem>>, vector<8x8xbf16>
    tpu.vector_store %arg22[%c0_185, %c40_186], %183 {strides = array<i32>} : memref<32x256xbf16, #tpu.memory_space<vmem>>, vector<8x8xbf16>,
    %c6_187 = arith.constant 6 : index
    %c0_188 = arith.constant 0 : index
    %c0_189 = arith.constant 0 : index
    %185 = vector.load %arg10[%c6_187, %c0_188, %c0_189] : memref<9x8x32xbf16, #tpu.memory_space<vmem>>, vector<1x8x32xbf16>
    %186 = vector.shape_cast %185 : vector<1x8x32xbf16> to vector<8x32xbf16>
    %cst_190 = arith.constant dense<0.000000e+00> : vector<8x8xf32>
    %187 = tpu.matmul %186, %154, %cst_190 {dimension_numbers = #tpu.dot_dimension_numbers<[1], [0], [0], [1], [0, 0, 1, 1], [], []>} : vector<8x32xbf16>, vector<32x8xbf16>, vector<8x8xf32> -> vector<8x8xf32>
    %188 = arith.truncf %187 : vector<8x8xf32> to vector<8x8xbf16>
    %c0_191 = arith.constant 0 : index
    %c48_192 = arith.constant 48 : index
    %189 = vector.load %arg22[%c0_191, %c48_192] : memref<32x256xbf16, #tpu.memory_space<vmem>>, vector<8x8xbf16>
    tpu.vector_store %arg22[%c0_191, %c48_192], %188 {strides = array<i32>} : memref<32x256xbf16, #tpu.memory_space<vmem>>, vector<8x8xbf16>,
    %c7_193 = arith.constant 7 : index
    %c0_194 = arith.constant 0 : index
    %c0_195 = arith.constant 0 : index
    %190 = vector.load %arg10[%c7_193, %c0_194, %c0_195] : memref<9x8x32xbf16, #tpu.memory_space<vmem>>, vector<1x8x32xbf16>
    %191 = vector.shape_cast %190 : vector<1x8x32xbf16> to vector<8x32xbf16>
    %cst_196 = arith.constant dense<0.000000e+00> : vector<8x8xf32>
    %192 = tpu.matmul %191, %154, %cst_196 {dimension_numbers = #tpu.dot_dimension_numbers<[1], [0], [0], [1], [0, 0, 1, 1], [], []>} : vector<8x32xbf16>, vector<32x8xbf16>, vector<8x8xf32> -> vector<8x8xf32>
    %193 = arith.truncf %192 : vector<8x8xf32> to vector<8x8xbf16>
    %c0_197 = arith.constant 0 : index
    %c56_198 = arith.constant 56 : index
    %194 = vector.load %arg22[%c0_197, %c56_198] : memref<32x256xbf16, #tpu.memory_space<vmem>>, vector<8x8xbf16>
    tpu.vector_store %arg22[%c0_197, %c56_198], %193 {strides = array<i32>} : memref<32x256xbf16, #tpu.memory_space<vmem>>, vector<8x8xbf16>,
    %c8_199 = arith.constant 8 : index
    %c0_200 = arith.constant 0 : index
    %c0_201 = arith.constant 0 : index
    %195 = vector.load %arg10[%c8_199, %c0_200, %c0_201] : memref<9x8x32xbf16, #tpu.memory_space<vmem>>, vector<1x8x32xbf16>
    %196 = vector.shape_cast %195 : vector<1x8x32xbf16> to vector<8x32xbf16>
    %cst_202 = arith.constant dense<0.000000e+00> : vector<8x8xf32>
    %197 = tpu.matmul %196, %154, %cst_202 {dimension_numbers = #tpu.dot_dimension_numbers<[1], [0], [0], [1], [0, 0, 1, 1], [], []>} : vector<8x32xbf16>, vector<32x8xbf16>, vector<8x8xf32> -> vector<8x8xf32>
    %198 = arith.truncf %197 : vector<8x8xf32> to vector<8x8xbf16>
    %c0_203 = arith.constant 0 : index
    %c64_204 = arith.constant 64 : index
    %199 = vector.load %arg22[%c0_203, %c64_204] : memref<32x256xbf16, #tpu.memory_space<vmem>>, vector<8x8xbf16>
    tpu.vector_store %arg22[%c0_203, %c64_204], %198 {strides = array<i32>} : memref<32x256xbf16, #tpu.memory_space<vmem>>, vector<8x8xbf16>,
    %c0_205 = arith.constant 0 : index
    %c0_206 = arith.constant 0 : index
    %200 = vector.load %arg22[%c0_205, %c0_206] : memref<32x256xbf16, #tpu.memory_space<vmem>>, vector<8x72xbf16>
    %c0_207 = arith.constant 0 : index
    %c0_208 = arith.constant 0 : index
    %201 = vector.load %arg12[%c0_207, %c0_208] : memref<72x16xbf16, #tpu.memory_space<vmem>>, vector<72x16xbf16>
    %cst_209 = arith.constant dense<0.000000e+00> : vector<8x16xf32>
    %202 = tpu.matmul %200, %201, %cst_209 {dimension_numbers = #tpu.dot_dimension_numbers<[1], [0], [0], [1], [0, 0, 1, 1], [], []>} : vector<8x72xbf16>, vector<72x16xbf16>, vector<8x16xf32> -> vector<8x16xf32>
    %c0_210 = arith.constant 0 : index
    %c0_211 = arith.constant 0 : index
    %203 = vector.load %arg13[%c0_210, %c0_211] : memref<1x16xf32, #tpu.memory_space<vmem>>, vector<1x16xf32>
    %204 = vector.broadcast %203 : vector<1x16xf32> to vector<8x16xf32>
    %205 = arith.addf %202, %204 : vector<8x16xf32>
    %cst_212 = arith.constant 0.000000e+00 : f32
    %206 = vector.broadcast %cst_212 : f32 to vector<8x16xf32>
    %207 = arith.maximumf %205, %206 : vector<8x16xf32>
    %208 = arith.truncf %207 : vector<8x16xf32> to vector<8x16xbf16>
    %c0_213 = arith.constant 0 : index
    %c0_214 = arith.constant 0 : index
    %c0_215 = arith.constant 0 : index
    %209 = vector.load %arg11[%c0_213, %c0_214, %c0_215] : memref<9x8x8xbf16, #tpu.memory_space<vmem>>, vector<1x8x8xbf16>
    %210 = vector.shape_cast %209 : vector<1x8x8xbf16> to vector<8x8xbf16>
    %cst_216 = arith.constant dense<0.000000e+00> : vector<8x16xf32>
    %211 = tpu.matmul %210, %208, %cst_216 {dimension_numbers = #tpu.dot_dimension_numbers<[1], [0], [0], [1], [0, 0, 1, 1], [], []>} : vector<8x8xbf16>, vector<8x16xbf16>, vector<8x16xf32> -> vector<8x16xf32>
    %212 = arith.truncf %211 : vector<8x16xf32> to vector<8x16xbf16>
    %c0_217 = arith.constant 0 : index
    %c0_218 = arith.constant 0 : index
    %213 = vector.load %arg22[%c0_217, %c0_218] : memref<32x256xbf16, #tpu.memory_space<vmem>>, vector<8x16xbf16>
    tpu.vector_store %arg22[%c0_217, %c0_218], %212 {strides = array<i32>} : memref<32x256xbf16, #tpu.memory_space<vmem>>, vector<8x16xbf16>,
    %c1_219 = arith.constant 1 : index
    %c0_220 = arith.constant 0 : index
    %c0_221 = arith.constant 0 : index
    %214 = vector.load %arg11[%c1_219, %c0_220, %c0_221] : memref<9x8x8xbf16, #tpu.memory_space<vmem>>, vector<1x8x8xbf16>
    %215 = vector.shape_cast %214 : vector<1x8x8xbf16> to vector<8x8xbf16>
    %cst_222 = arith.constant dense<0.000000e+00> : vector<8x16xf32>
    %216 = tpu.matmul %215, %208, %cst_222 {dimension_numbers = #tpu.dot_dimension_numbers<[1], [0], [0], [1], [0, 0, 1, 1], [], []>} : vector<8x8xbf16>, vector<8x16xbf16>, vector<8x16xf32> -> vector<8x16xf32>
    %217 = arith.truncf %216 : vector<8x16xf32> to vector<8x16xbf16>
    %c0_223 = arith.constant 0 : index
    %c16_224 = arith.constant 16 : index
    %218 = vector.load %arg22[%c0_223, %c16_224] : memref<32x256xbf16, #tpu.memory_space<vmem>>, vector<8x16xbf16>
    tpu.vector_store %arg22[%c0_223, %c16_224], %217 {strides = array<i32>} : memref<32x256xbf16, #tpu.memory_space<vmem>>, vector<8x16xbf16>,
    %c2_225 = arith.constant 2 : index
    %c0_226 = arith.constant 0 : index
    %c0_227 = arith.constant 0 : index
    %219 = vector.load %arg11[%c2_225, %c0_226, %c0_227] : memref<9x8x8xbf16, #tpu.memory_space<vmem>>, vector<1x8x8xbf16>
    %220 = vector.shape_cast %219 : vector<1x8x8xbf16> to vector<8x8xbf16>
    %cst_228 = arith.constant dense<0.000000e+00> : vector<8x16xf32>
    %221 = tpu.matmul %220, %208, %cst_228 {dimension_numbers = #tpu.dot_dimension_numbers<[1], [0], [0], [1], [0, 0, 1, 1], [], []>} : vector<8x8xbf16>, vector<8x16xbf16>, vector<8x16xf32> -> vector<8x16xf32>
    %222 = arith.truncf %221 : vector<8x16xf32> to vector<8x16xbf16>
    %c0_229 = arith.constant 0 : index
    %c32_230 = arith.constant 32 : index
    %223 = vector.load %arg22[%c0_229, %c32_230] : memref<32x256xbf16, #tpu.memory_space<vmem>>, vector<8x16xbf16>
    tpu.vector_store %arg22[%c0_229, %c32_230], %222 {strides = array<i32>} : memref<32x256xbf16, #tpu.memory_space<vmem>>, vector<8x16xbf16>,
    %c3_231 = arith.constant 3 : index
    %c0_232 = arith.constant 0 : index
    %c0_233 = arith.constant 0 : index
    %224 = vector.load %arg11[%c3_231, %c0_232, %c0_233] : memref<9x8x8xbf16, #tpu.memory_space<vmem>>, vector<1x8x8xbf16>
    %225 = vector.shape_cast %224 : vector<1x8x8xbf16> to vector<8x8xbf16>
    %cst_234 = arith.constant dense<0.000000e+00> : vector<8x16xf32>
    %226 = tpu.matmul %225, %208, %cst_234 {dimension_numbers = #tpu.dot_dimension_numbers<[1], [0], [0], [1], [0, 0, 1, 1], [], []>} : vector<8x8xbf16>, vector<8x16xbf16>, vector<8x16xf32> -> vector<8x16xf32>
    %227 = arith.truncf %226 : vector<8x16xf32> to vector<8x16xbf16>
    %c0_235 = arith.constant 0 : index
    %c48_236 = arith.constant 48 : index
    %228 = vector.load %arg22[%c0_235, %c48_236] : memref<32x256xbf16, #tpu.memory_space<vmem>>, vector<8x16xbf16>
    tpu.vector_store %arg22[%c0_235, %c48_236], %227 {strides = array<i32>} : memref<32x256xbf16, #tpu.memory_space<vmem>>, vector<8x16xbf16>,
    %c4_237 = arith.constant 4 : index
    %c0_238 = arith.constant 0 : index
    %c0_239 = arith.constant 0 : index
    %229 = vector.load %arg11[%c4_237, %c0_238, %c0_239] : memref<9x8x8xbf16, #tpu.memory_space<vmem>>, vector<1x8x8xbf16>
    %230 = vector.shape_cast %229 : vector<1x8x8xbf16> to vector<8x8xbf16>
    %cst_240 = arith.constant dense<0.000000e+00> : vector<8x16xf32>
    %231 = tpu.matmul %230, %208, %cst_240 {dimension_numbers = #tpu.dot_dimension_numbers<[1], [0], [0], [1], [0, 0, 1, 1], [], []>} : vector<8x8xbf16>, vector<8x16xbf16>, vector<8x16xf32> -> vector<8x16xf32>
    %232 = arith.truncf %231 : vector<8x16xf32> to vector<8x16xbf16>
    %c0_241 = arith.constant 0 : index
    %c64_242 = arith.constant 64 : index
    %233 = vector.load %arg22[%c0_241, %c64_242] : memref<32x256xbf16, #tpu.memory_space<vmem>>, vector<8x16xbf16>
    tpu.vector_store %arg22[%c0_241, %c64_242], %232 {strides = array<i32>} : memref<32x256xbf16, #tpu.memory_space<vmem>>, vector<8x16xbf16>,
    %c5_243 = arith.constant 5 : index
    %c0_244 = arith.constant 0 : index
    %c0_245 = arith.constant 0 : index
    %234 = vector.load %arg11[%c5_243, %c0_244, %c0_245] : memref<9x8x8xbf16, #tpu.memory_space<vmem>>, vector<1x8x8xbf16>
    %235 = vector.shape_cast %234 : vector<1x8x8xbf16> to vector<8x8xbf16>
    %cst_246 = arith.constant dense<0.000000e+00> : vector<8x16xf32>
    %236 = tpu.matmul %235, %208, %cst_246 {dimension_numbers = #tpu.dot_dimension_numbers<[1], [0], [0], [1], [0, 0, 1, 1], [], []>} : vector<8x8xbf16>, vector<8x16xbf16>, vector<8x16xf32> -> vector<8x16xf32>
    %237 = arith.truncf %236 : vector<8x16xf32> to vector<8x16xbf16>
    %c0_247 = arith.constant 0 : index
    %c80 = arith.constant 80 : index
    %238 = vector.load %arg22[%c0_247, %c80] : memref<32x256xbf16, #tpu.memory_space<vmem>>, vector<8x16xbf16>
    tpu.vector_store %arg22[%c0_247, %c80], %237 {strides = array<i32>} : memref<32x256xbf16, #tpu.memory_space<vmem>>, vector<8x16xbf16>,
    %c6_248 = arith.constant 6 : index
    %c0_249 = arith.constant 0 : index
    %c0_250 = arith.constant 0 : index
    %239 = vector.load %arg11[%c6_248, %c0_249, %c0_250] : memref<9x8x8xbf16, #tpu.memory_space<vmem>>, vector<1x8x8xbf16>
    %240 = vector.shape_cast %239 : vector<1x8x8xbf16> to vector<8x8xbf16>
    %cst_251 = arith.constant dense<0.000000e+00> : vector<8x16xf32>
    %241 = tpu.matmul %240, %208, %cst_251 {dimension_numbers = #tpu.dot_dimension_numbers<[1], [0], [0], [1], [0, 0, 1, 1], [], []>} : vector<8x8xbf16>, vector<8x16xbf16>, vector<8x16xf32> -> vector<8x16xf32>
    %242 = arith.truncf %241 : vector<8x16xf32> to vector<8x16xbf16>
    %c0_252 = arith.constant 0 : index
    %c96 = arith.constant 96 : index
    %243 = vector.load %arg22[%c0_252, %c96] : memref<32x256xbf16, #tpu.memory_space<vmem>>, vector<8x16xbf16>
    tpu.vector_store %arg22[%c0_252, %c96], %242 {strides = array<i32>} : memref<32x256xbf16, #tpu.memory_space<vmem>>, vector<8x16xbf16>,
    %c7_253 = arith.constant 7 : index
    %c0_254 = arith.constant 0 : index
    %c0_255 = arith.constant 0 : index
    %244 = vector.load %arg11[%c7_253, %c0_254, %c0_255] : memref<9x8x8xbf16, #tpu.memory_space<vmem>>, vector<1x8x8xbf16>
    %245 = vector.shape_cast %244 : vector<1x8x8xbf16> to vector<8x8xbf16>
    %cst_256 = arith.constant dense<0.000000e+00> : vector<8x16xf32>
    %246 = tpu.matmul %245, %208, %cst_256 {dimension_numbers = #tpu.dot_dimension_numbers<[1], [0], [0], [1], [0, 0, 1, 1], [], []>} : vector<8x8xbf16>, vector<8x16xbf16>, vector<8x16xf32> -> vector<8x16xf32>
    %247 = arith.truncf %246 : vector<8x16xf32> to vector<8x16xbf16>
    %c0_257 = arith.constant 0 : index
    %c112 = arith.constant 112 : index
    %248 = vector.load %arg22[%c0_257, %c112] : memref<32x256xbf16, #tpu.memory_space<vmem>>, vector<8x16xbf16>
    tpu.vector_store %arg22[%c0_257, %c112], %247 {strides = array<i32>} : memref<32x256xbf16, #tpu.memory_space<vmem>>, vector<8x16xbf16>,
    %c8_258 = arith.constant 8 : index
    %c0_259 = arith.constant 0 : index
    %c0_260 = arith.constant 0 : index
    %249 = vector.load %arg11[%c8_258, %c0_259, %c0_260] : memref<9x8x8xbf16, #tpu.memory_space<vmem>>, vector<1x8x8xbf16>
    %250 = vector.shape_cast %249 : vector<1x8x8xbf16> to vector<8x8xbf16>
    %cst_261 = arith.constant dense<0.000000e+00> : vector<8x16xf32>
    %251 = tpu.matmul %250, %208, %cst_261 {dimension_numbers = #tpu.dot_dimension_numbers<[1], [0], [0], [1], [0, 0, 1, 1], [], []>} : vector<8x8xbf16>, vector<8x16xbf16>, vector<8x16xf32> -> vector<8x16xf32>
    %252 = arith.truncf %251 : vector<8x16xf32> to vector<8x16xbf16>
    %c0_262 = arith.constant 0 : index
    %c128 = arith.constant 128 : index
    %253 = vector.load %arg22[%c0_262, %c128] : memref<32x256xbf16, #tpu.memory_space<vmem>>, vector<8x16xbf16>
    tpu.vector_store %arg22[%c0_262, %c128], %252 {strides = array<i32>} : memref<32x256xbf16, #tpu.memory_space<vmem>>, vector<8x16xbf16>,
    %c0_263 = arith.constant 0 : index
    %c0_264 = arith.constant 0 : index
    %254 = vector.load %arg22[%c0_263, %c0_264] : memref<32x256xbf16, #tpu.memory_space<vmem>>, vector<8x144xbf16>
    %c0_265 = arith.constant 0 : index
    %c0_266 = arith.constant 0 : index
    %255 = vector.load %arg14[%c0_265, %c0_266] : memref<144x16xbf16, #tpu.memory_space<vmem>>, vector<144x16xbf16>
    %cst_267 = arith.constant dense<0.000000e+00> : vector<8x16xf32>
    %256 = tpu.matmul %254, %255, %cst_267 {dimension_numbers = #tpu.dot_dimension_numbers<[1], [0], [0], [1], [0, 0, 1, 1], [], []>} : vector<8x144xbf16>, vector<144x16xbf16>, vector<8x16xf32> -> vector<8x16xf32>
    %c0_268 = arith.constant 0 : index
    %c0_269 = arith.constant 0 : index
    %257 = vector.load %arg15[%c0_268, %c0_269] : memref<1x16xf32, #tpu.memory_space<vmem>>, vector<1x16xf32>
    %258 = vector.broadcast %257 : vector<1x16xf32> to vector<8x16xf32>
    %259 = arith.addf %256, %258 : vector<8x16xf32>
    %c4_270 = arith.constant 4 : index
    %c0_271 = arith.constant 0 : index
    %c0_272 = arith.constant 0 : index
    %260 = vector.load %arg10[%c4_270, %c0_271, %c0_272] : memref<9x8x32xbf16, #tpu.memory_space<vmem>>, vector<1x8x32xbf16>
    %261 = vector.shape_cast %260 : vector<1x8x32xbf16> to vector<8x32xbf16>
    %cst_273 = arith.constant dense<0.000000e+00> : vector<8x8xf32>
    %262 = tpu.matmul %261, %154, %cst_273 {dimension_numbers = #tpu.dot_dimension_numbers<[1], [0], [0], [1], [0, 0, 1, 1], [], []>} : vector<8x32xbf16>, vector<32x8xbf16>, vector<8x8xf32> -> vector<8x8xf32>
    %263 = arith.truncf %262 : vector<8x8xf32> to vector<8x8xbf16>
    %c0_274 = arith.constant 0 : index
    %c0_275 = arith.constant 0 : index
    %264 = vector.load %arg16[%c0_274, %c0_275] : memref<8x16xbf16, #tpu.memory_space<vmem>>, vector<8x16xbf16>
    %cst_276 = arith.constant dense<0.000000e+00> : vector<8x16xf32>
    %265 = tpu.matmul %263, %264, %cst_276 {dimension_numbers = #tpu.dot_dimension_numbers<[1], [0], [0], [1], [0, 0, 1, 1], [], []>} : vector<8x8xbf16>, vector<8x16xbf16>, vector<8x16xf32> -> vector<8x16xf32>
    %c0_277 = arith.constant 0 : index
    %c0_278 = arith.constant 0 : index
    %266 = vector.load %arg17[%c0_277, %c0_278] : memref<1x16xf32, #tpu.memory_space<vmem>>, vector<1x16xf32>
    %267 = vector.broadcast %266 : vector<1x16xf32> to vector<8x16xf32>
    %268 = arith.addf %265, %267 : vector<8x16xf32>
    %269 = arith.addf %259, %268 : vector<8x16xf32>
    %cst_279 = arith.constant 0.000000e+00 : f32
    %270 = vector.broadcast %cst_279 : f32 to vector<8x16xf32>
    %271 = arith.maximumf %269, %270 : vector<8x16xf32>
    %272 = arith.truncf %271 : vector<8x16xf32> to vector<8x16xbf16>
    %c0_280 = arith.constant 0 : index
    %c0_281 = arith.constant 0 : index
    %273 = vector.load %arg18[%c0_280, %c0_281] : memref<8x8xbf16, #tpu.memory_space<vmem>>, vector<8x8xbf16>
    %cst_282 = arith.constant dense<0.000000e+00> : vector<8x16xf32>
    %274 = tpu.matmul %273, %272, %cst_282 {dimension_numbers = #tpu.dot_dimension_numbers<[1], [0], [0], [1], [0, 0, 1, 1], [], []>} : vector<8x8xbf16>, vector<8x16xbf16>, vector<8x16xf32> -> vector<8x16xf32>
    %cst_283 = arith.constant 2.500000e-01 : f32
    %275 = vector.broadcast %cst_283 : f32 to vector<8x16xf32>
    %276 = arith.mulf %274, %275 : vector<8x16xf32>
    %277 = arith.truncf %276 : vector<8x16xf32> to vector<8x16xbf16>
    %c0_284 = arith.constant 0 : index
    %c0_285 = arith.constant 0 : index
    %278 = vector.load %arg19[%c0_284, %c0_285] : memref<16x128xbf16, #tpu.memory_space<vmem>>, vector<16x128xbf16>
    %cst_286 = arith.constant dense<0.000000e+00> : vector<8x128xf32>
    %279 = tpu.matmul %277, %278, %cst_286 {dimension_numbers = #tpu.dot_dimension_numbers<[1], [0], [0], [1], [0, 0, 1, 1], [], []>} : vector<8x16xbf16>, vector<16x128xbf16>, vector<8x128xf32> -> vector<8x128xf32>
    %c0_287 = arith.constant 0 : index
    %c0_288 = arith.constant 0 : index
    %280 = vector.load %arg20[%c0_287, %c0_288] : memref<1x128xf32, #tpu.memory_space<vmem>>, vector<1x128xf32>
    %281 = vector.broadcast %280 : vector<1x128xf32> to vector<8x128xf32>
    %282 = arith.addf %279, %281 : vector<8x128xf32>
    %c0_289 = arith.constant 0 : index
    %c0_290 = arith.constant 0 : index
    %283 = vector.load %arg21[%c0_289, %c0_290] : memref<8x128xf32, #tpu.memory_space<vmem>>, vector<8x128xf32>
    tpu.vector_store %arg21[%c0_289, %c0_290], %282 {strides = array<i32>} : memref<8x128xf32, #tpu.memory_space<vmem>>, vector<8x128xf32>,
    return
  }
}

</mosaic_0001>

<llo_original>
// kernel: _lambda_.1
$region0: #{_lambda_.1}
  #allocation0 [shape = 'u32[]', space=smem, size = 0x4, offset = 0x4, fixed_abs, tag = 'smem constant byte address 0x4 - core index']
  #allocation1 [shape = 'u32[144,128]{1,0:T(1,128)}', space=vmem, size = 0x12000, scoped, tag = 'internal scratch']
  #allocation2 [shape = 'bf16[32,256]{1,0:T(16,128)(2,1)}', space=vmem, size = 0x4000, scoped, tag = 'scratch operand']
  %s0 = inlined_call_operand.vmem [shape: bf16[128,256], index: 0, kind: input, shape index: {}]
  %s1 = inlined_call_operand.vmem [shape: bf16[256,8], index: 1, kind: input, shape index: {}]
  %s2 = inlined_call_operand.vmem [shape: f32[1,8], index: 2, kind: input, shape index: {}]
  %s3 = inlined_call_operand.vmem [shape: bf16[9,32,128], index: 3, kind: input, shape index: {}]
  %s4 = inlined_call_operand.vmem [shape: bf16[9,32,32], index: 4, kind: input, shape index: {}, may-alias: {4,5}]
  %s5 = inlined_call_operand.vmem [shape: bf16[9,32,32], index: 5, kind: input, shape index: {}, may-alias: {4,5}]
  %s6 = inlined_call_operand.vmem [shape: bf16[72,8], index: 6, kind: input, shape index: {}]
  %s7 = inlined_call_operand.vmem [shape: f32[1,8], index: 7, kind: input, shape index: {}]
  %s8 = inlined_call_operand.vmem [shape: bf16[72,8], index: 8, kind: input, shape index: {}]
  %s9 = inlined_call_operand.vmem [shape: f32[1,8], index: 9, kind: input, shape index: {}]
  %s10 = inlined_call_operand.vmem [shape: bf16[9,8,32], index: 10, kind: input, shape index: {}]
  %s11 = inlined_call_operand.vmem [shape: bf16[9,8,8], index: 11, kind: input, shape index: {}]
  %s12 = inlined_call_operand.vmem [shape: bf16[72,16], index: 12, kind: input, shape index: {}]
  %s13 = inlined_call_operand.vmem [shape: f32[1,16], index: 13, kind: input, shape index: {}]
  %s14 = inlined_call_operand.vmem [shape: bf16[144,16], index: 14, kind: input, shape index: {}]
  %s15 = inlined_call_operand.vmem [shape: f32[1,16], index: 15, kind: input, shape index: {}]
  %s16 = inlined_call_operand.vmem [shape: bf16[8,16], index: 16, kind: input, shape index: {}]
  %s17 = inlined_call_operand.vmem [shape: f32[1,16], index: 17, kind: input, shape index: {}]
  %s18 = inlined_call_operand.vmem [shape: bf16[8,8], index: 18, kind: input, shape index: {}]
  %s19 = inlined_call_operand.vmem [shape: bf16[16,128], index: 19, kind: input, shape index: {}]
  %s20 = inlined_call_operand.vmem [shape: f32[1,128], index: 20, kind: input, shape index: {}]
  %s21 = inlined_call_operand.vmem [shape: f32[8,128], index: 21, kind: output, shape index: {}]
  %s22 = sld [smem:[#allocation0]]
  $region94: #{_lambda_.1} parent=0
    _
  %s24 = ssub.s32 1, %s22
  %s25 = scalar_select 0, %s24, %s22
  // Predicated region
  $region2: #{_lambda_.1} parent=0 // pred_check
    _
  $region3: #{_lambda_.1} parent=0 // pred_check_branch
    %27 = sbr.rel (0) target = $region5
  $region4: #{_lambda_.1} parent=0 // pred_region
    _
  $region5: #{_lambda_.1} parent=0 // pred_fallthru
    _
  // Predicated region
  $region6: #{_lambda_.1} parent=0 // pred_check
    _
  $region7: #{_lambda_.1} parent=0 // pred_check_branch
    %29 = sbr.rel (0) target = $region9
  $region8: #{_lambda_.1} parent=0 // pred_region
    _
  $region9: #{_lambda_.1} parent=0 // pred_fallthru
    _
  // Predicated region
  $region10: #{_lambda_.1} parent=0 // pred_check
    _
  $region11: #{_lambda_.1} parent=0 // pred_check_branch
    %31 = sbr.rel (0) target = $region13
  $region12: #{_lambda_.1} parent=0 // pred_region
    _
  $region13: #{_lambda_.1} parent=0 // pred_fallthru
    _
  // Predicated region
  $region14: #{_lambda_.1} parent=0 // pred_check
    _
  $region15: #{_lambda_.1} parent=0 // pred_check_branch
    %33 = sbr.rel (0) target = $region17
  $region16: #{_lambda_.1} parent=0 // pred_region
    _
  $region17: #{_lambda_.1} parent=0 // pred_fallthru
    _
  // Predicated region
  $region18: #{_lambda_.1} parent=0 // pred_check
    _
  $region19: #{_lambda_.1} parent=0 // pred_check_branch
    %35 = sbr.rel (0) target = $region21
  $region20: #{_lambda_.1} parent=0 // pred_region
    _
  $region21: #{_lambda_.1} parent=0 // pred_fallthru
    _
  // Predicated region
  $region22: #{_lambda_.1} parent=0 // pred_check
    _
  $region23: #{_lambda_.1} parent=0 // pred_check_branch
    %37 = sbr.rel (0) target = $region25
  $region24: #{_lambda_.1} parent=0 // pred_region
    _
  $region25: #{_lambda_.1} parent=0 // pred_fallthru
    _
  // Predicated region
  $region26: #{_lambda_.1} parent=0 // pred_check
    _
  $region27: #{_lambda_.1} parent=0 // pred_check_branch
    %39 = sbr.rel (0) target = $region29
  $region28: #{_lambda_.1} parent=0 // pred_region
    _
  $region29: #{_lambda_.1} parent=0 // pred_fallthru
    _
  // Predicated region
  $region30: #{_lambda_.1} parent=0 // pred_check
    _
  $region31: #{_lambda_.1} parent=0 // pred_check_branch
    %41 = sbr.rel (0) target = $region33
  $region32: #{_lambda_.1} parent=0 // pred_region
    _
  $region33: #{_lambda_.1} parent=0 // pred_fallthru
    _
  // Predicated region
  $region34: #{_lambda_.1} parent=0 // pred_check
    _
  $region35: #{_lambda_.1} parent=0 // pred_check_branch
    %43 = sbr.rel (0) target = $region37
  $region36: #{_lambda_.1} parent=0 // pred_region
    _
  $region37: #{_lambda_.1} parent=0 // pred_fallthru
    _
  // Predicated region
  $region38: #{_lambda_.1} parent=0 // pred_check
    _
  $region39: #{_lambda_.1} parent=0 // pred_check_branch
    %45 = sbr.rel (0) target = $region41
  $region40: #{_lambda_.1} parent=0 // pred_region
    _
  $region41: #{_lambda_.1} parent=0 // pred_fallthru
    _
  // Predicated region
  $region42: #{_lambda_.1} parent=0 // pred_check
    _
  $region43: #{_lambda_.1} parent=0 // pred_check_branch
    %47 = sbr.rel (0) target = $region45
  $region44: #{_lambda_.1} parent=0 // pred_region
    _
  $region45: #{_lambda_.1} parent=0 // pred_fallthru
    _
  // Predicated region
  $region46: #{_lambda_.1} parent=0 // pred_check
    _
  $region47: #{_lambda_.1} parent=0 // pred_check_branch
    %49 = sbr.rel (0) target = $region49
  $region48: #{_lambda_.1} parent=0 // pred_region
    _
  $region49: #{_lambda_.1} parent=0 // pred_fallthru
    _
  // Predicated region
  $region50: #{_lambda_.1} parent=0 // pred_check
    _
  $region51: #{_lambda_.1} parent=0 // pred_check_branch
    %51 = sbr.rel (0) target = $region53
  $region52: #{_lambda_.1} parent=0 // pred_region
    _
  $region53: #{_lambda_.1} parent=0 // pred_fallthru
    _
  // Predicated region
  $region54: #{_lambda_.1} parent=0 // pred_check
    _
  $region55: #{_lambda_.1} parent=0 // pred_check_branch
    %53 = sbr.rel (0) target = $region57
  $region56: #{_lambda_.1} parent=0 // pred_region
    _
  $region57: #{_lambda_.1} parent=0 // pred_fallthru
    _
  // Predicated region
  $region58: #{_lambda_.1} parent=0 // pred_check
    _
  $region59: #{_lambda_.1} parent=0 // pred_check_branch
    %55 = sbr.rel (0) target = $region61
  $region60: #{_lambda_.1} parent=0 // pred_region
    _
  $region61: #{_lambda_.1} parent=0 // pred_fallthru
    _
  // Predicated region
  $region62: #{_lambda_.1} parent=0 // pred_check
    _
  $region63: #{_lambda_.1} parent=0 // pred_check_branch
    %57 = sbr.rel (0) target = $region65
  $region64: #{_lambda_.1} parent=0 // pred_region
    _
  $region65: #{_lambda_.1} parent=0 // pred_fallthru
    _
  // Predicated region
  $region66: #{_lambda_.1} parent=0 // pred_check
    _
  $region67: #{_lambda_.1} parent=0 // pred_check_branch
    %59 = sbr.rel (0) target = $region69
  $region68: #{_lambda_.1} parent=0 // pred_region
    _
  $region69: #{_lambda_.1} parent=0 // pred_fallthru
    _
  // Predicated region
  $region70: #{_lambda_.1} parent=0 // pred_check
    _
  $region71: #{_lambda_.1} parent=0 // pred_check_branch
    %61 = sbr.rel (0) target = $region73
  $region72: #{_lambda_.1} parent=0 // pred_region
    _
  $region73: #{_lambda_.1} parent=0 // pred_fallthru
    _
  // Predicated region
  $region74: #{_lambda_.1} parent=0 // pred_check
    _
  $region75: #{_lambda_.1} parent=0 // pred_check_branch
    %63 = sbr.rel (0) target = $region77
  $region76: #{_lambda_.1} parent=0 // pred_region
    _
  $region77: #{_lambda_.1} parent=0 // pred_fallthru
    _
  // Predicated region
  $region78: #{_lambda_.1} parent=0 // pred_check
    _
  $region79: #{_lambda_.1} parent=0 // pred_check_branch
    %65 = sbr.rel (0) target = $region81
  $region80: #{_lambda_.1} parent=0 // pred_region
    _
  $region81: #{_lambda_.1} parent=0 // pred_fallthru
    _
  // Predicated region
  $region82: #{_lambda_.1} parent=0 // pred_check
    _
  $region83: #{_lambda_.1} parent=0 // pred_check_branch
    %67 = sbr.rel (0) target = $region85
  $region84: #{_lambda_.1} parent=0 // pred_region
    _
  $region85: #{_lambda_.1} parent=0 // pred_fallthru
    _
  %v69 = vld [vmem:[%s0] sm:$0xff]
  %v70 = vld [vmem:[%s0 + $0x8] sm:$0xff]
  %v71 = vld [vmem:[%s0 + $0x10] sm:$0xff]
  %v72 = vld [vmem:[%s0 + $0x18] sm:$0xff]
  %v73 = vld [vmem:[%s0 + $0x20] sm:$0xff]
  %v74 = vld [vmem:[%s0 + $0x28] sm:$0xff]
  %v75 = vld [vmem:[%s0 + $0x30] sm:$0xff]
  %v76 = vld [vmem:[%s0 + $0x38] sm:$0xff]
  %v77 = vld [vmem:[%s0 + $0x40] sm:$0xff]
  %v78 = vld [vmem:[%s0 + $0x48] sm:$0xff]
  %v79 = vld [vmem:[%s0 + $0x50] sm:$0xff]
  %v80 = vld [vmem:[%s0 + $0x58] sm:$0xff]
  %v81 = vld [vmem:[%s0 + $0x60] sm:$0xff]
  %v82 = vld [vmem:[%s0 + $0x68] sm:$0xff]
  %v83 = vld [vmem:[%s0 + $0x70] sm:$0xff]
  %v84 = vld [vmem:[%s0 + $0x78] sm:$0xff]
  %v85 = vld [vmem:[%s1] sm:$0xf]
  %v86 = vld [vmem:[%s1 + $0x4] sm:$0xf]
  %v87 = vld [vmem:[%s1 + $0x8] sm:$0xf]
  %v88 = vld [vmem:[%s1 + $0xc] sm:$0xf]
  %v89 = vld [vmem:[%s1 + $0x10] sm:$0xf]
  %v90 = vld [vmem:[%s1 + $0x14] sm:$0xf]
  %v91 = vld [vmem:[%s1 + $0x18] sm:$0xf]
  %v92 = vld [vmem:[%s1 + $0x1c] sm:$0xf]
  %v93 = vld [vmem:[%s1 + $0x20] sm:$0xf]
  %v94 = vld [vmem:[%s1 + $0x24] sm:$0xf]
  %v95 = vld [vmem:[%s1 + $0x28] sm:$0xf]
  %v96 = vld [vmem:[%s1 + $0x2c] sm:$0xf]
  %v97 = vld [vmem:[%s1 + $0x30] sm:$0xf]
  %v98 = vld [vmem:[%s1 + $0x34] sm:$0xf]
  %v99 = vld [vmem:[%s1 + $0x38] sm:$0xf]
  %v100 = vld [vmem:[%s1 + $0x3c] sm:$0xf]
  %v101 = vld [vmem:[%s1 + $0x40] sm:$0xf]
  %v102 = vld [vmem:[%s1 + $0x44] sm:$0xf]
  %v103 = vld [vmem:[%s1 + $0x48] sm:$0xf]
  %v104 = vld [vmem:[%s1 + $0x4c] sm:$0xf]
  %v105 = vld [vmem:[%s1 + $0x50] sm:$0xf]
  %v106 = vld [vmem:[%s1 + $0x54] sm:$0xf]
  %v107 = vld [vmem:[%s1 + $0x58] sm:$0xf]
  %v108 = vld [vmem:[%s1 + $0x5c] sm:$0xf]
  %v109 = vld [vmem:[%s1 + $0x60] sm:$0xf]
  %v110 = vld [vmem:[%s1 + $0x64] sm:$0xf]
  %v111 = vld [vmem:[%s1 + $0x68] sm:$0xf]
  %v112 = vld [vmem:[%s1 + $0x6c] sm:$0xf]
  %v113 = vld [vmem:[%s1 + $0x70] sm:$0xf]
  %v114 = vld [vmem:[%s1 + $0x74] sm:$0xf]
  %v115 = vld [vmem:[%s1 + $0x78] sm:$0xf]
  %v116 = vld [vmem:[%s1 + $0x7c] sm:$0xf]
  %v117 = vld [vmem:[%s2] sm:$0x1]
  %v119 = vlaneseq
  %v120 = vshrl.u32 %v119, 7
  %v121 = vsub.s32 0, %v120
  %v122 = vrot.slane %v117, %v121
  %v140 = vunpack.c.l.b16 %v69
  %v141 = vunpack.c.h.b16 %v69
  %v142 = vunpack.c.l.b16 %v70
  %v143 = vunpack.c.h.b16 %v70
  %v144 = vunpack.c.l.b16 %v71
  %v145 = vunpack.c.h.b16 %v71
  %v146 = vunpack.c.l.b16 %v72
  %v147 = vunpack.c.h.b16 %v72
  %v148 = vunpack.c.l.b16 %v73
  %v149 = vunpack.c.h.b16 %v73
  %v150 = vunpack.c.l.b16 %v74
  %v151 = vunpack.c.h.b16 %v74
  %v152 = vunpack.c.l.b16 %v75
  %v153 = vunpack.c.h.b16 %v75
  %v154 = vunpack.c.l.b16 %v76
  %v155 = vunpack.c.h.b16 %v76
  %v156 = vunpack.c.l.b16 %v77
  %v157 = vunpack.c.h.b16 %v77
  %v158 = vunpack.c.l.b16 %v78
  %v159 = vunpack.c.h.b16 %v78
  %v160 = vunpack.c.l.b16 %v79
  %v161 = vunpack.c.h.b16 %v79
  %v162 = vunpack.c.l.b16 %v80
  %v163 = vunpack.c.h.b16 %v80
  %v164 = vunpack.c.l.b16 %v81
  %v165 = vunpack.c.h.b16 %v81
  %v166 = vunpack.c.l.b16 %v82
  %v167 = vunpack.c.h.b16 %v82
  %v168 = vunpack.c.l.b16 %v83
  %v169 = vunpack.c.h.b16 %v83
  %v170 = vunpack.c.l.b16 %v84
  %v171 = vunpack.c.h.b16 %v84
  %v172 = vpack.c.b16 %v142, %v140
  %v173 = vpack.c.b16 %v143, %v141
  %v174 = vpack.c.b16 %v146, %v144
  %v175 = vpack.c.b16 %v147, %v145
  %v176 = vpack.c.b16 %v150, %v148
  %v177 = vpack.c.b16 %v151, %v149
  %v178 = vpack.c.b16 %v154, %v152
  %v179 = vpack.c.b16 %v155, %v153
  %v180 = vpack.c.b16 %v158, %v156
  %v181 = vpack.c.b16 %v159, %v157
  %v182 = vpack.c.b16 %v162, %v160
  %v183 = vpack.c.b16 %v163, %v161
  %v184 = vpack.c.b16 %v166, %v164
  %v185 = vpack.c.b16 %v167, %v165
  %v186 = vpack.c.b16 %v170, %v168
  %v187 = vpack.c.b16 %v171, %v169
  %v236 = vunpack.c.l.b16 %v85
  %v237 = vunpack.c.l.b16 %v86
  %v238 = vunpack.c.l.b16 %v87
  %v239 = vunpack.c.l.b16 %v88
  %v240 = vunpack.c.l.b16 %v89
  %v241 = vunpack.c.l.b16 %v90
  %v242 = vunpack.c.l.b16 %v91
  %v243 = vunpack.c.l.b16 %v92
  %v244 = vunpack.c.l.b16 %v93
  %v245 = vunpack.c.l.b16 %v94
  %v246 = vunpack.c.l.b16 %v95
  %v247 = vunpack.c.l.b16 %v96
  %v248 = vunpack.c.l.b16 %v97
  %v249 = vunpack.c.l.b16 %v98
  %v250 = vunpack.c.l.b16 %v99
  %v251 = vunpack.c.l.b16 %v100
  %v252 = vunpack.c.l.b16 %v101
  %v253 = vunpack.c.l.b16 %v102
  %v254 = vunpack.c.l.b16 %v103
  %v255 = vunpack.c.l.b16 %v104
  %v256 = vunpack.c.l.b16 %v105
  %v257 = vunpack.c.l.b16 %v106
  %v258 = vunpack.c.l.b16 %v107
  %v259 = vunpack.c.l.b16 %v108
  %v260 = vunpack.c.l.b16 %v109
  %v261 = vunpack.c.l.b16 %v110
  %v262 = vunpack.c.l.b16 %v111
  %v263 = vunpack.c.l.b16 %v112
  %v264 = vunpack.c.l.b16 %v113
  %v265 = vunpack.c.l.b16 %v114
  %v266 = vunpack.c.l.b16 %v115
  %v267 = vunpack.c.l.b16 %v116
  %v268 = vpack.c.b16 %v237, %v236
  %v269 = vpack.c.b16 %v239, %v238
  %v270 = vpack.c.b16 %v241, %v240
  %v271 = vpack.c.b16 %v243, %v242
  %v272 = vpack.c.b16 %v245, %v244
  %v273 = vpack.c.b16 %v247, %v246
  %v274 = vpack.c.b16 %v249, %v248
  %v275 = vpack.c.b16 %v251, %v250
  %v276 = vpack.c.b16 %v253, %v252
  %v277 = vpack.c.b16 %v255, %v254
  %v278 = vpack.c.b16 %v257, %v256
  %v279 = vpack.c.b16 %v259, %v258
  %v280 = vpack.c.b16 %v261, %v260
  %v281 = vpack.c.b16 %v263, %v262
  %v282 = vpack.c.b16 %v265, %v264
  %v283 = vpack.c.b16 %v267, %v266
  %300 = vmatprep.subr.bf16.mxu0 0
  %301 = vmatpush1.bf16.msra.mxu0 %v268
  %302 = vmatprep.subr.bf16.mxu0 0
  %303 = vmatpush1.bf16.msra.mxu0 %v269
  %304 = vmatprep.subr.bf16.mxu0 0
  %305 = vmatpush1.bf16.msra.mxu0 %v270
  %306 = vmatprep.subr.bf16.mxu0 0
  %307 = vmatpush1.bf16.msra.mxu0 %v271
  %308 = vmatprep.subr.bf16.mxu0 0
  %309 = vmatpush1.bf16.msra.mxu0 %v272
  %310 = vmatprep.subr.bf16.mxu0 0
  %311 = vmatpush1.bf16.msra.mxu0 %v273
  %312 = vmatprep.subr.bf16.mxu0 0
  %313 = vmatpush1.bf16.msra.mxu0 %v274
  %314 = vmatprep.subr.bf16.mxu0 0
  %315 = vmatpush1.bf16.msra.mxu0 %v275
  %316 = vmatprep.subr.bf16.mxu0 0
  %317 = vmatpush1.bf16.msra.mxu0 %v276
  %318 = vmatprep.subr.bf16.mxu0 0
  %319 = vmatpush1.bf16.msra.mxu0 %v277
  %320 = vmatprep.subr.bf16.mxu0 0
  %321 = vmatpush1.bf16.msra.mxu0 %v278
  %322 = vmatprep.subr.bf16.mxu0 0
  %323 = vmatpush1.bf16.msra.mxu0 %v279
  %324 = vmatprep.subr.bf16.mxu0 0
  %325 = vmatpush1.bf16.msra.mxu0 %v280
  %326 = vmatprep.subr.bf16.mxu0 0
  %327 = vmatpush1.bf16.msra.mxu0 %v281
  %328 = vmatprep.subr.bf16.mxu0 0
  %329 = vmatpush1.bf16.msra.mxu0 %v282
  %330 = vmatprep.subr.bf16.mxu0 0
  %331 = vmatpush1.bf16.msra.mxu0 %v283
  %332 = vmatprep.mubr.bf16.mxu0 %v173
  %333 = vmatmul.mubr.bf16.gmra.mrb[0].mxu0 %v172
  %v334 = vpop.f32.mrb[0].mxu0
  %v335 = vadd.f32 %v122, %v334
  %v336 = vpop.f32.mrb[0].mxu0
  %v337 = vpop.f32.mrb[0].mxu0
  %v338 = vadd.f32 %v122, %v337
  %v339 = vpop.f32.mrb[0].mxu0
  %340 = vmatprep.mubr.bf16.mxu0 %v175
  %341 = vmatmul.mubr.bf16.gmra.mrb[0].mxu0 %v174
  %v342 = vpop.f32.mrb[0].mxu0
  %v343 = vadd.f32 %v122, %v342
  %v344 = vpop.f32.mrb[0].mxu0
  %v345 = vpop.f32.mrb[0].mxu0
  %v346 = vadd.f32 %v122, %v345
  %v347 = vpop.f32.mrb[0].mxu0
  %348 = vmatprep.mubr.bf16.mxu0 %v177
  %349 = vmatmul.mubr.bf16.gmra.mrb[0].mxu0 %v176
  %v350 = vpop.f32.mrb[0].mxu0
  %v351 = vadd.f32 %v122, %v350
  %v352 = vpop.f32.mrb[0].mxu0
  %v353 = vpop.f32.mrb[0].mxu0
  %v354 = vadd.f32 %v122, %v353
  %v355 = vpop.f32.mrb[0].mxu0
  %356 = vmatprep.mubr.bf16.mxu0 %v179
  %357 = vmatmul.mubr.bf16.gmra.mrb[0].mxu0 %v178
  %v358 = vpop.f32.mrb[0].mxu0
  %v359 = vadd.f32 %v122, %v358
  %v360 = vpop.f32.mrb[0].mxu0
  %v361 = vpop.f32.mrb[0].mxu0
  %v362 = vadd.f32 %v122, %v361
  %v363 = vpop.f32.mrb[0].mxu0
  %364 = vmatprep.mubr.bf16.mxu0 %v181
  %365 = vmatmul.mubr.bf16.gmra.mrb[0].mxu0 %v180
  %v366 = vpop.f32.mrb[0].mxu0
  %v367 = vadd.f32 %v122, %v366
  %v368 = vpop.f32.mrb[0].mxu0
  %v369 = vpop.f32.mrb[0].mxu0
  %v370 = vadd.f32 %v122, %v369
  %v371 = vpop.f32.mrb[0].mxu0
  %372 = vmatprep.mubr.bf16.mxu0 %v183
  %373 = vmatmul.mubr.bf16.gmra.mrb[0].mxu0 %v182
  %v374 = vpop.f32.mrb[0].mxu0
  %v375 = vadd.f32 %v122, %v374
  %v376 = vpop.f32.mrb[0].mxu0
  %v377 = vpop.f32.mrb[0].mxu0
  %v378 = vadd.f32 %v122, %v377
  %v379 = vpop.f32.mrb[0].mxu0
  %380 = vmatprep.mubr.bf16.mxu0 %v185
  %381 = vmatmul.mubr.bf16.gmra.mrb[0].mxu0 %v184
  %v382 = vpop.f32.mrb[0].mxu0
  %v383 = vadd.f32 %v122, %v382
  %v384 = vpop.f32.mrb[0].mxu0
  %v385 = vpop.f32.mrb[0].mxu0
  %v386 = vadd.f32 %v122, %v385
  %v387 = vpop.f32.mrb[0].mxu0
  %388 = vmatprep.mubr.bf16.mxu0 %v187
  %389 = vmatmul.mubr.bf16.gmra.mrb[0].mxu0 %v186
  %v390 = vpop.f32.mrb[0].mxu0
  %v391 = vadd.f32 %v122, %v390
  %v392 = vpop.f32.mrb[0].mxu0
  %v393 = vpop.f32.mrb[0].mxu0
  %v394 = vadd.f32 %v122, %v393
  %v395 = vpop.f32.mrb[0].mxu0
  %396 = vdwg.mxu0
  %v397 = vmax.f32 %v335, 0.0
  %v398 = vmax.f32 %v338, 0.0
  %v399 = vmax.f32 %v343, 0.0
  %v400 = vmax.f32 %v346, 0.0
  %v401 = vmax.f32 %v351, 0.0
  %v402 = vmax.f32 %v354, 0.0
  %v403 = vmax.f32 %v359, 0.0
  %v404 = vmax.f32 %v362, 0.0
  %v405 = vmax.f32 %v367, 0.0
  %v406 = vmax.f32 %v370, 0.0
  %v407 = vmax.f32 %v375, 0.0
  %v408 = vmax.f32 %v378, 0.0
  %v409 = vmax.f32 %v383, 0.0
  %v410 = vmax.f32 %v386, 0.0
  %v411 = vmax.f32 %v391, 0.0
  %v412 = vmax.f32 %v394, 0.0
  %v413 = vpack.c.bf16 %v398, %v397
  %v414 = vpack.c.bf16 %v400, %v399
  %v415 = vpack.c.bf16 %v402, %v401
  %v416 = vpack.c.bf16 %v404, %v403
  %v417 = vpack.c.bf16 %v406, %v405
  %v418 = vpack.c.bf16 %v408, %v407
  %v419 = vpack.c.bf16 %v410, %v409
  %v420 = vpack.c.bf16 %v412, %v411
  %v421 = vld [vmem:[%s3] sm:$0xf]
  %v422 = vld [vmem:[%s3 + $0x4] sm:$0xf]
  %v423 = vld [vmem:[%s3 + $0x8] sm:$0xf]
  %v424 = vld [vmem:[%s3 + $0xc] sm:$0xf]
  %v429 = vunpack.c.l.b16 %v421
  %v430 = vunpack.c.l.b16 %v422
  %v431 = vunpack.c.l.b16 %v423
  %v432 = vunpack.c.l.b16 %v424
  %v433 = vpack.c.b16 %v430, %v429
  %v434 = vpack.c.b16 %v432, %v431
  %437 = vmatprep.subr.bf16.mxu0 0
  %438 = vmatpush1.bf16.msra.mxu0 %v413
  %439 = vmatprep.subr.bf16.mxu0 0
  %440 = vmatpush1.bf16.msra.mxu0 %v414
  %441 = vmatprep.subr.bf16.mxu0 0
  %442 = vmatpush1.bf16.msra.mxu0 %v415
  %443 = vmatprep.subr.bf16.mxu0 0
  %444 = vmatpush1.bf16.msra.mxu0 %v416
  %445 = vmatprep.subr.bf16.mxu0 0
  %446 = vmatpush1.bf16.msra.mxu0 %v417
  %447 = vmatprep.subr.bf16.mxu0 0
  %448 = vmatpush1.bf16.msra.mxu0 %v418
  %449 = vmatprep.subr.bf16.mxu0 0
  %450 = vmatpush1.bf16.msra.mxu0 %v419
  %451 = vmatprep.subr.bf16.mxu0 0
  %452 = vmatpush1.bf16.msra.mxu0 %v420
  %453 = vmatprep.subr.bf16.mxu0 0
  %454 = vmatpush1.bf16.msra.mxu0 0
  %455 = vmatprep.subr.bf16.mxu0 0
  %456 = vmatpush1.bf16.msra.mxu0 0
  %457 = vmatprep.subr.bf16.mxu0 0
  %458 = vmatpush1.bf16.msra.mxu0 0
  %459 = vmatprep.subr.bf16.mxu0 0
  %460 = vmatpush1.bf16.msra.mxu0 0
  %461 = vmatprep.subr.bf16.mxu0 0
  %462 = vmatpush1.bf16.msra.mxu0 0
  %463 = vmatprep.subr.bf16.mxu0 0
  %464 = vmatpush1.bf16.msra.mxu0 0
  %465 = vmatprep.subr.bf16.mxu0 0
  %466 = vmatpush1.bf16.msra.mxu0 0
  %467 = vmatprep.subr.bf16.mxu0 0
  %468 = vmatpush1.bf16.msra.mxu0 0
  %469 = vmatprep.mubr.bf16.mxu0 0
  %470 = vmatmul.mubr.bf16.gmra.mrb[0].mxu0 %v433
  %v471 = vpop.f32.mrb[0].mxu0
  %v472 = vadd.f32 0.0, %v471
  %v473 = vpop.f32.mrb[0].mxu0
  %v474 = vpop.f32.mrb[0].mxu0
  %v475 = vadd.f32 0.0, %v474
  %v476 = vpop.f32.mrb[0].mxu0
  %477 = vmatprep.mubr.bf16.mxu0 0
  %478 = vmatmul.mubr.bf16.gmra.mrb[0].mxu0 %v434
  %v479 = vpop.f32.mrb[0].mxu0
  %v480 = vadd.f32 0.0, %v479
  %v481 = vpop.f32.mrb[0].mxu0
  %v482 = vpop.f32.mrb[0].mxu0
  %v483 = vadd.f32 0.0, %v482
  %v484 = vpop.f32.mrb[0].mxu0
  %485 = vdwg.mxu0
  %s486 = scalar_lea.vmem %s3, 16
  %v487 = vld [vmem:[%s486] sm:$0xf]
  %v488 = vld [vmem:[%s486 + $0x4] sm:$0xf]
  %v489 = vld [vmem:[%s486 + $0x8] sm:$0xf]
  %v490 = vld [vmem:[%s486 + $0xc] sm:$0xf]
  %v495 = vunpack.c.l.b16 %v487
  %v496 = vunpack.c.l.b16 %v488
  %v497 = vunpack.c.l.b16 %v489
  %v498 = vunpack.c.l.b16 %v490
  %v499 = vpack.c.b16 %v496, %v495
  %v500 = vpack.c.b16 %v498, %v497
  %503 = vmatprep.subr.bf16.mxu0 0
  %504 = vmatpush1.bf16.msra.mxu0 %v413
  %505 = vmatprep.subr.bf16.mxu0 0
  %506 = vmatpush1.bf16.msra.mxu0 %v414
  %507 = vmatprep.subr.bf16.mxu0 0
  %508 = vmatpush1.bf16.msra.mxu0 %v415
  %509 = vmatprep.subr.bf16.mxu0 0
  %510 = vmatpush1.bf16.msra.mxu0 %v416
  %511 = vmatprep.subr.bf16.mxu0 0
  %512 = vmatpush1.bf16.msra.mxu0 %v417
  %513 = vmatprep.subr.bf16.mxu0 0
  %514 = vmatpush1.bf16.msra.mxu0 %v418
  %515 = vmatprep.subr.bf16.mxu0 0
  %516 = vmatpush1.bf16.msra.mxu0 %v419
  %517 = vmatprep.subr.bf16.mxu0 0
  %518 = vmatpush1.bf16.msra.mxu0 %v420
  %519 = vmatprep.subr.bf16.mxu0 0
  %520 = vmatpush1.bf16.msra.mxu0 0
  %521 = vmatprep.subr.bf16.mxu0 0
  %522 = vmatpush1.bf16.msra.mxu0 0
  %523 = vmatprep.subr.bf16.mxu0 0
  %524 = vmatpush1.bf16.msra.mxu0 0
  %525 = vmatprep.subr.bf16.mxu0 0
  %526 = vmatpush1.bf16.msra.mxu0 0
  %527 = vmatprep.subr.bf16.mxu0 0
  %528 = vmatpush1.bf16.msra.mxu0 0
  %529 = vmatprep.subr.bf16.mxu0 0
  %530 = vmatpush1.bf16.msra.mxu0 0
  %531 = vmatprep.subr.bf16.mxu0 0
  %532 = vmatpush1.bf16.msra.mxu0 0
  %533 = vmatprep.subr.bf16.mxu0 0
  %534 = vmatpush1.bf16.msra.mxu0 0
  %535 = vmatprep.mubr.bf16.mxu0 0
  %536 = vmatmul.mubr.bf16.gmra.mrb[0].mxu0 %v499
  %v537 = vpop.f32.mrb[0].mxu0
  %v538 = vadd.f32 0.0, %v537
  %v539 = vpop.f32.mrb[0].mxu0
  %v540 = vpop.f32.mrb[0].mxu0
  %v541 = vadd.f32 0.0, %v540
  %v542 = vpop.f32.mrb[0].mxu0
  %543 = vmatprep.mubr.bf16.mxu0 0
  %544 = vmatmul.mubr.bf16.gmra.mrb[0].mxu0 %v500
  %v545 = vpop.f32.mrb[0].mxu0
  %v546 = vadd.f32 0.0, %v545
  %v547 = vpop.f32.mrb[0].mxu0
  %v548 = vpop.f32.mrb[0].mxu0
  %v549 = vadd.f32 0.0, %v548
  %v550 = vpop.f32.mrb[0].mxu0
  %551 = vdwg.mxu0
  %v552 = vmax.f32 %v472, %v538
  %v553 = vmax.f32 %v475, %v541
  %v554 = vmax.f32 %v480, %v546
  %v555 = vmax.f32 %v483, %v549
  %s556 = scalar_lea.vmem %s3, 32
  %v557 = vld [vmem:[%s556] sm:$0xf]
  %v558 = vld [vmem:[%s556 + $0x4] sm:$0xf]
  %v559 = vld [vmem:[%s556 + $0x8] sm:$0xf]
  %v560 = vld [vmem:[%s556 + $0xc] sm:$0xf]
  %v565 = vunpack.c.l.b16 %v557
  %v566 = vunpack.c.l.b16 %v558
  %v567 = vunpack.c.l.b16 %v559
  %v568 = vunpack.c.l.b16 %v560
  %v569 = vpack.c.b16 %v566, %v565
  %v570 = vpack.c.b16 %v568, %v567
  %573 = vmatprep.subr.bf16.mxu0 0
  %574 = vmatpush1.bf16.msra.mxu0 %v413
  %575 = vmatprep.subr.bf16.mxu0 0
  %576 = vmatpush1.bf16.msra.mxu0 %v414
  %577 = vmatprep.subr.bf16.mxu0 0
  %578 = vmatpush1.bf16.msra.mxu0 %v415
  %579 = vmatprep.subr.bf16.mxu0 0
  %580 = vmatpush1.bf16.msra.mxu0 %v416
  %581 = vmatprep.subr.bf16.mxu0 0
  %582 = vmatpush1.bf16.msra.mxu0 %v417
  %583 = vmatprep.subr.bf16.mxu0 0
  %584 = vmatpush1.bf16.msra.mxu0 %v418
  %585 = vmatprep.subr.bf16.mxu0 0
  %586 = vmatpush1.bf16.msra.mxu0 %v419
  %587 = vmatprep.subr.bf16.mxu0 0
  %588 = vmatpush1.bf16.msra.mxu0 %v420
  %589 = vmatprep.subr.bf16.mxu0 0
  %590 = vmatpush1.bf16.msra.mxu0 0
  %591 = vmatprep.subr.bf16.mxu0 0
  %592 = vmatpush1.bf16.msra.mxu0 0
  %593 = vmatprep.subr.bf16.mxu0 0
  %594 = vmatpush1.bf16.msra.mxu0 0
  %595 = vmatprep.subr.bf16.mxu0 0
  %596 = vmatpush1.bf16.msra.mxu0 0
  %597 = vmatprep.subr.bf16.mxu0 0
  %598 = vmatpush1.bf16.msra.mxu0 0
  %599 = vmatprep.subr.bf16.mxu0 0
  %600 = vmatpush1.bf16.msra.mxu0 0
  %601 = vmatprep.subr.bf16.mxu0 0
  %602 = vmatpush1.bf16.msra.mxu0 0
  %603 = vmatprep.subr.bf16.mxu0 0
  %604 = vmatpush1.bf16.msra.mxu0 0
  %605 = vmatprep.mubr.bf16.mxu0 0
  %606 = vmatmul.mubr.bf16.gmra.mrb[0].mxu0 %v569
  %v607 = vpop.f32.mrb[0].mxu0
  %v608 = vadd.f32 0.0, %v607
  %v609 = vpop.f32.mrb[0].mxu0
  %v610 = vpop.f32.mrb[0].mxu0
  %v611 = vadd.f32 0.0, %v610
  %v612 = vpop.f32.mrb[0].mxu0
  %613 = vmatprep.mubr.bf16.mxu0 0
  %614 = vmatmul.mubr.bf16.gmra.mrb[0].mxu0 %v570
  %v615 = vpop.f32.mrb[0].mxu0
  %v616 = vadd.f32 0.0, %v615
  %v617 = vpop.f32.mrb[0].mxu0
  %v618 = vpop.f32.mrb[0].mxu0
  %v619 = vadd.f32 0.0, %v618
  %v620 = vpop.f32.mrb[0].mxu0
  %621 = vdwg.mxu0
  %v622 = vmax.f32 %v552, %v608
  %v623 = vmax.f32 %v553, %v611
  %v624 = vmax.f32 %v554, %v616
  %v625 = vmax.f32 %v555, %v619
  %s626 = scalar_lea.vmem %s3, 48
  %v627 = vld [vmem:[%s626] sm:$0xf]
  %v628 = vld [vmem:[%s626 + $0x4] sm:$0xf]
  %v629 = vld [vmem:[%s626 + $0x8] sm:$0xf]
  %v630 = vld [vmem:[%s626 + $0xc] sm:$0xf]
  %v635 = vunpack.c.l.b16 %v627
  %v636 = vunpack.c.l.b16 %v628
  %v637 = vunpack.c.l.b16 %v629
  %v638 = vunpack.c.l.b16 %v630
  %v639 = vpack.c.b16 %v636, %v635
  %v640 = vpack.c.b16 %v638, %v637
  %643 = vmatprep.subr.bf16.mxu0 0
  %644 = vmatpush1.bf16.msra.mxu0 %v413
  %645 = vmatprep.subr.bf16.mxu0 0
  %646 = vmatpush1.bf16.msra.mxu0 %v414
  %647 = vmatprep.subr.bf16.mxu0 0
  %648 = vmatpush1.bf16.msra.mxu0 %v415
  %649 = vmatprep.subr.bf16.mxu0 0
  %650 = vmatpush1.bf16.msra.mxu0 %v416
  %651 = vmatprep.subr.bf16.mxu0 0
  %652 = vmatpush1.bf16.msra.mxu0 %v417
  %653 = vmatprep.subr.bf16.mxu0 0
  %654 = vmatpush1.bf16.msra.mxu0 %v418
  %655 = vmatprep.subr.bf16.mxu0 0
  %656 = vmatpush1.bf16.msra.mxu0 %v419
  %657 = vmatprep.subr.bf16.mxu0 0
  %658 = vmatpush1.bf16.msra.mxu0 %v420
  %659 = vmatprep.subr.bf16.mxu0 0
  %660 = vmatpush1.bf16.msra.mxu0 0
  %661 = vmatprep.subr.bf16.mxu0 0
  %662 = vmatpush1.bf16.msra.mxu0 0
  %663 = vmatprep.subr.bf16.mxu0 0
  %664 = vmatpush1.bf16.msra.mxu0 0
  %665 = vmatprep.subr.bf16.mxu0 0
  %666 = vmatpush1.bf16.msra.mxu0 0
  %667 = vmatprep.subr.bf16.mxu0 0
  %668 = vmatpush1.bf16.msra.mxu0 0
  %669 = vmatprep.subr.bf16.mxu0 0
  %670 = vmatpush1.bf16.msra.mxu0 0
  %671 = vmatprep.subr.bf16.mxu0 0
  %672 = vmatpush1.bf16.msra.mxu0 0
  %673 = vmatprep.subr.bf16.mxu0 0
  %674 = vmatpush1.bf16.msra.mxu0 0
  %675 = vmatprep.mubr.bf16.mxu0 0
  %676 = vmatmul.mubr.bf16.gmra.mrb[0].mxu0 %v639
  %v677 = vpop.f32.mrb[0].mxu0
  %v678 = vadd.f32 0.0, %v677
  %v679 = vpop.f32.mrb[0].mxu0
  %v680 = vpop.f32.mrb[0].mxu0
  %v681 = vadd.f32 0.0, %v680
  %v682 = vpop.f32.mrb[0].mxu0
  %683 = vmatprep.mubr.bf16.mxu0 0
  %684 = vmatmul.mubr.bf16.gmra.mrb[0].mxu0 %v640
  %v685 = vpop.f32.mrb[0].mxu0
  %v686 = vadd.f32 0.0, %v685
  %v687 = vpop.f32.mrb[0].mxu0
  %v688 = vpop.f32.mrb[0].mxu0
  %v689 = vadd.f32 0.0, %v688
  %v690 = vpop.f32.mrb[0].mxu0
  %691 = vdwg.mxu0
  %v692 = vmax.f32 %v622, %v678
  %v693 = vmax.f32 %v623, %v681
  %v694 = vmax.f32 %v624, %v686
  %v695 = vmax.f32 %v625, %v689
  %s696 = scalar_lea.vmem %s3, 64
  %v697 = vld [vmem:[%s696] sm:$0xf]
  %v698 = vld [vmem:[%s696 + $0x4] sm:$0xf]
  %v699 = vld [vmem:[%s696 + $0x8] sm:$0xf]
  %v700 = vld [vmem:[%s696 + $0xc] sm:$0xf]
  %v705 = vunpack.c.l.b16 %v697
  %v706 = vunpack.c.l.b16 %v698
  %v707 = vunpack.c.l.b16 %v699
  %v708 = vunpack.c.l.b16 %v700
  %v709 = vpack.c.b16 %v706, %v705
  %v710 = vpack.c.b16 %v708, %v707
  %713 = vmatprep.subr.bf16.mxu0 0
  %714 = vmatpush1.bf16.msra.mxu0 %v413
  %715 = vmatprep.subr.bf16.mxu0 0
  %716 = vmatpush1.bf16.msra.mxu0 %v414
  %717 = vmatprep.subr.bf16.mxu0 0
  %718 = vmatpush1.bf16.msra.mxu0 %v415
  %719 = vmatprep.subr.bf16.mxu0 0
  %720 = vmatpush1.bf16.msra.mxu0 %v416
  %721 = vmatprep.subr.bf16.mxu0 0
  %722 = vmatpush1.bf16.msra.mxu0 %v417
  %723 = vmatprep.subr.bf16.mxu0 0
  %724 = vmatpush1.bf16.msra.mxu0 %v418
  %725 = vmatprep.subr.bf16.mxu0 0
  %726 = vmatpush1.bf16.msra.mxu0 %v419
  %727 = vmatprep.subr.bf16.mxu0 0
  %728 = vmatpush1.bf16.msra.mxu0 %v420
  %729 = vmatprep.subr.bf16.mxu0 0
  %730 = vmatpush1.bf16.msra.mxu0 0
  %731 = vmatprep.subr.bf16.mxu0 0
  %732 = vmatpush1.bf16.msra.mxu0 0
  %733 = vmatprep.subr.bf16.mxu0 0
  %734 = vmatpush1.bf16.msra.mxu0 0
  %735 = vmatprep.subr.bf16.mxu0 0
  %736 = vmatpush1.bf16.msra.mxu0 0
  %737 = vmatprep.subr.bf16.mxu0 0
  %738 = vmatpush1.bf16.msra.mxu0 0
  %739 = vmatprep.subr.bf16.mxu0 0
  %740 = vmatpush1.bf16.msra.mxu0 0
  %741 = vmatprep.subr.bf16.mxu0 0
  %742 = vmatpush1.bf16.msra.mxu0 0
  %743 = vmatprep.subr.bf16.mxu0 0
  %744 = vmatpush1.bf16.msra.mxu0 0
  %745 = vmatprep.mubr.bf16.mxu0 0
  %746 = vmatmul.mubr.bf16.gmra.mrb[0].mxu0 %v709
  %v747 = vpop.f32.mrb[0].mxu0
  %v748 = vadd.f32 0.0, %v747
  %v749 = vpop.f32.mrb[0].mxu0
  %v750 = vpop.f32.mrb[0].mxu0
  %v751 = vadd.f32 0.0, %v750
  %v752 = vpop.f32.mrb[0].mxu0
  %753 = vmatprep.mubr.bf16.mxu0 0
  %754 = vmatmul.mubr.bf16.gmra.mrb[0].mxu0 %v710
  %v755 = vpop.f32.mrb[0].mxu0
  %v756 = vadd.f32 0.0, %v755
  %v757 = vpop.f32.mrb[0].mxu0
  %v758 = vpop.f32.mrb[0].mxu0
  %v759 = vadd.f32 0.0, %v758
  %v760 = vpop.f32.mrb[0].mxu0
  %761 = vdwg.mxu0
  %v762 = vmax.f32 %v692, %v748
  %v763 = vmax.f32 %v693, %v751
  %v764 = vmax.f32 %v694, %v756
  %v765 = vmax.f32 %v695, %v759
  %s766 = scalar_lea.vmem %s3, 80
  %v767 = vld [vmem:[%s766] sm:$0xf]
  %v768 = vld [vmem:[%s766 + $0x4] sm:$0xf]
  %v769 = vld [vmem:[%s766 + $0x8] sm:$0xf]
  %v770 = vld [vmem:[%s766 + $0xc] sm:$0xf]
  %v775 = vunpack.c.l.b16 %v767
  %v776 = vunpack.c.l.b16 %v768
  %v777 = vunpack.c.l.b16 %v769
  %v778 = vunpack.c.l.b16 %v770
  %v779 = vpack.c.b16 %v776, %v775
  %v780 = vpack.c.b16 %v778, %v777
  %783 = vmatprep.subr.bf16.mxu0 0
  %784 = vmatpush1.bf16.msra.mxu0 %v413
  %785 = vmatprep.subr.bf16.mxu0 0
  %786 = vmatpush1.bf16.msra.mxu0 %v414
  %787 = vmatprep.subr.bf16.mxu0 0
  %788 = vmatpush1.bf16.msra.mxu0 %v415
  %789 = vmatprep.subr.bf16.mxu0 0
  %790 = vmatpush1.bf16.msra.mxu0 %v416
  %791 = vmatprep.subr.bf16.mxu0 0
  %792 = vmatpush1.bf16.msra.mxu0 %v417
  %793 = vmatprep.subr.bf16.mxu0 0
  %794 = vmatpush1.bf16.msra.mxu0 %v418
  %795 = vmatprep.subr.bf16.mxu0 0
  %796 = vmatpush1.bf16.msra.mxu0 %v419
  %797 = vmatprep.subr.bf16.mxu0 0
  %798 = vmatpush1.bf16.msra.mxu0 %v420
  %799 = vmatprep.subr.bf16.mxu0 0
  %800 = vmatpush1.bf16.msra.mxu0 0
  %801 = vmatprep.subr.bf16.mxu0 0
  %802 = vmatpush1.bf16.msra.mxu0 0
  %803 = vmatprep.subr.bf16.mxu0 0
  %804 = vmatpush1.bf16.msra.mxu0 0
  %805 = vmatprep.subr.bf16.mxu0 0
  %806 = vmatpush1.bf16.msra.mxu0 0
  %807 = vmatprep.subr.bf16.mxu0 0
  %808 = vmatpush1.bf16.msra.mxu0 0
  %809 = vmatprep.subr.bf16.mxu0 0
  %810 = vmatpush1.bf16.msra.mxu0 0
  %811 = vmatprep.subr.bf16.mxu0 0
  %812 = vmatpush1.bf16.msra.mxu0 0
  %813 = vmatprep.subr.bf16.mxu0 0
  %814 = vmatpush1.bf16.msra.mxu0 0
  %815 = vmatprep.mubr.bf16.mxu0 0
  %816 = vmatmul.mubr.bf16.gmra.mrb[0].mxu0 %v779
  %v817 = vpop.f32.mrb[0].mxu0
  %v818 = vadd.f32 0.0, %v817
  %v819 = vpop.f32.mrb[0].mxu0
  %v820 = vpop.f32.mrb[0].mxu0
  %v821 = vadd.f32 0.0, %v820
  %v822 = vpop.f32.mrb[0].mxu0
  %823 = vmatprep.mubr.bf16.mxu0 0
  %824 = vmatmul.mubr.bf16.gmra.mrb[0].mxu0 %v780
  %v825 = vpop.f32.mrb[0].mxu0
  %v826 = vadd.f32 0.0, %v825
  %v827 = vpop.f32.mrb[0].mxu0
  %v828 = vpop.f32.mrb[0].mxu0
  %v829 = vadd.f32 0.0, %v828
  %v830 = vpop.f32.mrb[0].mxu0
  %831 = vdwg.mxu0
  %v832 = vmax.f32 %v762, %v818
  %v833 = vmax.f32 %v763, %v821
  %v834 = vmax.f32 %v764, %v826
  %v835 = vmax.f32 %v765, %v829
  %s836 = scalar_lea.vmem %s3, 96
  %v837 = vld [vmem:[%s836] sm:$0xf]
  %v838 = vld [vmem:[%s836 + $0x4] sm:$0xf]
  %v839 = vld [vmem:[%s836 + $0x8] sm:$0xf]
  %v840 = vld [vmem:[%s836 + $0xc] sm:$0xf]
  %v845 = vunpack.c.l.b16 %v837
  %v846 = vunpack.c.l.b16 %v838
  %v847 = vunpack.c.l.b16 %v839
  %v848 = vunpack.c.l.b16 %v840
  %v849 = vpack.c.b16 %v846, %v845
  %v850 = vpack.c.b16 %v848, %v847
  %853 = vmatprep.subr.bf16.mxu0 0
  %854 = vmatpush1.bf16.msra.mxu0 %v413
  %855 = vmatprep.subr.bf16.mxu0 0
  %856 = vmatpush1.bf16.msra.mxu0 %v414
  %857 = vmatprep.subr.bf16.mxu0 0
  %858 = vmatpush1.bf16.msra.mxu0 %v415
  %859 = vmatprep.subr.bf16.mxu0 0
  %860 = vmatpush1.bf16.msra.mxu0 %v416
  %861 = vmatprep.subr.bf16.mxu0 0
  %862 = vmatpush1.bf16.msra.mxu0 %v417
  %863 = vmatprep.subr.bf16.mxu0 0
  %864 = vmatpush1.bf16.msra.mxu0 %v418
  %865 = vmatprep.subr.bf16.mxu0 0
  %866 = vmatpush1.bf16.msra.mxu0 %v419
  %867 = vmatprep.subr.bf16.mxu0 0
  %868 = vmatpush1.bf16.msra.mxu0 %v420
  %869 = vmatprep.subr.bf16.mxu0 0
  %870 = vmatpush1.bf16.msra.mxu0 0
  %871 = vmatprep.subr.bf16.mxu0 0
  %872 = vmatpush1.bf16.msra.mxu0 0
  %873 = vmatprep.subr.bf16.mxu0 0
  %874 = vmatpush1.bf16.msra.mxu0 0
  %875 = vmatprep.subr.bf16.mxu0 0
  %876 = vmatpush1.bf16.msra.mxu0 0
  %877 = vmatprep.subr.bf16.mxu0 0
  %878 = vmatpush1.bf16.msra.mxu0 0
  %879 = vmatprep.subr.bf16.mxu0 0
  %880 = vmatpush1.bf16.msra.mxu0 0
  %881 = vmatprep.subr.bf16.mxu0 0
  %882 = vmatpush1.bf16.msra.mxu0 0
  %883 = vmatprep.subr.bf16.mxu0 0
  %884 = vmatpush1.bf16.msra.mxu0 0
  %885 = vmatprep.mubr.bf16.mxu0 0
  %886 = vmatmul.mubr.bf16.gmra.mrb[0].mxu0 %v849
  %v887 = vpop.f32.mrb[0].mxu0
  %v888 = vadd.f32 0.0, %v887
  %v889 = vpop.f32.mrb[0].mxu0
  %v890 = vpop.f32.mrb[0].mxu0
  %v891 = vadd.f32 0.0, %v890
  %v892 = vpop.f32.mrb[0].mxu0
  %893 = vmatprep.mubr.bf16.mxu0 0
  %894 = vmatmul.mubr.bf16.gmra.mrb[0].mxu0 %v850
  %v895 = vpop.f32.mrb[0].mxu0
  %v896 = vadd.f32 0.0, %v895
  %v897 = vpop.f32.mrb[0].mxu0
  %v898 = vpop.f32.mrb[0].mxu0
  %v899 = vadd.f32 0.0, %v898
  %v900 = vpop.f32.mrb[0].mxu0
  %901 = vdwg.mxu0
  %v902 = vmax.f32 %v832, %v888
  %v903 = vmax.f32 %v833, %v891
  %v904 = vmax.f32 %v834, %v896
  %v905 = vmax.f32 %v835, %v899
  %s906 = scalar_lea.vmem %s3, 112
  %v907 = vld [vmem:[%s906] sm:$0xf]
  %v908 = vld [vmem:[%s906 + $0x4] sm:$0xf]
  %v909 = vld [vmem:[%s906 + $0x8] sm:$0xf]
  %v910 = vld [vmem:[%s906 + $0xc] sm:$0xf]
  %v915 = vunpack.c.l.b16 %v907
  %v916 = vunpack.c.l.b16 %v908
  %v917 = vunpack.c.l.b16 %v909
  %v918 = vunpack.c.l.b16 %v910
  %v919 = vpack.c.b16 %v916, %v915
  %v920 = vpack.c.b16 %v918, %v917
  %923 = vmatprep.subr.bf16.mxu0 0
  %924 = vmatpush1.bf16.msra.mxu0 %v413
  %925 = vmatprep.subr.bf16.mxu0 0
  %926 = vmatpush1.bf16.msra.mxu0 %v414
  %927 = vmatprep.subr.bf16.mxu0 0
  %928 = vmatpush1.bf16.msra.mxu0 %v415
  %929 = vmatprep.subr.bf16.mxu0 0
  %930 = vmatpush1.bf16.msra.mxu0 %v416
  %931 = vmatprep.subr.bf16.mxu0 0
  %932 = vmatpush1.bf16.msra.mxu0 %v417
  %933 = vmatprep.subr.bf16.mxu0 0
  %934 = vmatpush1.bf16.msra.mxu0 %v418
  %935 = vmatprep.subr.bf16.mxu0 0
  %936 = vmatpush1.bf16.msra.mxu0 %v419
  %937 = vmatprep.subr.bf16.mxu0 0
  %938 = vmatpush1.bf16.msra.mxu0 %v420
  %939 = vmatprep.subr.bf16.mxu0 0
  %940 = vmatpush1.bf16.msra.mxu0 0
  %941 = vmatprep.subr.bf16.mxu0 0
  %942 = vmatpush1.bf16.msra.mxu0 0
  %943 = vmatprep.subr.bf16.mxu0 0
  %944 = vmatpush1.bf16.msra.mxu0 0
  %945 = vmatprep.subr.bf16.mxu0 0
  %946 = vmatpush1.bf16.msra.mxu0 0
  %947 = vmatprep.subr.bf16.mxu0 0
  %948 = vmatpush1.bf16.msra.mxu0 0
  %949 = vmatprep.subr.bf16.mxu0 0
  %950 = vmatpush1.bf16.msra.mxu0 0
  %951 = vmatprep.subr.bf16.mxu0 0
  %952 = vmatpush1.bf16.msra.mxu0 0
  %953 = vmatprep.subr.bf16.mxu0 0
  %954 = vmatpush1.bf16.msra.mxu0 0
  %955 = vmatprep.mubr.bf16.mxu0 0
  %956 = vmatmul.mubr.bf16.gmra.mrb[0].mxu0 %v919
  %v957 = vpop.f32.mrb[0].mxu0
  %v958 = vadd.f32 0.0, %v957
  %v959 = vpop.f32.mrb[0].mxu0
  %v960 = vpop.f32.mrb[0].mxu0
  %v961 = vadd.f32 0.0, %v960
  %v962 = vpop.f32.mrb[0].mxu0
  %963 = vmatprep.mubr.bf16.mxu0 0
  %964 = vmatmul.mubr.bf16.gmra.mrb[0].mxu0 %v920
  %v965 = vpop.f32.mrb[0].mxu0
  %v966 = vadd.f32 0.0, %v965
  %v967 = vpop.f32.mrb[0].mxu0
  %v968 = vpop.f32.mrb[0].mxu0
  %v969 = vadd.f32 0.0, %v968
  %v970 = vpop.f32.mrb[0].mxu0
  %971 = vdwg.mxu0
  %v972 = vmax.f32 %v902, %v958
  %v973 = vmax.f32 %v903, %v961
  %v974 = vmax.f32 %v904, %v966
  %v975 = vmax.f32 %v905, %v969
  %s976 = scalar_lea.vmem %s3, 128
  %v977 = vld [vmem:[%s976] sm:$0xf]
  %v978 = vld [vmem:[%s976 + $0x4] sm:$0xf]
  %v979 = vld [vmem:[%s976 + $0x8] sm:$0xf]
  %v980 = vld [vmem:[%s976 + $0xc] sm:$0xf]
  %v985 = vunpack.c.l.b16 %v977
  %v986 = vunpack.c.l.b16 %v978
  %v987 = vunpack.c.l.b16 %v979
  %v988 = vunpack.c.l.b16 %v980
  %v989 = vpack.c.b16 %v986, %v985
  %v990 = vpack.c.b16 %v988, %v987
  %993 = vmatprep.subr.bf16.mxu0 0
  %994 = vmatpush1.bf16.msra.mxu0 %v413
  %995 = vmatprep.subr.bf16.mxu0 0
  %996 = vmatpush1.bf16.msra.mxu0 %v414
  %997 = vmatprep.subr.bf16.mxu0 0
  %998 = vmatpush1.bf16.msra.mxu0 %v415
  %999 = vmatprep.subr.bf16.mxu0 0
  %1000 = vmatpush1.bf16.msra.mxu0 %v416
  %1001 = vmatprep.subr.bf16.mxu0 0
  %1002 = vmatpush1.bf16.msra.mxu0 %v417
  %1003 = vmatprep.subr.bf16.mxu0 0
  %1004 = vmatpush1.bf16.msra.mxu0 %v418
  %1005 = vmatprep.subr.bf16.mxu0 0
  %1006 = vmatpush1.bf16.msra.mxu0 %v419
  %1007 = vmatprep.subr.bf16.mxu0 0
  %1008 = vmatpush1.bf16.msra.mxu0 %v420
  %1009 = vmatprep.subr.bf16.mxu0 0
  %1010 = vmatpush1.bf16.msra.mxu0 0
  %1011 = vmatprep.subr.bf16.mxu0 0
  %1012 = vmatpush1.bf16.msra.mxu0 0
  %1013 = vmatprep.subr.bf16.mxu0 0
  %1014 = vmatpush1.bf16.msra.mxu0 0
  %1015 = vmatprep.subr.bf16.mxu0 0
  %1016 = vmatpush1.bf16.msra.mxu0 0
  %1017 = vmatprep.subr.bf16.mxu0 0
  %1018 = vmatpush1.bf16.msra.mxu0 0
  %1019 = vmatprep.subr.bf16.mxu0 0
  %1020 = vmatpush1.bf16.msra.mxu0 0
  %1021 = vmatprep.subr.bf16.mxu0 0
  %1022 = vmatpush1.bf16.msra.mxu0 0
  %1023 = vmatprep.subr.bf16.mxu0 0
  %1024 = vmatpush1.bf16.msra.mxu0 0
  %1025 = vmatprep.mubr.bf16.mxu0 0
  %1026 = vmatmul.mubr.bf16.gmra.mrb[0].mxu0 %v989
  %v1027 = vpop.f32.mrb[0].mxu0
  %v1028 = vadd.f32 0.0, %v1027
  %v1029 = vpop.f32.mrb[0].mxu0
  %v1030 = vpop.f32.mrb[0].mxu0
  %v1031 = vadd.f32 0.0, %v1030
  %v1032 = vpop.f32.mrb[0].mxu0
  %1033 = vmatprep.mubr.bf16.mxu0 0
  %1034 = vmatmul.mubr.bf16.gmra.mrb[0].mxu0 %v990
  %v1035 = vpop.f32.mrb[0].mxu0
  %v1036 = vadd.f32 0.0, %v1035
  %v1037 = vpop.f32.mrb[0].mxu0
  %v1038 = vpop.f32.mrb[0].mxu0
  %v1039 = vadd.f32 0.0, %v1038
  %v1040 = vpop.f32.mrb[0].mxu0
  %1041 = vdwg.mxu0
  %v1042 = vmax.f32 %v972, %v1028
  %v1043 = vmax.f32 %v973, %v1031
  %v1044 = vmax.f32 %v974, %v1036
  %v1045 = vmax.f32 %v975, %v1039
  %v1046 = vpack.c.bf16 %v1043, %v1042
  %v1047 = vpack.c.bf16 %v1045, %v1044
  %v1048 = vld [vmem:[%s4] sm:$0xf]
  %v1049 = vld [vmem:[%s4 + $0x4] sm:$0xf]
  %v1050 = vld [vmem:[%s4 + $0x8] sm:$0xf]
  %v1051 = vld [vmem:[%s4 + $0xc] sm:$0xf]
  %v1056 = vunpack.c.l.b16 %v1048
  %v1057 = vunpack.c.l.b16 %v1049
  %v1058 = vunpack.c.l.b16 %v1050
  %v1059 = vunpack.c.l.b16 %v1051
  %v1060 = vpack.c.b16 %v1057, %v1056
  %v1061 = vpack.c.b16 %v1059, %v1058
  %vm1062 = vcmask 261120
  %v1064 = vsel %vm1062, %v1060, 0
  %v1067 = vsel %vm1062, %v1061, 0
  %1069 = vmatprep.subr.bf16.mxu0 0
  %1070 = vmatpush1.bf16.msra.mxu0 %v1046
  %1071 = vmatprep.subr.bf16.mxu0 0
  %1072 = vmatpush1.bf16.msra.mxu0 %v1047
  %1073 = vmatprep.subr.bf16.mxu0 0
  %1074 = vmatpush1.bf16.msra.mxu0 0
  %1075 = vmatprep.subr.bf16.mxu0 0
  %1076 = vmatpush1.bf16.msra.mxu0 0
  %1077 = vmatprep.subr.bf16.mxu0 0
  %1078 = vmatpush1.bf16.msra.mxu0 0
  %1079 = vmatprep.subr.bf16.mxu0 0
  %1080 = vmatpush1.bf16.msra.mxu0 0
  %1081 = vmatprep.subr.bf16.mxu0 0
  %1082 = vmatpush1.bf16.msra.mxu0 0
  %1083 = vmatprep.subr.bf16.mxu0 0
  %1084 = vmatpush1.bf16.msra.mxu0 0
  %1085 = vmatprep.subr.bf16.mxu0 0
  %1086 = vmatpush1.bf16.msra.mxu0 0
  %1087 = vmatprep.subr.bf16.mxu0 0
  %1088 = vmatpush1.bf16.msra.mxu0 0
  %1089 = vmatprep.subr.bf16.mxu0 0
  %1090 = vmatpush1.bf16.msra.mxu0 0
  %1091 = vmatprep.subr.bf16.mxu0 0
  %1092 = vmatpush1.bf16.msra.mxu0 0
  %1093 = vmatprep.subr.bf16.mxu0 0
  %1094 = vmatpush1.bf16.msra.mxu0 0
  %1095 = vmatprep.subr.bf16.mxu0 0
  %1096 = vmatpush1.bf16.msra.mxu0 0
  %1097 = vmatprep.subr.bf16.mxu0 0
  %1098 = vmatpush1.bf16.msra.mxu0 0
  %1099 = vmatprep.subr.bf16.mxu0 0
  %1100 = vmatpush1.bf16.msra.mxu0 0
  %1101 = vmatprep.mubr.bf16.mxu0 0
  %1102 = vmatmul.mubr.bf16.gmra.mrb[0].mxu0 %v1064
  %v1103 = vpop.f32.mrb[0].mxu0
  %v1104 = vadd.f32 0.0, %v1103
  %v1105 = vpop.f32.mrb[0].mxu0
  %v1106 = vpop.f32.mrb[0].mxu0
  %v1107 = vadd.f32 0.0, %v1106
  %v1108 = vpop.f32.mrb[0].mxu0
  %1109 = vmatprep.mubr.bf16.mxu0 0
  %1110 = vmatmul.mubr.bf16.gmra.mrb[0].mxu0 %v1067
  %v1111 = vpop.f32.mrb[0].mxu0
  %v1112 = vadd.f32 0.0, %v1111
  %v1113 = vpop.f32.mrb[0].mxu0
  %v1114 = vpop.f32.mrb[0].mxu0
  %v1115 = vadd.f32 0.0, %v1114
  %v1116 = vpop.f32.mrb[0].mxu0
  %1117 = vdwg.mxu0
  %v1118 = vpack.c.bf16 %v1107, %v1104
  %v1119 = vpack.c.bf16 %v1115, %v1112
  %vm1120 = vcmask 64512
  %1121 = vst.msk [vmem:[#allocation2] sm:$0xff] %vm1120, %v1118
  %1122 = vst.msk [vmem:[#allocation2 + $0x10] sm:$0xff] %vm1120, %v1119
  %s1123 = scalar_lea.vmem %s4, 16
  %v1124 = vld [vmem:[%s1123] sm:$0xf]
  %v1125 = vld [vmem:[%s1123 + $0x4] sm:$0xf]
  %v1126 = vld [vmem:[%s1123 + $0x8] sm:$0xf]
  %v1127 = vld [vmem:[%s1123 + $0xc] sm:$0xf]
  %v1132 = vunpack.c.l.b16 %v1124
  %v1133 = vunpack.c.l.b16 %v1125
  %v1134 = vunpack.c.l.b16 %v1126
  %v1135 = vunpack.c.l.b16 %v1127
  %v1136 = vpack.c.b16 %v1133, %v1132
  %v1137 = vpack.c.b16 %v1135, %v1134
  %v1139 = vsel %vm1062, %v1136, 0
  %v1142 = vsel %vm1062, %v1137, 0
  %1144 = vmatprep.subr.bf16.mxu0 0
  %1145 = vmatpush1.bf16.msra.mxu0 %v1046
  %1146 = vmatprep.subr.bf16.mxu0 0
  %1147 = vmatpush1.bf16.msra.mxu0 %v1047
  %1148 = vmatprep.subr.bf16.mxu0 0
  %1149 = vmatpush1.bf16.msra.mxu0 0
  %1150 = vmatprep.subr.bf16.mxu0 0
  %1151 = vmatpush1.bf16.msra.mxu0 0
  %1152 = vmatprep.subr.bf16.mxu0 0
  %1153 = vmatpush1.bf16.msra.mxu0 0
  %1154 = vmatprep.subr.bf16.mxu0 0
  %1155 = vmatpush1.bf16.msra.mxu0 0
  %1156 = vmatprep.subr.bf16.mxu0 0
  %1157 = vmatpush1.bf16.msra.mxu0 0
  %1158 = vmatprep.subr.bf16.mxu0 0
  %1159 = vmatpush1.bf16.msra.mxu0 0
  %1160 = vmatprep.subr.bf16.mxu0 0
  %1161 = vmatpush1.bf16.msra.mxu0 0
  %1162 = vmatprep.subr.bf16.mxu0 0
  %1163 = vmatpush1.bf16.msra.mxu0 0
  %1164 = vmatprep.subr.bf16.mxu0 0
  %1165 = vmatpush1.bf16.msra.mxu0 0
  %1166 = vmatprep.subr.bf16.mxu0 0
  %1167 = vmatpush1.bf16.msra.mxu0 0
  %1168 = vmatprep.subr.bf16.mxu0 0
  %1169 = vmatpush1.bf16.msra.mxu0 0
  %1170 = vmatprep.subr.bf16.mxu0 0
  %1171 = vmatpush1.bf16.msra.mxu0 0
  %1172 = vmatprep.subr.bf16.mxu0 0
  %1173 = vmatpush1.bf16.msra.mxu0 0
  %1174 = vmatprep.subr.bf16.mxu0 0
  %1175 = vmatpush1.bf16.msra.mxu0 0
  %1176 = vmatprep.mubr.bf16.mxu0 0
  %1177 = vmatmul.mubr.bf16.gmra.mrb[0].mxu0 %v1139
  %v1178 = vpop.f32.mrb[0].mxu0
  %v1179 = vadd.f32 0.0, %v1178
  %v1180 = vpop.f32.mrb[0].mxu0
  %v1181 = vpop.f32.mrb[0].mxu0
  %v1182 = vadd.f32 0.0, %v1181
  %v1183 = vpop.f32.mrb[0].mxu0
  %1184 = vmatprep.mubr.bf16.mxu0 0
  %1185 = vmatmul.mubr.bf16.gmra.mrb[0].mxu0 %v1142
  %v1186 = vpop.f32.mrb[0].mxu0
  %v1187 = vadd.f32 0.0, %v1186
  %v1188 = vpop.f32.mrb[0].mxu0
  %v1189 = vpop.f32.mrb[0].mxu0
  %v1190 = vadd.f32 0.0, %v1189
  %v1191 = vpop.f32.mrb[0].mxu0
  %1192 = vdwg.mxu0
  %v1193 = vpack.c.bf16 %v1182, %v1179
  %v1194 = vpack.c.bf16 %v1190, %v1187
  %1197 = vrot.lane.b32.xlu0 %v1193, 8
  %v1198 = vpop.permute.xlu0 %1197
  %1199 = vrot.lane.b32.xlu0 %v1194, 8
  %v1200 = vpop.permute.xlu0 %1199
  %vm1203 = vcmask 130112
  %1204 = vst.msk [vmem:[#allocation2] sm:$0xff] %vm1203, %v1198
  %1205 = vst.msk [vmem:[#allocation2 + $0x10] sm:$0xff] %vm1203, %v1200
  %s1206 = scalar_lea.vmem %s4, 32
  %v1207 = vld [vmem:[%s1206] sm:$0xf]
  %v1208 = vld [vmem:[%s1206 + $0x4] sm:$0xf]
  %v1209 = vld [vmem:[%s1206 + $0x8] sm:$0xf]
  %v1210 = vld [vmem:[%s1206 + $0xc] sm:$0xf]
  %v1215 = vunpack.c.l.b16 %v1207
  %v1216 = vunpack.c.l.b16 %v1208
  %v1217 = vunpack.c.l.b16 %v1209
  %v1218 = vunpack.c.l.b16 %v1210
  %v1219 = vpack.c.b16 %v1216, %v1215
  %v1220 = vpack.c.b16 %v1218, %v1217
  %v1222 = vsel %vm1062, %v1219, 0
  %v1225 = vsel %vm1062, %v1220, 0
  %1227 = vmatprep.subr.bf16.mxu0 0
  %1228 = vmatpush1.bf16.msra.mxu0 %v1046
  %1229 = vmatprep.subr.bf16.mxu0 0
  %1230 = vmatpush1.bf16.msra.mxu0 %v1047
  %1231 = vmatprep.subr.bf16.mxu0 0
  %1232 = vmatpush1.bf16.msra.mxu0 0
  %1233 = vmatprep.subr.bf16.mxu0 0
  %1234 = vmatpush1.bf16.msra.mxu0 0
  %1235 = vmatprep.subr.bf16.mxu0 0
  %1236 = vmatpush1.bf16.msra.mxu0 0
  %1237 = vmatprep.subr.bf16.mxu0 0
  %1238 = vmatpush1.bf16.msra.mxu0 0
  %1239 = vmatprep.subr.bf16.mxu0 0
  %1240 = vmatpush1.bf16.msra.mxu0 0
  %1241 = vmatprep.subr.bf16.mxu0 0
  %1242 = vmatpush1.bf16.msra.mxu0 0
  %1243 = vmatprep.subr.bf16.mxu0 0
  %1244 = vmatpush1.bf16.msra.mxu0 0
  %1245 = vmatprep.subr.bf16.mxu0 0
  %1246 = vmatpush1.bf16.msra.mxu0 0
  %1247 = vmatprep.subr.bf16.mxu0 0
  %1248 = vmatpush1.bf16.msra.mxu0 0
  %1249 = vmatprep.subr.bf16.mxu0 0
  %1250 = vmatpush1.bf16.msra.mxu0 0
  %1251 = vmatprep.subr.bf16.mxu0 0
  %1252 = vmatpush1.bf16.msra.mxu0 0
  %1253 = vmatprep.subr.bf16.mxu0 0
  %1254 = vmatpush1.bf16.msra.mxu0 0
  %1255 = vmatprep.subr.bf16.mxu0 0
  %1256 = vmatpush1.bf16.msra.mxu0 0
  %1257 = vmatprep.subr.bf16.mxu0 0
  %1258 = vmatpush1.bf16.msra.mxu0 0
  %1259 = vmatprep.mubr.bf16.mxu0 0
  %1260 = vmatmul.mubr.bf16.gmra.mrb[0].mxu0 %v1222
  %v1261 = vpop.f32.mrb[0].mxu0
  %v1262 = vadd.f32 0.0, %v1261
  %v1263 = vpop.f32.mrb[0].mxu0
  %v1264 = vpop.f32.mrb[0].mxu0
  %v1265 = vadd.f32 0.0, %v1264
  %v1266 = vpop.f32.mrb[0].mxu0
  %1267 = vmatprep.mubr.bf16.mxu0 0
  %1268 = vmatmul.mubr.bf16.gmra.mrb[0].mxu0 %v1225
  %v1269 = vpop.f32.mrb[0].mxu0
  %v1270 = vadd.f32 0.0, %v1269
  %v1271 = vpop.f32.mrb[0].mxu0
  %v1272 = vpop.f32.mrb[0].mxu0
  %v1273 = vadd.f32 0.0, %v1272
  %v1274 = vpop.f32.mrb[0].mxu0
  %1275 = vdwg.mxu0
  %v1276 = vpack.c.bf16 %v1265, %v1262
  %v1277 = vpack.c.bf16 %v1273, %v1270
  %1280 = vrot.lane.b32.xlu0 %v1276, 16
  %v1281 = vpop.permute.xlu0 %1280
  %1282 = vrot.lane.b32.xlu0 %v1277, 16
  %v1283 = vpop.permute.xlu0 %1282
  %vm1286 = vcmask 195712
  %1287 = vst.msk [vmem:[#allocation2] sm:$0xff] %vm1286, %v1281
  %1288 = vst.msk [vmem:[#allocation2 + $0x10] sm:$0xff] %vm1286, %v1283
  %s1289 = scalar_lea.vmem %s4, 48
  %v1290 = vld [vmem:[%s1289] sm:$0xf]
  %v1291 = vld [vmem:[%s1289 + $0x4] sm:$0xf]
  %v1292 = vld [vmem:[%s1289 + $0x8] sm:$0xf]
  %v1293 = vld [vmem:[%s1289 + $0xc] sm:$0xf]
  %v1298 = vunpack.c.l.b16 %v1290
  %v1299 = vunpack.c.l.b16 %v1291
  %v1300 = vunpack.c.l.b16 %v1292
  %v1301 = vunpack.c.l.b16 %v1293
  %v1302 = vpack.c.b16 %v1299, %v1298
  %v1303 = vpack.c.b16 %v1301, %v1300
  %v1305 = vsel %vm1062, %v1302, 0
  %v1308 = vsel %vm1062, %v1303, 0
  %1310 = vmatprep.subr.bf16.mxu0 0
  %1311 = vmatpush1.bf16.msra.mxu0 %v1046
  %1312 = vmatprep.subr.bf16.mxu0 0
  %1313 = vmatpush1.bf16.msra.mxu0 %v1047
  %1314 = vmatprep.subr.bf16.mxu0 0
  %1315 = vmatpush1.bf16.msra.mxu0 0
  %1316 = vmatprep.subr.bf16.mxu0 0
  %1317 = vmatpush1.bf16.msra.mxu0 0
  %1318 = vmatprep.subr.bf16.mxu0 0
  %1319 = vmatpush1.bf16.msra.mxu0 0
  %1320 = vmatprep.subr.bf16.mxu0 0
  %1321 = vmatpush1.bf16.msra.mxu0 0
  %1322 = vmatprep.subr.bf16.mxu0 0
  %1323 = vmatpush1.bf16.msra.mxu0 0
  %1324 = vmatprep.subr.bf16.mxu0 0
  %1325 = vmatpush1.bf16.msra.mxu0 0
  %1326 = vmatprep.subr.bf16.mxu0 0
  %1327 = vmatpush1.bf16.msra.mxu0 0
  %1328 = vmatprep.subr.bf16.mxu0 0
  %1329 = vmatpush1.bf16.msra.mxu0 0
  %1330 = vmatprep.subr.bf16.mxu0 0
  %1331 = vmatpush1.bf16.msra.mxu0 0
  %1332 = vmatprep.subr.bf16.mxu0 0
  %1333 = vmatpush1.bf16.msra.mxu0 0
  %1334 = vmatprep.subr.bf16.mxu0 0
  %1335 = vmatpush1.bf16.msra.mxu0 0
  %1336 = vmatprep.subr.bf16.mxu0 0
  %1337 = vmatpush1.bf16.msra.mxu0 0
  %1338 = vmatprep.subr.bf16.mxu0 0
  %1339 = vmatpush1.bf16.msra.mxu0 0
  %1340 = vmatprep.subr.bf16.mxu0 0
  %1341 = vmatpush1.bf16.msra.mxu0 0
  %1342 = vmatprep.mubr.bf16.mxu0 0
  %1343 = vmatmul.mubr.bf16.gmra.mrb[0].mxu0 %v1305
  %v1344 = vpop.f32.mrb[0].mxu0
  %v1345 = vadd.f32 0.0, %v1344
  %v1346 = vpop.f32.mrb[0].mxu0
  %v1347 = vpop.f32.mrb[0].mxu0
  %v1348 = vadd.f32 0.0, %v1347
  %v1349 = vpop.f32.mrb[0].mxu0
  %1350 = vmatprep.mubr.bf16.mxu0 0
  %1351 = vmatmul.mubr.bf16.gmra.mrb[0].mxu0 %v1308
  %v1352 = vpop.f32.mrb[0].mxu0
  %v1353 = vadd.f32 0.0, %v1352
  %v1354 = vpop.f32.mrb[0].mxu0
  %v1355 = vpop.f32.mrb[0].mxu0
  %v1356 = vadd.f32 0.0, %v1355
  %v1357 = vpop.f32.mrb[0].mxu0
  %1358 = vdwg.mxu0
  %v1359 = vpack.c.bf16 %v1348, %v1345
  %v1360 = vpack.c.bf16 %v1356, %v1353
  %1363 = vrot.lane.b32.xlu0 %v1359, 24
  %v1364 = vpop.permute.xlu0 %1363
  %1365 = vrot.lane.b32.xlu0 %v1360, 24
  %v1366 = vpop.permute.xlu0 %1365
  %vm1369 = vcmask 261312
  %1370 = vst.msk [vmem:[#allocation2] sm:$0xff] %vm1369, %v1364
  %1371 = vst.msk [vmem:[#allocation2 + $0x10] sm:$0xff] %vm1369, %v1366
  %s1372 = scalar_lea.vmem %s4, 64
  %v1373 = vld [vmem:[%s1372] sm:$0xf]
  %v1374 = vld [vmem:[%s1372 + $0x4] sm:$0xf]
  %v1375 = vld [vmem:[%s1372 + $0x8] sm:$0xf]
  %v1376 = vld [vmem:[%s1372 + $0xc] sm:$0xf]
  %v1381 = vunpack.c.l.b16 %v1373
  %v1382 = vunpack.c.l.b16 %v1374
  %v1383 = vunpack.c.l.b16 %v1375
  %v1384 = vunpack.c.l.b16 %v1376
  %v1385 = vpack.c.b16 %v1382, %v1381
  %v1386 = vpack.c.b16 %v1384, %v1383
  %v1388 = vsel %vm1062, %v1385, 0
  %v1391 = vsel %vm1062, %v1386, 0
  %1393 = vmatprep.subr.bf16.mxu0 0
  %1394 = vmatpush1.bf16.msra.mxu0 %v1046
  %1395 = vmatprep.subr.bf16.mxu0 0
  %1396 = vmatpush1.bf16.msra.mxu0 %v1047
  %1397 = vmatprep.subr.bf16.mxu0 0
  %1398 = vmatpush1.bf16.msra.mxu0 0
  %1399 = vmatprep.subr.bf16.mxu0 0
  %1400 = vmatpush1.bf16.msra.mxu0 0
  %1401 = vmatprep.subr.bf16.mxu0 0
  %1402 = vmatpush1.bf16.msra.mxu0 0
  %1403 = vmatprep.subr.bf16.mxu0 0
  %1404 = vmatpush1.bf16.msra.mxu0 0
  %1405 = vmatprep.subr.bf16.mxu0 0
  %1406 = vmatpush1.bf16.msra.mxu0 0
  %1407 = vmatprep.subr.bf16.mxu0 0
  %1408 = vmatpush1.bf16.msra.mxu0 0
  %1409 = vmatprep.subr.bf16.mxu0 0
  %1410 = vmatpush1.bf16.msra.mxu0 0
  %1411 = vmatprep.subr.bf16.mxu0 0
  %1412 = vmatpush1.bf16.msra.mxu0 0
  %1413 = vmatprep.subr.bf16.mxu0 0
  %1414 = vmatpush1.bf16.msra.mxu0 0
  %1415 = vmatprep.subr.bf16.mxu0 0
  %1416 = vmatpush1.bf16.msra.mxu0 0
  %1417 = vmatprep.subr.bf16.mxu0 0
  %1418 = vmatpush1.bf16.msra.mxu0 0
  %1419 = vmatprep.subr.bf16.mxu0 0
  %1420 = vmatpush1.bf16.msra.mxu0 0
  %1421 = vmatprep.subr.bf16.mxu0 0
  %1422 = vmatpush1.bf16.msra.mxu0 0
  %1423 = vmatprep.subr.bf16.mxu0 0
  %1424 = vmatpush1.bf16.msra.mxu0 0
  %1425 = vmatprep.mubr.bf16.mxu0 0
  %1426 = vmatmul.mubr.bf16.gmra.mrb[0].mxu0 %v1388
  %v1427 = vpop.f32.mrb[0].mxu0
  %v1428 = vadd.f32 0.0, %v1427
  %v1429 = vpop.f32.mrb[0].mxu0
  %v1430 = vpop.f32.mrb[0].mxu0
  %v1431 = vadd.f32 0.0, %v1430
  %v1432 = vpop.f32.mrb[0].mxu0
  %1433 = vmatprep.mubr.bf16.mxu0 0
  %1434 = vmatmul.mubr.bf16.gmra.mrb[0].mxu0 %v1391
  %v1435 = vpop.f32.mrb[0].mxu0
  %v1436 = vadd.f32 0.0, %v1435
  %v1437 = vpop.f32.mrb[0].mxu0
  %v1438 = vpop.f32.mrb[0].mxu0
  %v1439 = vadd.f32 0.0, %v1438
  %v1440 = vpop.f32.mrb[0].mxu0
  %1441 = vdwg.mxu0
  %v1442 = vpack.c.bf16 %v1431, %v1428
  %v1443 = vpack.c.bf16 %v1439, %v1436
  %1446 = vrot.lane.b32.xlu0 %v1442, 32
  %v1447 = vpop.permute.xlu0 %1446
  %1448 = vrot.lane.b32.xlu0 %v1443, 32
  %v1449 = vpop.permute.xlu0 %1448
  %vm1452 = vcmask 326912
  %1453 = vst.msk [vmem:[#allocation2] sm:$0xff] %vm1452, %v1447
  %1454 = vst.msk [vmem:[#allocation2 + $0x10] sm:$0xff] %vm1452, %v1449
  %s1455 = scalar_lea.vmem %s4, 80
  %v1456 = vld [vmem:[%s1455] sm:$0xf]
  %v1457 = vld [vmem:[%s1455 + $0x4] sm:$0xf]
  %v1458 = vld [vmem:[%s1455 + $0x8] sm:$0xf]
  %v1459 = vld [vmem:[%s1455 + $0xc] sm:$0xf]
  %v1464 = vunpack.c.l.b16 %v1456
  %v1465 = vunpack.c.l.b16 %v1457
  %v1466 = vunpack.c.l.b16 %v1458
  %v1467 = vunpack.c.l.b16 %v1459
  %v1468 = vpack.c.b16 %v1465, %v1464
  %v1469 = vpack.c.b16 %v1467, %v1466
  %v1471 = vsel %vm1062, %v1468, 0
  %v1474 = vsel %vm1062, %v1469, 0
  %1476 = vmatprep.subr.bf16.mxu0 0
  %1477 = vmatpush1.bf16.msra.mxu0 %v1046
  %1478 = vmatprep.subr.bf16.mxu0 0
  %1479 = vmatpush1.bf16.msra.mxu0 %v1047
  %1480 = vmatprep.subr.bf16.mxu0 0
  %1481 = vmatpush1.bf16.msra.mxu0 0
  %1482 = vmatprep.subr.bf16.mxu0 0
  %1483 = vmatpush1.bf16.msra.mxu0 0
  %1484 = vmatprep.subr.bf16.mxu0 0
  %1485 = vmatpush1.bf16.msra.mxu0 0
  %1486 = vmatprep.subr.bf16.mxu0 0
  %1487 = vmatpush1.bf16.msra.mxu0 0
  %1488 = vmatprep.subr.bf16.mxu0 0
  %1489 = vmatpush1.bf16.msra.mxu0 0
  %1490 = vmatprep.subr.bf16.mxu0 0
  %1491 = vmatpush1.bf16.msra.mxu0 0
  %1492 = vmatprep.subr.bf16.mxu0 0
  %1493 = vmatpush1.bf16.msra.mxu0 0
  %1494 = vmatprep.subr.bf16.mxu0 0
  %1495 = vmatpush1.bf16.msra.mxu0 0
  %1496 = vmatprep.subr.bf16.mxu0 0
  %1497 = vmatpush1.bf16.msra.mxu0 0
  %1498 = vmatprep.subr.bf16.mxu0 0
  %1499 = vmatpush1.bf16.msra.mxu0 0
  %1500 = vmatprep.subr.bf16.mxu0 0
  %1501 = vmatpush1.bf16.msra.mxu0 0
  %1502 = vmatprep.subr.bf16.mxu0 0
  %1503 = vmatpush1.bf16.msra.mxu0 0
  %1504 = vmatprep.subr.bf16.mxu0 0
  %1505 = vmatpush1.bf16.msra.mxu0 0
  %1506 = vmatprep.subr.bf16.mxu0 0
  %1507 = vmatpush1.bf16.msra.mxu0 0
  %1508 = vmatprep.mubr.bf16.mxu0 0
  %1509 = vmatmul.mubr.bf16.gmra.mrb[0].mxu0 %v1471
  %v1510 = vpop.f32.mrb[0].mxu0
  %v1511 = vadd.f32 0.0, %v1510
  %v1512 = vpop.f32.mrb[0].mxu0
  %v1513 = vpop.f32.mrb[0].mxu0
  %v1514 = vadd.f32 0.0, %v1513
  %v1515 = vpop.f32.mrb[0].mxu0
  %1516 = vmatprep.mubr.bf16.mxu0 0
  %1517 = vmatmul.mubr.bf16.gmra.mrb[0].mxu0 %v1474
  %v1518 = vpop.f32.mrb[0].mxu0
  %v1519 = vadd.f32 0.0, %v1518
  %v1520 = vpop.f32.mrb[0].mxu0
  %v1521 = vpop.f32.mrb[0].mxu0
  %v1522 = vadd.f32 0.0, %v1521
  %v1523 = vpop.f32.mrb[0].mxu0
  %1524 = vdwg.mxu0
  %v1525 = vpack.c.bf16 %v1514, %v1511
  %v1526 = vpack.c.bf16 %v1522, %v1519
  %1529 = vrot.lane.b32.xlu0 %v1525, 40
  %v1530 = vpop.permute.xlu0 %1529
  %1531 = vrot.lane.b32.xlu0 %v1526, 40
  %v1532 = vpop.permute.xlu0 %1531
  %vm1535 = vcmask 392512
  %1536 = vst.msk [vmem:[#allocation2] sm:$0xff] %vm1535, %v1530
  %1537 = vst.msk [vmem:[#allocation2 + $0x10] sm:$0xff] %vm1535, %v1532
  %s1538 = scalar_lea.vmem %s4, 96
  %v1539 = vld [vmem:[%s1538] sm:$0xf]
  %v1540 = vld [vmem:[%s1538 + $0x4] sm:$0xf]
  %v1541 = vld [vmem:[%s1538 + $0x8] sm:$0xf]
  %v1542 = vld [vmem:[%s1538 + $0xc] sm:$0xf]
  %v1547 = vunpack.c.l.b16 %v1539
  %v1548 = vunpack.c.l.b16 %v1540
  %v1549 = vunpack.c.l.b16 %v1541
  %v1550 = vunpack.c.l.b16 %v1542
  %v1551 = vpack.c.b16 %v1548, %v1547
  %v1552 = vpack.c.b16 %v1550, %v1549
  %v1554 = vsel %vm1062, %v1551, 0
  %v1557 = vsel %vm1062, %v1552, 0
  %1559 = vmatprep.subr.bf16.mxu0 0
  %1560 = vmatpush1.bf16.msra.mxu0 %v1046
  %1561 = vmatprep.subr.bf16.mxu0 0
  %1562 = vmatpush1.bf16.msra.mxu0 %v1047
  %1563 = vmatprep.subr.bf16.mxu0 0
  %1564 = vmatpush1.bf16.msra.mxu0 0
  %1565 = vmatprep.subr.bf16.mxu0 0
  %1566 = vmatpush1.bf16.msra.mxu0 0
  %1567 = vmatprep.subr.bf16.mxu0 0
  %1568 = vmatpush1.bf16.msra.mxu0 0
  %1569 = vmatprep.subr.bf16.mxu0 0
  %1570 = vmatpush1.bf16.msra.mxu0 0
  %1571 = vmatprep.subr.bf16.mxu0 0
  %1572 = vmatpush1.bf16.msra.mxu0 0
  %1573 = vmatprep.subr.bf16.mxu0 0
  %1574 = vmatpush1.bf16.msra.mxu0 0
  %1575 = vmatprep.subr.bf16.mxu0 0
  %1576 = vmatpush1.bf16.msra.mxu0 0
  %1577 = vmatprep.subr.bf16.mxu0 0
  %1578 = vmatpush1.bf16.msra.mxu0 0
  %1579 = vmatprep.subr.bf16.mxu0 0
  %1580 = vmatpush1.bf16.msra.mxu0 0
  %1581 = vmatprep.subr.bf16.mxu0 0
  %1582 = vmatpush1.bf16.msra.mxu0 0
  %1583 = vmatprep.subr.bf16.mxu0 0
  %1584 = vmatpush1.bf16.msra.mxu0 0
  %1585 = vmatprep.subr.bf16.mxu0 0
  %1586 = vmatpush1.bf16.msra.mxu0 0
  %1587 = vmatprep.subr.bf16.mxu0 0
  %1588 = vmatpush1.bf16.msra.mxu0 0
  %1589 = vmatprep.subr.bf16.mxu0 0
  %1590 = vmatpush1.bf16.msra.mxu0 0
  %1591 = vmatprep.mubr.bf16.mxu0 0
  %1592 = vmatmul.mubr.bf16.gmra.mrb[0].mxu0 %v1554
  %v1593 = vpop.f32.mrb[0].mxu0
  %v1594 = vadd.f32 0.0, %v1593
  %v1595 = vpop.f32.mrb[0].mxu0
  %v1596 = vpop.f32.mrb[0].mxu0
  %v1597 = vadd.f32 0.0, %v1596
  %v1598 = vpop.f32.mrb[0].mxu0
  %1599 = vmatprep.mubr.bf16.mxu0 0
  %1600 = vmatmul.mubr.bf16.gmra.mrb[0].mxu0 %v1557
  %v1601 = vpop.f32.mrb[0].mxu0
  %v1602 = vadd.f32 0.0, %v1601
  %v1603 = vpop.f32.mrb[0].mxu0
  %v1604 = vpop.f32.mrb[0].mxu0
  %v1605 = vadd.f32 0.0, %v1604
  %v1606 = vpop.f32.mrb[0].mxu0
  %1607 = vdwg.mxu0
  %v1608 = vpack.c.bf16 %v1597, %v1594
  %v1609 = vpack.c.bf16 %v1605, %v1602
  %1612 = vrot.lane.b32.xlu0 %v1608, 48
  %v1613 = vpop.permute.xlu0 %1612
  %1614 = vrot.lane.b32.xlu0 %v1609, 48
  %v1615 = vpop.permute.xlu0 %1614
  %vm1618 = vcmask 458112
  %1619 = vst.msk [vmem:[#allocation2] sm:$0xff] %vm1618, %v1613
  %1620 = vst.msk [vmem:[#allocation2 + $0x10] sm:$0xff] %vm1618, %v1615
  %s1621 = scalar_lea.vmem %s4, 112
  %v1622 = vld [vmem:[%s1621] sm:$0xf]
  %v1623 = vld [vmem:[%s1621 + $0x4] sm:$0xf]
  %v1624 = vld [vmem:[%s1621 + $0x8] sm:$0xf]
  %v1625 = vld [vmem:[%s1621 + $0xc] sm:$0xf]
  %v1630 = vunpack.c.l.b16 %v1622
  %v1631 = vunpack.c.l.b16 %v1623
  %v1632 = vunpack.c.l.b16 %v1624
  %v1633 = vunpack.c.l.b16 %v1625
  %v1634 = vpack.c.b16 %v1631, %v1630
  %v1635 = vpack.c.b16 %v1633, %v1632
  %v1637 = vsel %vm1062, %v1634, 0
  %v1640 = vsel %vm1062, %v1635, 0
  %1642 = vmatprep.subr.bf16.mxu0 0
  %1643 = vmatpush1.bf16.msra.mxu0 %v1046
  %1644 = vmatprep.subr.bf16.mxu0 0
  %1645 = vmatpush1.bf16.msra.mxu0 %v1047
  %1646 = vmatprep.subr.bf16.mxu0 0
  %1647 = vmatpush1.bf16.msra.mxu0 0
  %1648 = vmatprep.subr.bf16.mxu0 0
  %1649 = vmatpush1.bf16.msra.mxu0 0
  %1650 = vmatprep.subr.bf16.mxu0 0
  %1651 = vmatpush1.bf16.msra.mxu0 0
  %1652 = vmatprep.subr.bf16.mxu0 0
  %1653 = vmatpush1.bf16.msra.mxu0 0
  %1654 = vmatprep.subr.bf16.mxu0 0
  %1655 = vmatpush1.bf16.msra.mxu0 0
  %1656 = vmatprep.subr.bf16.mxu0 0
  %1657 = vmatpush1.bf16.msra.mxu0 0
  %1658 = vmatprep.subr.bf16.mxu0 0
  %1659 = vmatpush1.bf16.msra.mxu0 0
  %1660 = vmatprep.subr.bf16.mxu0 0
  %1661 = vmatpush1.bf16.msra.mxu0 0
  %1662 = vmatprep.subr.bf16.mxu0 0
  %1663 = vmatpush1.bf16.msra.mxu0 0
  %1664 = vmatprep.subr.bf16.mxu0 0
  %1665 = vmatpush1.bf16.msra.mxu0 0
  %1666 = vmatprep.subr.bf16.mxu0 0
  %1667 = vmatpush1.bf16.msra.mxu0 0
  %1668 = vmatprep.subr.bf16.mxu0 0
  %1669 = vmatpush1.bf16.msra.mxu0 0
  %1670 = vmatprep.subr.bf16.mxu0 0
  %1671 = vmatpush1.bf16.msra.mxu0 0
  %1672 = vmatprep.subr.bf16.mxu0 0
  %1673 = vmatpush1.bf16.msra.mxu0 0
  %1674 = vmatprep.mubr.bf16.mxu0 0
  %1675 = vmatmul.mubr.bf16.gmra.mrb[0].mxu0 %v1637
  %v1676 = vpop.f32.mrb[0].mxu0
  %v1677 = vadd.f32 0.0, %v1676
  %v1678 = vpop.f32.mrb[0].mxu0
  %v1679 = vpop.f32.mrb[0].mxu0
  %v1680 = vadd.f32 0.0, %v1679
  %v1681 = vpop.f32.mrb[0].mxu0
  %1682 = vmatprep.mubr.bf16.mxu0 0
  %1683 = vmatmul.mubr.bf16.gmra.mrb[0].mxu0 %v1640
  %v1684 = vpop.f32.mrb[0].mxu0
  %v1685 = vadd.f32 0.0, %v1684
  %v1686 = vpop.f32.mrb[0].mxu0
  %v1687 = vpop.f32.mrb[0].mxu0
  %v1688 = vadd.f32 0.0, %v1687
  %v1689 = vpop.f32.mrb[0].mxu0
  %1690 = vdwg.mxu0
  %v1691 = vpack.c.bf16 %v1680, %v1677
  %v1692 = vpack.c.bf16 %v1688, %v1685
  %1695 = vrot.lane.b32.xlu0 %v1691, 56
  %v1696 = vpop.permute.xlu0 %1695
  %1697 = vrot.lane.b32.xlu0 %v1692, 56
  %v1698 = vpop.permute.xlu0 %1697
  %vm1701 = vcmask 523712
  %1702 = vst.msk [vmem:[#allocation2] sm:$0xff] %vm1701, %v1696
  %1703 = vst.msk [vmem:[#allocation2 + $0x10] sm:$0xff] %vm1701, %v1698
  %s1704 = scalar_lea.vmem %s4, 128
  %v1705 = vld [vmem:[%s1704] sm:$0xf]
  %v1706 = vld [vmem:[%s1704 + $0x4] sm:$0xf]
  %v1707 = vld [vmem:[%s1704 + $0x8] sm:$0xf]
  %v1708 = vld [vmem:[%s1704 + $0xc] sm:$0xf]
  %v1713 = vunpack.c.l.b16 %v1705
  %v1714 = vunpack.c.l.b16 %v1706
  %v1715 = vunpack.c.l.b16 %v1707
  %v1716 = vunpack.c.l.b16 %v1708
  %v1717 = vpack.c.b16 %v1714, %v1713
  %v1718 = vpack.c.b16 %v1716, %v1715
  %v1720 = vsel %vm1062, %v1717, 0
  %v1723 = vsel %vm1062, %v1718, 0
  %1725 = vmatprep.subr.bf16.mxu0 0
  %1726 = vmatpush1.bf16.msra.mxu0 %v1046
  %1727 = vmatprep.subr.bf16.mxu0 0
  %1728 = vmatpush1.bf16.msra.mxu0 %v1047
  %1729 = vmatprep.subr.bf16.mxu0 0
  %1730 = vmatpush1.bf16.msra.mxu0 0
  %1731 = vmatprep.subr.bf16.mxu0 0
  %1732 = vmatpush1.bf16.msra.mxu0 0
  %1733 = vmatprep.subr.bf16.mxu0 0
  %1734 = vmatpush1.bf16.msra.mxu0 0
  %1735 = vmatprep.subr.bf16.mxu0 0
  %1736 = vmatpush1.bf16.msra.mxu0 0
  %1737 = vmatprep.subr.bf16.mxu0 0
  %1738 = vmatpush1.bf16.msra.mxu0 0
  %1739 = vmatprep.subr.bf16.mxu0 0
  %1740 = vmatpush1.bf16.msra.mxu0 0
  %1741 = vmatprep.subr.bf16.mxu0 0
  %1742 = vmatpush1.bf16.msra.mxu0 0
  %1743 = vmatprep.subr.bf16.mxu0 0
  %1744 = vmatpush1.bf16.msra.mxu0 0
  %1745 = vmatprep.subr.bf16.mxu0 0
  %1746 = vmatpush1.bf16.msra.mxu0 0
  %1747 = vmatprep.subr.bf16.mxu0 0
  %1748 = vmatpush1.bf16.msra.mxu0 0
  %1749 = vmatprep.subr.bf16.mxu0 0
  %1750 = vmatpush1.bf16.msra.mxu0 0
  %1751 = vmatprep.subr.bf16.mxu0 0
  %1752 = vmatpush1.bf16.msra.mxu0 0
  %1753 = vmatprep.subr.bf16.mxu0 0
  %1754 = vmatpush1.bf16.msra.mxu0 0
  %1755 = vmatprep.subr.bf16.mxu0 0
  %1756 = vmatpush1.bf16.msra.mxu0 0
  %1757 = vmatprep.mubr.bf16.mxu0 0
  %1758 = vmatmul.mubr.bf16.gmra.mrb[0].mxu0 %v1720
  %v1759 = vpop.f32.mrb[0].mxu0
  %v1760 = vadd.f32 0.0, %v1759
  %v1761 = vpop.f32.mrb[0].mxu0
  %v1762 = vpop.f32.mrb[0].mxu0
  %v1763 = vadd.f32 0.0, %v1762
  %v1764 = vpop.f32.mrb[0].mxu0
  %1765 = vmatprep.mubr.bf16.mxu0 0
  %1766 = vmatmul.mubr.bf16.gmra.mrb[0].mxu0 %v1723
  %v1767 = vpop.f32.mrb[0].mxu0
  %v1768 = vadd.f32 0.0, %v1767
  %v1769 = vpop.f32.mrb[0].mxu0
  %v1770 = vpop.f32.mrb[0].mxu0
  %v1771 = vadd.f32 0.0, %v1770
  %v1772 = vpop.f32.mrb[0].mxu0
  %1773 = vdwg.mxu0
  %v1774 = vpack.c.bf16 %v1763, %v1760
  %v1775 = vpack.c.bf16 %v1771, %v1768
  %1778 = vrot.lane.b32.xlu0 %v1774, 64
  %v1779 = vpop.permute.xlu0 %1778
  %1780 = vrot.lane.b32.xlu0 %v1775, 64
  %v1781 = vpop.permute.xlu0 %1780
  %vm1784 = vcmask 589312
  %1785 = vst.msk [vmem:[#allocation2] sm:$0xff] %vm1784, %v1779
  %1786 = vst.msk [vmem:[#allocation2 + $0x10] sm:$0xff] %vm1784, %v1781
  %v1787 = vld [vmem:[#allocation2] sm:$0xff]
  %v1788 = vld [vmem:[#allocation2 + $0x10] sm:$0xff]
  %v1789 = vld [vmem:[%s6] sm:$0xf]
  %v1790 = vld [vmem:[%s6 + $0x4] sm:$0xf]
  %v1791 = vld [vmem:[%s6 + $0x8] sm:$0xf]
  %v1792 = vld [vmem:[%s6 + $0xc] sm:$0xf]
  %v1793 = vld [vmem:[%s6 + $0x10] sm:$0xf]
  %v1794 = vld [vmem:[%s6 + $0x14] sm:$0xf]
  %v1795 = vld [vmem:[%s6 + $0x18] sm:$0xf]
  %v1796 = vld [vmem:[%s6 + $0x1c] sm:$0xf]
  %v1797 = vld [vmem:[%s6 + $0x20] sm:$0xf]
  %v1798 = vld [vmem:[%s7] sm:$0x1]
  %v1800 = vlaneseq
  %v1801 = vshrl.u32 %v1800, 7
  %v1802 = vsub.s32 0, %v1801
  %v1803 = vrot.slane %v1798, %v1802
  %v1814 = vunpack.c.l.b16 %v1789
  %v1815 = vunpack.c.l.b16 %v1790
  %v1816 = vunpack.c.l.b16 %v1791
  %v1817 = vunpack.c.l.b16 %v1792
  %v1818 = vunpack.c.l.b16 %v1793
  %v1819 = vunpack.c.l.b16 %v1794
  %v1820 = vunpack.c.l.b16 %v1795
  %v1821 = vunpack.c.l.b16 %v1796
  %v1822 = vunpack.c.l.b16 %v1797
  %v1823 = vpack.c.b16 %v1815, %v1814
  %v1824 = vpack.c.b16 %v1817, %v1816
  %v1825 = vpack.c.b16 %v1819, %v1818
  %v1826 = vpack.c.b16 %v1821, %v1820
  %v1827 = vpack.c.b16 %v1822, %v1822
  %vm1832 = vcmask 588800
  %v1834 = vsel %vm1832, %v1787, 0
  %v1837 = vsel %vm1832, %v1788, 0
  %vm1839 = vcmask 1043456
  %v1841 = vsel %vm1839, %v1827, 0
  %1843 = vmatprep.subr.bf16.mxu0 0
  %1844 = vmatpush1.bf16.msra.mxu0 %v1823
  %1845 = vmatprep.subr.bf16.mxu0 0
  %1846 = vmatpush1.bf16.msra.mxu0 %v1824
  %1847 = vmatprep.subr.bf16.mxu0 0
  %1848 = vmatpush1.bf16.msra.mxu0 %v1825
  %1849 = vmatprep.subr.bf16.mxu0 0
  %1850 = vmatpush1.bf16.msra.mxu0 %v1826
  %1851 = vmatprep.subr.bf16.mxu0 0
  %1852 = vmatpush1.bf16.msra.mxu0 %v1841
  %1853 = vmatprep.subr.bf16.mxu0 0
  %1854 = vmatpush1.bf16.msra.mxu0 0
  %1855 = vmatprep.subr.bf16.mxu0 0
  %1856 = vmatpush1.bf16.msra.mxu0 0
  %1857 = vmatprep.subr.bf16.mxu0 0
  %1858 = vmatpush1.bf16.msra.mxu0 0
  %1859 = vmatprep.subr.bf16.mxu0 0
  %1860 = vmatpush1.bf16.msra.mxu0 0
  %1861 = vmatprep.subr.bf16.mxu0 0
  %1862 = vmatpush1.bf16.msra.mxu0 0
  %1863 = vmatprep.subr.bf16.mxu0 0
  %1864 = vmatpush1.bf16.msra.mxu0 0
  %1865 = vmatprep.subr.bf16.mxu0 0
  %1866 = vmatpush1.bf16.msra.mxu0 0
  %1867 = vmatprep.subr.bf16.mxu0 0
  %1868 = vmatpush1.bf16.msra.mxu0 0
  %1869 = vmatprep.subr.bf16.mxu0 0
  %1870 = vmatpush1.bf16.msra.mxu0 0
  %1871 = vmatprep.subr.bf16.mxu0 0
  %1872 = vmatpush1.bf16.msra.mxu0 0
  %1873 = vmatprep.subr.bf16.mxu0 0
  %1874 = vmatpush1.bf16.msra.mxu0 0
  %1875 = vmatprep.mubr.bf16.mxu0 0
  %1876 = vmatmul.mubr.bf16.gmra.mrb[0].mxu0 %v1834
  %v1877 = vpop.f32.mrb[0].mxu0
  %v1878 = vadd.f32 %v1803, %v1877
  %v1879 = vpop.f32.mrb[0].mxu0
  %v1880 = vpop.f32.mrb[0].mxu0
  %v1881 = vadd.f32 %v1803, %v1880
  %v1882 = vpop.f32.mrb[0].mxu0
  %1883 = vmatprep.mubr.bf16.mxu0 0
  %1884 = vmatmul.mubr.bf16.gmra.mrb[0].mxu0 %v1837
  %v1885 = vpop.f32.mrb[0].mxu0
  %v1886 = vadd.f32 %v1803, %v1885
  %v1887 = vpop.f32.mrb[0].mxu0
  %v1888 = vpop.f32.mrb[0].mxu0
  %v1889 = vadd.f32 %v1803, %v1888
  %v1890 = vpop.f32.mrb[0].mxu0
  %1891 = vdwg.mxu0
  %v1892 = vmax.f32 %v1878, 0.0
  %v1893 = vmax.f32 %v1881, 0.0
  %v1894 = vmax.f32 %v1886, 0.0
  %v1895 = vmax.f32 %v1889, 0.0
  %v1896 = vpack.c.bf16 %v1893, %v1892
  %v1897 = vpack.c.bf16 %v1895, %v1894
  %v1898 = vld [vmem:[%s5] sm:$0xf]
  %v1899 = vld [vmem:[%s5 + $0x4] sm:$0xf]
  %v1900 = vld [vmem:[%s5 + $0x8] sm:$0xf]
  %v1901 = vld [vmem:[%s5 + $0xc] sm:$0xf]
  %v1906 = vunpack.c.l.b16 %v1898
  %v1907 = vunpack.c.l.b16 %v1899
  %v1908 = vunpack.c.l.b16 %v1900
  %v1909 = vunpack.c.l.b16 %v1901
  %v1910 = vpack.c.b16 %v1907, %v1906
  %v1911 = vpack.c.b16 %v1909, %v1908
  %v1913 = vsel %vm1062, %v1910, 0
  %v1916 = vsel %vm1062, %v1911, 0
  %1918 = vmatprep.subr.bf16.mxu0 0
  %1919 = vmatpush1.bf16.msra.mxu0 %v1896
  %1920 = vmatprep.subr.bf16.mxu0 0
  %1921 = vmatpush1.bf16.msra.mxu0 %v1897
  %1922 = vmatprep.subr.bf16.mxu0 0
  %1923 = vmatpush1.bf16.msra.mxu0 0
  %1924 = vmatprep.subr.bf16.mxu0 0
  %1925 = vmatpush1.bf16.msra.mxu0 0
  %1926 = vmatprep.subr.bf16.mxu0 0
  %1927 = vmatpush1.bf16.msra.mxu0 0
  %1928 = vmatprep.subr.bf16.mxu0 0
  %1929 = vmatpush1.bf16.msra.mxu0 0
  %1930 = vmatprep.subr.bf16.mxu0 0
  %1931 = vmatpush1.bf16.msra.mxu0 0
  %1932 = vmatprep.subr.bf16.mxu0 0
  %1933 = vmatpush1.bf16.msra.mxu0 0
  %1934 = vmatprep.subr.bf16.mxu0 0
  %1935 = vmatpush1.bf16.msra.mxu0 0
  %1936 = vmatprep.subr.bf16.mxu0 0
  %1937 = vmatpush1.bf16.msra.mxu0 0
  %1938 = vmatprep.subr.bf16.mxu0 0
  %1939 = vmatpush1.bf16.msra.mxu0 0
  %1940 = vmatprep.subr.bf16.mxu0 0
  %1941 = vmatpush1.bf16.msra.mxu0 0
  %1942 = vmatprep.subr.bf16.mxu0 0
  %1943 = vmatpush1.bf16.msra.mxu0 0
  %1944 = vmatprep.subr.bf16.mxu0 0
  %1945 = vmatpush1.bf16.msra.mxu0 0
  %1946 = vmatprep.subr.bf16.mxu0 0
  %1947 = vmatpush1.bf16.msra.mxu0 0
  %1948 = vmatprep.subr.bf16.mxu0 0
  %1949 = vmatpush1.bf16.msra.mxu0 0
  %1950 = vmatprep.mubr.bf16.mxu0 0
  %1951 = vmatmul.mubr.bf16.gmra.mrb[0].mxu0 %v1913
  %v1952 = vpop.f32.mrb[0].mxu0
  %v1953 = vadd.f32 0.0, %v1952
  %v1954 = vpop.f32.mrb[0].mxu0
  %v1955 = vpop.f32.mrb[0].mxu0
  %v1956 = vadd.f32 0.0, %v1955
  %v1957 = vpop.f32.mrb[0].mxu0
  %1958 = vmatprep.mubr.bf16.mxu0 0
  %1959 = vmatmul.mubr.bf16.gmra.mrb[0].mxu0 %v1916
  %v1960 = vpop.f32.mrb[0].mxu0
  %v1961 = vadd.f32 0.0, %v1960
  %v1962 = vpop.f32.mrb[0].mxu0
  %v1963 = vpop.f32.mrb[0].mxu0
  %v1964 = vadd.f32 0.0, %v1963
  %v1965 = vpop.f32.mrb[0].mxu0
  %1966 = vdwg.mxu0
  %v1967 = vpack.c.bf16 %v1956, %v1953
  %v1968 = vpack.c.bf16 %v1964, %v1961
  %1969 = vst.msk [vmem:[#allocation2] sm:$0xff] %vm1120, %v1967
  %1970 = vst.msk [vmem:[#allocation2 + $0x10] sm:$0xff] %vm1120, %v1968
  %s1971 = scalar_lea.vmem %s5, 16
  %v1972 = vld [vmem:[%s1971] sm:$0xf]
  %v1973 = vld [vmem:[%s1971 + $0x4] sm:$0xf]
  %v1974 = vld [vmem:[%s1971 + $0x8] sm:$0xf]
  %v1975 = vld [vmem:[%s1971 + $0xc] sm:$0xf]
  %v1980 = vunpack.c.l.b16 %v1972
  %v1981 = vunpack.c.l.b16 %v1973
  %v1982 = vunpack.c.l.b16 %v1974
  %v1983 = vunpack.c.l.b16 %v1975
  %v1984 = vpack.c.b16 %v1981, %v1980
  %v1985 = vpack.c.b16 %v1983, %v1982
  %v1987 = vsel %vm1062, %v1984, 0
  %v1990 = vsel %vm1062, %v1985, 0
  %1992 = vmatprep.subr.bf16.mxu0 0
  %1993 = vmatpush1.bf16.msra.mxu0 %v1896
  %1994 = vmatprep.subr.bf16.mxu0 0
  %1995 = vmatpush1.bf16.msra.mxu0 %v1897
  %1996 = vmatprep.subr.bf16.mxu0 0
  %1997 = vmatpush1.bf16.msra.mxu0 0
  %1998 = vmatprep.subr.bf16.mxu0 0
  %1999 = vmatpush1.bf16.msra.mxu0 0
  %2000 = vmatprep.subr.bf16.mxu0 0
  %2001 = vmatpush1.bf16.msra.mxu0 0
  %2002 = vmatprep.subr.bf16.mxu0 0
  %2003 = vmatpush1.bf16.msra.mxu0 0
  %2004 = vmatprep.subr.bf16.mxu0 0
  %2005 = vmatpush1.bf16.msra.mxu0 0
  %2006 = vmatprep.subr.bf16.mxu0 0
  %2007 = vmatpush1.bf16.msra.mxu0 0
  %2008 = vmatprep.subr.bf16.mxu0 0
  %2009 = vmatpush1.bf16.msra.mxu0 0
  %2010 = vmatprep.subr.bf16.mxu0 0
  %2011 = vmatpush1.bf16.msra.mxu0 0
  %2012 = vmatprep.subr.bf16.mxu0 0
  %2013 = vmatpush1.bf16.msra.mxu0 0
  %2014 = vmatprep.subr.bf16.mxu0 0
  %2015 = vmatpush1.bf16.msra.mxu0 0
  %2016 = vmatprep.subr.bf16.mxu0 0
  %2017 = vmatpush1.bf16.msra.mxu0 0
  %2018 = vmatprep.subr.bf16.mxu0 0
  %2019 = vmatpush1.bf16.msra.mxu0 0
  %2020 = vmatprep.subr.bf16.mxu0 0
  %2021 = vmatpush1.bf16.msra.mxu0 0
  %2022 = vmatprep.subr.bf16.mxu0 0
  %2023 = vmatpush1.bf16.msra.mxu0 0
  %2024 = vmatprep.mubr.bf16.mxu0 0
  %2025 = vmatmul.mubr.bf16.gmra.mrb[0].mxu0 %v1987
  %v2026 = vpop.f32.mrb[0].mxu0
  %v2027 = vadd.f32 0.0, %v2026
  %v2028 = vpop.f32.mrb[0].mxu0
  %v2029 = vpop.f32.mrb[0].mxu0
  %v2030 = vadd.f32 0.0, %v2029
  %v2031 = vpop.f32.mrb[0].mxu0
  %2032 = vmatprep.mubr.bf16.mxu0 0
  %2033 = vmatmul.mubr.bf16.gmra.mrb[0].mxu0 %v1990
  %v2034 = vpop.f32.mrb[0].mxu0
  %v2035 = vadd.f32 0.0, %v2034
  %v2036 = vpop.f32.mrb[0].mxu0
  %v2037 = vpop.f32.mrb[0].mxu0
  %v2038 = vadd.f32 0.0, %v2037
  %v2039 = vpop.f32.mrb[0].mxu0
  %2040 = vdwg.mxu0
  %v2041 = vpack.c.bf16 %v2030, %v2027
  %v2042 = vpack.c.bf16 %v2038, %v2035
  %2045 = vrot.lane.b32.xlu0 %v2041, 8
  %v2046 = vpop.permute.xlu0 %2045
  %2047 = vrot.lane.b32.xlu0 %v2042, 8
  %v2048 = vpop.permute.xlu0 %2047
  %2051 = vst.msk [vmem:[#allocation2] sm:$0xff] %vm1203, %v2046
  %2052 = vst.msk [vmem:[#allocation2 + $0x10] sm:$0xff] %vm1203, %v2048
  %s2053 = scalar_lea.vmem %s5, 32
  %v2054 = vld [vmem:[%s2053] sm:$0xf]
  %v2055 = vld [vmem:[%s2053 + $0x4] sm:$0xf]
  %v2056 = vld [vmem:[%s2053 + $0x8] sm:$0xf]
  %v2057 = vld [vmem:[%s2053 + $0xc] sm:$0xf]
  %v2062 = vunpack.c.l.b16 %v2054
  %v2063 = vunpack.c.l.b16 %v2055
  %v2064 = vunpack.c.l.b16 %v2056
  %v2065 = vunpack.c.l.b16 %v2057
  %v2066 = vpack.c.b16 %v2063, %v2062
  %v2067 = vpack.c.b16 %v2065, %v2064
  %v2069 = vsel %vm1062, %v2066, 0
  %v2072 = vsel %vm1062, %v2067, 0
  %2074 = vmatprep.subr.bf16.mxu0 0
  %2075 = vmatpush1.bf16.msra.mxu0 %v1896
  %2076 = vmatprep.subr.bf16.mxu0 0
  %2077 = vmatpush1.bf16.msra.mxu0 %v1897
  %2078 = vmatprep.subr.bf16.mxu0 0
  %2079 = vmatpush1.bf16.msra.mxu0 0
  %2080 = vmatprep.subr.bf16.mxu0 0
  %2081 = vmatpush1.bf16.msra.mxu0 0
  %2082 = vmatprep.subr.bf16.mxu0 0
  %2083 = vmatpush1.bf16.msra.mxu0 0
  %2084 = vmatprep.subr.bf16.mxu0 0
  %2085 = vmatpush1.bf16.msra.mxu0 0
  %2086 = vmatprep.subr.bf16.mxu0 0
  %2087 = vmatpush1.bf16.msra.mxu0 0
  %2088 = vmatprep.subr.bf16.mxu0 0
  %2089 = vmatpush1.bf16.msra.mxu0 0
  %2090 = vmatprep.subr.bf16.mxu0 0
  %2091 = vmatpush1.bf16.msra.mxu0 0
  %2092 = vmatprep.subr.bf16.mxu0 0
  %2093 = vmatpush1.bf16.msra.mxu0 0
  %2094 = vmatprep.subr.bf16.mxu0 0
  %2095 = vmatpush1.bf16.msra.mxu0 0
  %2096 = vmatprep.subr.bf16.mxu0 0
  %2097 = vmatpush1.bf16.msra.mxu0 0
  %2098 = vmatprep.subr.bf16.mxu0 0
  %2099 = vmatpush1.bf16.msra.mxu0 0
  %2100 = vmatprep.subr.bf16.mxu0 0
  %2101 = vmatpush1.bf16.msra.mxu0 0
  %2102 = vmatprep.subr.bf16.mxu0 0
  %2103 = vmatpush1.bf16.msra.mxu0 0
  %2104 = vmatprep.subr.bf16.mxu0 0
  %2105 = vmatpush1.bf16.msra.mxu0 0
  %2106 = vmatprep.mubr.bf16.mxu0 0
  %2107 = vmatmul.mubr.bf16.gmra.mrb[0].mxu0 %v2069
  %v2108 = vpop.f32.mrb[0].mxu0
  %v2109 = vadd.f32 0.0, %v2108
  %v2110 = vpop.f32.mrb[0].mxu0
  %v2111 = vpop.f32.mrb[0].mxu0
  %v2112 = vadd.f32 0.0, %v2111
  %v2113 = vpop.f32.mrb[0].mxu0
  %2114 = vmatprep.mubr.bf16.mxu0 0
  %2115 = vmatmul.mubr.bf16.gmra.mrb[0].mxu0 %v2072
  %v2116 = vpop.f32.mrb[0].mxu0
  %v2117 = vadd.f32 0.0, %v2116
  %v2118 = vpop.f32.mrb[0].mxu0
  %v2119 = vpop.f32.mrb[0].mxu0
  %v2120 = vadd.f32 0.0, %v2119
  %v2121 = vpop.f32.mrb[0].mxu0
  %2122 = vdwg.mxu0
  %v2123 = vpack.c.bf16 %v2112, %v2109
  %v2124 = vpack.c.bf16 %v2120, %v2117
  %2127 = vrot.lane.b32.xlu0 %v2123, 16
  %v2128 = vpop.permute.xlu0 %2127
  %2129 = vrot.lane.b32.xlu0 %v2124, 16
  %v2130 = vpop.permute.xlu0 %2129
  %2133 = vst.msk [vmem:[#allocation2] sm:$0xff] %vm1286, %v2128
  %2134 = vst.msk [vmem:[#allocation2 + $0x10] sm:$0xff] %vm1286, %v2130
  %s2135 = scalar_lea.vmem %s5, 48
  %v2136 = vld [vmem:[%s2135] sm:$0xf]
  %v2137 = vld [vmem:[%s2135 + $0x4] sm:$0xf]
  %v2138 = vld [vmem:[%s2135 + $0x8] sm:$0xf]
  %v2139 = vld [vmem:[%s2135 + $0xc] sm:$0xf]
  %v2144 = vunpack.c.l.b16 %v2136
  %v2145 = vunpack.c.l.b16 %v2137
  %v2146 = vunpack.c.l.b16 %v2138
  %v2147 = vunpack.c.l.b16 %v2139
  %v2148 = vpack.c.b16 %v2145, %v2144
  %v2149 = vpack.c.b16 %v2147, %v2146
  %v2151 = vsel %vm1062, %v2148, 0
  %v2154 = vsel %vm1062, %v2149, 0
  %2156 = vmatprep.subr.bf16.mxu0 0
  %2157 = vmatpush1.bf16.msra.mxu0 %v1896
  %2158 = vmatprep.subr.bf16.mxu0 0
  %2159 = vmatpush1.bf16.msra.mxu0 %v1897
  %2160 = vmatprep.subr.bf16.mxu0 0
  %2161 = vmatpush1.bf16.msra.mxu0 0
  %2162 = vmatprep.subr.bf16.mxu0 0
  %2163 = vmatpush1.bf16.msra.mxu0 0
  %2164 = vmatprep.subr.bf16.mxu0 0
  %2165 = vmatpush1.bf16.msra.mxu0 0
  %2166 = vmatprep.subr.bf16.mxu0 0
  %2167 = vmatpush1.bf16.msra.mxu0 0
  %2168 = vmatprep.subr.bf16.mxu0 0
  %2169 = vmatpush1.bf16.msra.mxu0 0
  %2170 = vmatprep.subr.bf16.mxu0 0
  %2171 = vmatpush1.bf16.msra.mxu0 0
  %2172 = vmatprep.subr.bf16.mxu0 0
  %2173 = vmatpush1.bf16.msra.mxu0 0
  %2174 = vmatprep.subr.bf16.mxu0 0
  %2175 = vmatpush1.bf16.msra.mxu0 0
  %2176 = vmatprep.subr.bf16.mxu0 0
  %2177 = vmatpush1.bf16.msra.mxu0 0
  %2178 = vmatprep.subr.bf16.mxu0 0
  %2179 = vmatpush1.bf16.msra.mxu0 0
  %2180 = vmatprep.subr.bf16.mxu0 0
  %2181 = vmatpush1.bf16.msra.mxu0 0
  %2182 = vmatprep.subr.bf16.mxu0 0
  %2183 = vmatpush1.bf16.msra.mxu0 0
  %2184 = vmatprep.subr.bf16.mxu0 0
  %2185 = vmatpush1.bf16.msra.mxu0 0
  %2186 = vmatprep.subr.bf16.mxu0 0
  %2187 = vmatpush1.bf16.msra.mxu0 0
  %2188 = vmatprep.mubr.bf16.mxu0 0
  %2189 = vmatmul.mubr.bf16.gmra.mrb[0].mxu0 %v2151
  %v2190 = vpop.f32.mrb[0].mxu0
  %v2191 = vadd.f32 0.0, %v2190
  %v2192 = vpop.f32.mrb[0].mxu0
  %v2193 = vpop.f32.mrb[0].mxu0
  %v2194 = vadd.f32 0.0, %v2193
  %v2195 = vpop.f32.mrb[0].mxu0
  %2196 = vmatprep.mubr.bf16.mxu0 0
  %2197 = vmatmul.mubr.bf16.gmra.mrb[0].mxu0 %v2154
  %v2198 = vpop.f32.mrb[0].mxu0
  %v2199 = vadd.f32 0.0, %v2198
  %v2200 = vpop.f32.mrb[0].mxu0
  %v2201 = vpop.f32.mrb[0].mxu0
  %v2202 = vadd.f32 0.0, %v2201
  %v2203 = vpop.f32.mrb[0].mxu0
  %2204 = vdwg.mxu0
  %v2205 = vpack.c.bf16 %v2194, %v2191
  %v2206 = vpack.c.bf16 %v2202, %v2199
  %2209 = vrot.lane.b32.xlu0 %v2205, 24
  %v2210 = vpop.permute.xlu0 %2209
  %2211 = vrot.lane.b32.xlu0 %v2206, 24
  %v2212 = vpop.permute.xlu0 %2211
  %2215 = vst.msk [vmem:[#allocation2] sm:$0xff] %vm1369, %v2210
  %2216 = vst.msk [vmem:[#allocation2 + $0x10] sm:$0xff] %vm1369, %v2212
  %s2217 = scalar_lea.vmem %s5, 64
  %v2218 = vld [vmem:[%s2217] sm:$0xf]
  %v2219 = vld [vmem:[%s2217 + $0x4] sm:$0xf]
  %v2220 = vld [vmem:[%s2217 + $0x8] sm:$0xf]
  %v2221 = vld [vmem:[%s2217 + $0xc] sm:$0xf]
  %v2226 = vunpack.c.l.b16 %v2218
  %v2227 = vunpack.c.l.b16 %v2219
  %v2228 = vunpack.c.l.b16 %v2220
  %v2229 = vunpack.c.l.b16 %v2221
  %v2230 = vpack.c.b16 %v2227, %v2226
  %v2231 = vpack.c.b16 %v2229, %v2228
  %v2233 = vsel %vm1062, %v2230, 0
  %v2236 = vsel %vm1062, %v2231, 0
  %2238 = vmatprep.subr.bf16.mxu0 0
  %2239 = vmatpush1.bf16.msra.mxu0 %v1896
  %2240 = vmatprep.subr.bf16.mxu0 0
  %2241 = vmatpush1.bf16.msra.mxu0 %v1897
  %2242 = vmatprep.subr.bf16.mxu0 0
  %2243 = vmatpush1.bf16.msra.mxu0 0
  %2244 = vmatprep.subr.bf16.mxu0 0
  %2245 = vmatpush1.bf16.msra.mxu0 0
  %2246 = vmatprep.subr.bf16.mxu0 0
  %2247 = vmatpush1.bf16.msra.mxu0 0
  %2248 = vmatprep.subr.bf16.mxu0 0
  %2249 = vmatpush1.bf16.msra.mxu0 0
  %2250 = vmatprep.subr.bf16.mxu0 0
  %2251 = vmatpush1.bf16.msra.mxu0 0
  %2252 = vmatprep.subr.bf16.mxu0 0
  %2253 = vmatpush1.bf16.msra.mxu0 0
  %2254 = vmatprep.subr.bf16.mxu0 0
  %2255 = vmatpush1.bf16.msra.mxu0 0
  %2256 = vmatprep.subr.bf16.mxu0 0
  %2257 = vmatpush1.bf16.msra.mxu0 0
  %2258 = vmatprep.subr.bf16.mxu0 0
  %2259 = vmatpush1.bf16.msra.mxu0 0
  %2260 = vmatprep.subr.bf16.mxu0 0
  %2261 = vmatpush1.bf16.msra.mxu0 0
  %2262 = vmatprep.subr.bf16.mxu0 0
  %2263 = vmatpush1.bf16.msra.mxu0 0
  %2264 = vmatprep.subr.bf16.mxu0 0
  %2265 = vmatpush1.bf16.msra.mxu0 0
  %2266 = vmatprep.subr.bf16.mxu0 0
  %2267 = vmatpush1.bf16.msra.mxu0 0
  %2268 = vmatprep.subr.bf16.mxu0 0
  %2269 = vmatpush1.bf16.msra.mxu0 0
  %2270 = vmatprep.mubr.bf16.mxu0 0
  %2271 = vmatmul.mubr.bf16.gmra.mrb[0].mxu0 %v2233
  %v2272 = vpop.f32.mrb[0].mxu0
  %v2273 = vadd.f32 0.0, %v2272
  %v2274 = vpop.f32.mrb[0].mxu0
  %v2275 = vpop.f32.mrb[0].mxu0
  %v2276 = vadd.f32 0.0, %v2275
  %v2277 = vpop.f32.mrb[0].mxu0
  %2278 = vmatprep.mubr.bf16.mxu0 0
  %2279 = vmatmul.mubr.bf16.gmra.mrb[0].mxu0 %v2236
  %v2280 = vpop.f32.mrb[0].mxu0
  %v2281 = vadd.f32 0.0, %v2280
  %v2282 = vpop.f32.mrb[0].mxu0
  %v2283 = vpop.f32.mrb[0].mxu0
  %v2284 = vadd.f32 0.0, %v2283
  %v2285 = vpop.f32.mrb[0].mxu0
  %2286 = vdwg.mxu0
  %v2287 = vpack.c.bf16 %v2276, %v2273
  %v2288 = vpack.c.bf16 %v2284, %v2281
  %2291 = vrot.lane.b32.xlu0 %v2287, 32
  %v2292 = vpop.permute.xlu0 %2291
  %2293 = vrot.lane.b32.xlu0 %v2288, 32
  %v2294 = vpop.permute.xlu0 %2293
  %2297 = vst.msk [vmem:[#allocation2] sm:$0xff] %vm1452, %v2292
  %2298 = vst.msk [vmem:[#allocation2 + $0x10] sm:$0xff] %vm1452, %v2294
  %s2299 = scalar_lea.vmem %s5, 80
  %v2300 = vld [vmem:[%s2299] sm:$0xf]
  %v2301 = vld [vmem:[%s2299 + $0x4] sm:$0xf]
  %v2302 = vld [vmem:[%s2299 + $0x8] sm:$0xf]
  %v2303 = vld [vmem:[%s2299 + $0xc] sm:$0xf]
  %v2308 = vunpack.c.l.b16 %v2300
  %v2309 = vunpack.c.l.b16 %v2301
  %v2310 = vunpack.c.l.b16 %v2302
  %v2311 = vunpack.c.l.b16 %v2303
  %v2312 = vpack.c.b16 %v2309, %v2308
  %v2313 = vpack.c.b16 %v2311, %v2310
  %v2315 = vsel %vm1062, %v2312, 0
  %v2318 = vsel %vm1062, %v2313, 0
  %2320 = vmatprep.subr.bf16.mxu0 0
  %2321 = vmatpush1.bf16.msra.mxu0 %v1896
  %2322 = vmatprep.subr.bf16.mxu0 0
  %2323 = vmatpush1.bf16.msra.mxu0 %v1897
  %2324 = vmatprep.subr.bf16.mxu0 0
  %2325 = vmatpush1.bf16.msra.mxu0 0
  %2326 = vmatprep.subr.bf16.mxu0 0
  %2327 = vmatpush1.bf16.msra.mxu0 0
  %2328 = vmatprep.subr.bf16.mxu0 0
  %2329 = vmatpush1.bf16.msra.mxu0 0
  %2330 = vmatprep.subr.bf16.mxu0 0
  %2331 = vmatpush1.bf16.msra.mxu0 0
  %2332 = vmatprep.subr.bf16.mxu0 0
  %2333 = vmatpush1.bf16.msra.mxu0 0
  %2334 = vmatprep.subr.bf16.mxu0 0
  %2335 = vmatpush1.bf16.msra.mxu0 0
  %2336 = vmatprep.subr.bf16.mxu0 0
  %2337 = vmatpush1.bf16.msra.mxu0 0
  %2338 = vmatprep.subr.bf16.mxu0 0
  %2339 = vmatpush1.bf16.msra.mxu0 0
  %2340 = vmatprep.subr.bf16.mxu0 0
  %2341 = vmatpush1.bf16.msra.mxu0 0
  %2342 = vmatprep.subr.bf16.mxu0 0
  %2343 = vmatpush1.bf16.msra.mxu0 0
  %2344 = vmatprep.subr.bf16.mxu0 0
  %2345 = vmatpush1.bf16.msra.mxu0 0
  %2346 = vmatprep.subr.bf16.mxu0 0
  %2347 = vmatpush1.bf16.msra.mxu0 0
  %2348 = vmatprep.subr.bf16.mxu0 0
  %2349 = vmatpush1.bf16.msra.mxu0 0
  %2350 = vmatprep.subr.bf16.mxu0 0
  %2351 = vmatpush1.bf16.msra.mxu0 0
  %2352 = vmatprep.mubr.bf16.mxu0 0
  %2353 = vmatmul.mubr.bf16.gmra.mrb[0].mxu0 %v2315
  %v2354 = vpop.f32.mrb[0].mxu0
  %v2355 = vadd.f32 0.0, %v2354
  %v2356 = vpop.f32.mrb[0].mxu0
  %v2357 = vpop.f32.mrb[0].mxu0
  %v2358 = vadd.f32 0.0, %v2357
  %v2359 = vpop.f32.mrb[0].mxu0
  %2360 = vmatprep.mubr.bf16.mxu0 0
  %2361 = vmatmul.mubr.bf16.gmra.mrb[0].mxu0 %v2318
  %v2362 = vpop.f32.mrb[0].mxu0
  %v2363 = vadd.f32 0.0, %v2362
  %v2364 = vpop.f32.mrb[0].mxu0
  %v2365 = vpop.f32.mrb[0].mxu0
  %v2366 = vadd.f32 0.0, %v2365
  %v2367 = vpop.f32.mrb[0].mxu0
  %2368 = vdwg.mxu0
  %v2369 = vpack.c.bf16 %v2358, %v2355
  %v2370 = vpack.c.bf16 %v2366, %v2363
  %2373 = vrot.lane.b32.xlu0 %v2369, 40
  %v2374 = vpop.permute.xlu0 %2373
  %2375 = vrot.lane.b32.xlu0 %v2370, 40
  %v2376 = vpop.permute.xlu0 %2375
  %2379 = vst.msk [vmem:[#allocation2] sm:$0xff] %vm1535, %v2374
  %2380 = vst.msk [vmem:[#allocation2 + $0x10] sm:$0xff] %vm1535, %v2376
  %s2381 = scalar_lea.vmem %s5, 96
  %v2382 = vld [vmem:[%s2381] sm:$0xf]
  %v2383 = vld [vmem:[%s2381 + $0x4] sm:$0xf]
  %v2384 = vld [vmem:[%s2381 + $0x8] sm:$0xf]
  %v2385 = vld [vmem:[%s2381 + $0xc] sm:$0xf]
  %v2390 = vunpack.c.l.b16 %v2382
  %v2391 = vunpack.c.l.b16 %v2383
  %v2392 = vunpack.c.l.b16 %v2384
  %v2393 = vunpack.c.l.b16 %v2385
  %v2394 = vpack.c.b16 %v2391, %v2390
  %v2395 = vpack.c.b16 %v2393, %v2392
  %v2397 = vsel %vm1062, %v2394, 0
  %v2400 = vsel %vm1062, %v2395, 0
  %2402 = vmatprep.subr.bf16.mxu0 0
  %2403 = vmatpush1.bf16.msra.mxu0 %v1896
  %2404 = vmatprep.subr.bf16.mxu0 0
  %2405 = vmatpush1.bf16.msra.mxu0 %v1897
  %2406 = vmatprep.subr.bf16.mxu0 0
  %2407 = vmatpush1.bf16.msra.mxu0 0
  %2408 = vmatprep.subr.bf16.mxu0 0
  %2409 = vmatpush1.bf16.msra.mxu0 0
  %2410 = vmatprep.subr.bf16.mxu0 0
  %2411 = vmatpush1.bf16.msra.mxu0 0
  %2412 = vmatprep.subr.bf16.mxu0 0
  %2413 = vmatpush1.bf16.msra.mxu0 0
  %2414 = vmatprep.subr.bf16.mxu0 0
  %2415 = vmatpush1.bf16.msra.mxu0 0
  %2416 = vmatprep.subr.bf16.mxu0 0
  %2417 = vmatpush1.bf16.msra.mxu0 0
  %2418 = vmatprep.subr.bf16.mxu0 0
  %2419 = vmatpush1.bf16.msra.mxu0 0
  %2420 = vmatprep.subr.bf16.mxu0 0
  %2421 = vmatpush1.bf16.msra.mxu0 0
  %2422 = vmatprep.subr.bf16.mxu0 0
  %2423 = vmatpush1.bf16.msra.mxu0 0
  %2424 = vmatprep.subr.bf16.mxu0 0
  %2425 = vmatpush1.bf16.msra.mxu0 0
  %2426 = vmatprep.subr.bf16.mxu0 0
  %2427 = vmatpush1.bf16.msra.mxu0 0
  %2428 = vmatprep.subr.bf16.mxu0 0
  %2429 = vmatpush1.bf16.msra.mxu0 0
  %2430 = vmatprep.subr.bf16.mxu0 0
  %2431 = vmatpush1.bf16.msra.mxu0 0
  %2432 = vmatprep.subr.bf16.mxu0 0
  %2433 = vmatpush1.bf16.msra.mxu0 0
  %2434 = vmatprep.mubr.bf16.mxu0 0
  %2435 = vmatmul.mubr.bf16.gmra.mrb[0].mxu0 %v2397
  %v2436 = vpop.f32.mrb[0].mxu0
  %v2437 = vadd.f32 0.0, %v2436
  %v2438 = vpop.f32.mrb[0].mxu0
  %v2439 = vpop.f32.mrb[0].mxu0
  %v2440 = vadd.f32 0.0, %v2439
  %v2441 = vpop.f32.mrb[0].mxu0
  %2442 = vmatprep.mubr.bf16.mxu0 0
  %2443 = vmatmul.mubr.bf16.gmra.mrb[0].mxu0 %v2400
  %v2444 = vpop.f32.mrb[0].mxu0
  %v2445 = vadd.f32 0.0, %v2444
  %v2446 = vpop.f32.mrb[0].mxu0
  %v2447 = vpop.f32.mrb[0].mxu0
  %v2448 = vadd.f32 0.0, %v2447
  %v2449 = vpop.f32.mrb[0].mxu0
  %2450 = vdwg.mxu0
  %v2451 = vpack.c.bf16 %v2440, %v2437
  %v2452 = vpack.c.bf16 %v2448, %v2445
  %2455 = vrot.lane.b32.xlu0 %v2451, 48
  %v2456 = vpop.permute.xlu0 %2455
  %2457 = vrot.lane.b32.xlu0 %v2452, 48
  %v2458 = vpop.permute.xlu0 %2457
  %2461 = vst.msk [vmem:[#allocation2] sm:$0xff] %vm1618, %v2456
  %2462 = vst.msk [vmem:[#allocation2 + $0x10] sm:$0xff] %vm1618, %v2458
  %s2463 = scalar_lea.vmem %s5, 112
  %v2464 = vld [vmem:[%s2463] sm:$0xf]
  %v2465 = vld [vmem:[%s2463 + $0x4] sm:$0xf]
  %v2466 = vld [vmem:[%s2463 + $0x8] sm:$0xf]
  %v2467 = vld [vmem:[%s2463 + $0xc] sm:$0xf]
  %v2472 = vunpack.c.l.b16 %v2464
  %v2473 = vunpack.c.l.b16 %v2465
  %v2474 = vunpack.c.l.b16 %v2466
  %v2475 = vunpack.c.l.b16 %v2467
  %v2476 = vpack.c.b16 %v2473, %v2472
  %v2477 = vpack.c.b16 %v2475, %v2474
  %v2479 = vsel %vm1062, %v2476, 0
  %v2482 = vsel %vm1062, %v2477, 0
  %2484 = vmatprep.subr.bf16.mxu0 0
  %2485 = vmatpush1.bf16.msra.mxu0 %v1896
  %2486 = vmatprep.subr.bf16.mxu0 0
  %2487 = vmatpush1.bf16.msra.mxu0 %v1897
  %2488 = vmatprep.subr.bf16.mxu0 0
  %2489 = vmatpush1.bf16.msra.mxu0 0
  %2490 = vmatprep.subr.bf16.mxu0 0
  %2491 = vmatpush1.bf16.msra.mxu0 0
  %2492 = vmatprep.subr.bf16.mxu0 0
  %2493 = vmatpush1.bf16.msra.mxu0 0
  %2494 = vmatprep.subr.bf16.mxu0 0
  %2495 = vmatpush1.bf16.msra.mxu0 0
  %2496 = vmatprep.subr.bf16.mxu0 0
  %2497 = vmatpush1.bf16.msra.mxu0 0
  %2498 = vmatprep.subr.bf16.mxu0 0
  %2499 = vmatpush1.bf16.msra.mxu0 0
  %2500 = vmatprep.subr.bf16.mxu0 0
  %2501 = vmatpush1.bf16.msra.mxu0 0
  %2502 = vmatprep.subr.bf16.mxu0 0
  %2503 = vmatpush1.bf16.msra.mxu0 0
  %2504 = vmatprep.subr.bf16.mxu0 0
  %2505 = vmatpush1.bf16.msra.mxu0 0
  %2506 = vmatprep.subr.bf16.mxu0 0
  %2507 = vmatpush1.bf16.msra.mxu0 0
  %2508 = vmatprep.subr.bf16.mxu0 0
  %2509 = vmatpush1.bf16.msra.mxu0 0
  %2510 = vmatprep.subr.bf16.mxu0 0
  %2511 = vmatpush1.bf16.msra.mxu0 0
  %2512 = vmatprep.subr.bf16.mxu0 0
  %2513 = vmatpush1.bf16.msra.mxu0 0
  %2514 = vmatprep.subr.bf16.mxu0 0
  %2515 = vmatpush1.bf16.msra.mxu0 0
  %2516 = vmatprep.mubr.bf16.mxu0 0
  %2517 = vmatmul.mubr.bf16.gmra.mrb[0].mxu0 %v2479
  %v2518 = vpop.f32.mrb[0].mxu0
  %v2519 = vadd.f32 0.0, %v2518
  %v2520 = vpop.f32.mrb[0].mxu0
  %v2521 = vpop.f32.mrb[0].mxu0
  %v2522 = vadd.f32 0.0, %v2521
  %v2523 = vpop.f32.mrb[0].mxu0
  %2524 = vmatprep.mubr.bf16.mxu0 0
  %2525 = vmatmul.mubr.bf16.gmra.mrb[0].mxu0 %v2482
  %v2526 = vpop.f32.mrb[0].mxu0
  %v2527 = vadd.f32 0.0, %v2526
  %v2528 = vpop.f32.mrb[0].mxu0
  %v2529 = vpop.f32.mrb[0].mxu0
  %v2530 = vadd.f32 0.0, %v2529
  %v2531 = vpop.f32.mrb[0].mxu0
  %2532 = vdwg.mxu0
  %v2533 = vpack.c.bf16 %v2522, %v2519
  %v2534 = vpack.c.bf16 %v2530, %v2527
  %2537 = vrot.lane.b32.xlu0 %v2533, 56
  %v2538 = vpop.permute.xlu0 %2537
  %2539 = vrot.lane.b32.xlu0 %v2534, 56
  %v2540 = vpop.permute.xlu0 %2539
  %2543 = vst.msk [vmem:[#allocation2] sm:$0xff] %vm1701, %v2538
  %2544 = vst.msk [vmem:[#allocation2 + $0x10] sm:$0xff] %vm1701, %v2540
  %s2545 = scalar_lea.vmem %s5, 128
  %v2546 = vld [vmem:[%s2545] sm:$0xf]
  %v2547 = vld [vmem:[%s2545 + $0x4] sm:$0xf]
  %v2548 = vld [vmem:[%s2545 + $0x8] sm:$0xf]
  %v2549 = vld [vmem:[%s2545 + $0xc] sm:$0xf]
  %v2554 = vunpack.c.l.b16 %v2546
  %v2555 = vunpack.c.l.b16 %v2547
  %v2556 = vunpack.c.l.b16 %v2548
  %v2557 = vunpack.c.l.b16 %v2549
  %v2558 = vpack.c.b16 %v2555, %v2554
  %v2559 = vpack.c.b16 %v2557, %v2556
  %v2561 = vsel %vm1062, %v2558, 0
  %v2564 = vsel %vm1062, %v2559, 0
  %2566 = vmatprep.subr.bf16.mxu0 0
  %2567 = vmatpush1.bf16.msra.mxu0 %v1896
  %2568 = vmatprep.subr.bf16.mxu0 0
  %2569 = vmatpush1.bf16.msra.mxu0 %v1897
  %2570 = vmatprep.subr.bf16.mxu0 0
  %2571 = vmatpush1.bf16.msra.mxu0 0
  %2572 = vmatprep.subr.bf16.mxu0 0
  %2573 = vmatpush1.bf16.msra.mxu0 0
  %2574 = vmatprep.subr.bf16.mxu0 0
  %2575 = vmatpush1.bf16.msra.mxu0 0
  %2576 = vmatprep.subr.bf16.mxu0 0
  %2577 = vmatpush1.bf16.msra.mxu0 0
  %2578 = vmatprep.subr.bf16.mxu0 0
  %2579 = vmatpush1.bf16.msra.mxu0 0
  %2580 = vmatprep.subr.bf16.mxu0 0
  %2581 = vmatpush1.bf16.msra.mxu0 0
  %2582 = vmatprep.subr.bf16.mxu0 0
  %2583 = vmatpush1.bf16.msra.mxu0 0
  %2584 = vmatprep.subr.bf16.mxu0 0
  %2585 = vmatpush1.bf16.msra.mxu0 0
  %2586 = vmatprep.subr.bf16.mxu0 0
  %2587 = vmatpush1.bf16.msra.mxu0 0
  %2588 = vmatprep.subr.bf16.mxu0 0
  %2589 = vmatpush1.bf16.msra.mxu0 0
  %2590 = vmatprep.subr.bf16.mxu0 0
  %2591 = vmatpush1.bf16.msra.mxu0 0
  %2592 = vmatprep.subr.bf16.mxu0 0
  %2593 = vmatpush1.bf16.msra.mxu0 0
  %2594 = vmatprep.subr.bf16.mxu0 0
  %2595 = vmatpush1.bf16.msra.mxu0 0
  %2596 = vmatprep.subr.bf16.mxu0 0
  %2597 = vmatpush1.bf16.msra.mxu0 0
  %2598 = vmatprep.mubr.bf16.mxu0 0
  %2599 = vmatmul.mubr.bf16.gmra.mrb[0].mxu0 %v2561
  %v2600 = vpop.f32.mrb[0].mxu0
  %v2601 = vadd.f32 0.0, %v2600
  %v2602 = vpop.f32.mrb[0].mxu0
  %v2603 = vpop.f32.mrb[0].mxu0
  %v2604 = vadd.f32 0.0, %v2603
  %v2605 = vpop.f32.mrb[0].mxu0
  %2606 = vmatprep.mubr.bf16.mxu0 0
  %2607 = vmatmul.mubr.bf16.gmra.mrb[0].mxu0 %v2564
  %v2608 = vpop.f32.mrb[0].mxu0
  %v2609 = vadd.f32 0.0, %v2608
  %v2610 = vpop.f32.mrb[0].mxu0
  %v2611 = vpop.f32.mrb[0].mxu0
  %v2612 = vadd.f32 0.0, %v2611
  %v2613 = vpop.f32.mrb[0].mxu0
  %2614 = vdwg.mxu0
  %v2615 = vpack.c.bf16 %v2604, %v2601
  %v2616 = vpack.c.bf16 %v2612, %v2609
  %2619 = vrot.lane.b32.xlu0 %v2615, 64
  %v2620 = vpop.permute.xlu0 %2619
  %2621 = vrot.lane.b32.xlu0 %v2616, 64
  %v2622 = vpop.permute.xlu0 %2621
  %2625 = vst.msk [vmem:[#allocation2] sm:$0xff] %vm1784, %v2620
  %2626 = vst.msk [vmem:[#allocation2 + $0x10] sm:$0xff] %vm1784, %v2622
  %v2627 = vld [vmem:[#allocation2] sm:$0xff]
  %v2628 = vld [vmem:[#allocation2 + $0x10] sm:$0xff]
  %v2629 = vld [vmem:[%s8] sm:$0xf]
  %v2630 = vld [vmem:[%s8 + $0x4] sm:$0xf]
  %v2631 = vld [vmem:[%s8 + $0x8] sm:$0xf]
  %v2632 = vld [vmem:[%s8 + $0xc] sm:$0xf]
  %v2633 = vld [vmem:[%s8 + $0x10] sm:$0xf]
  %v2634 = vld [vmem:[%s8 + $0x14] sm:$0xf]
  %v2635 = vld [vmem:[%s8 + $0x18] sm:$0xf]
  %v2636 = vld [vmem:[%s8 + $0x1c] sm:$0xf]
  %v2637 = vld [vmem:[%s8 + $0x20] sm:$0xf]
  %v2638 = vld [vmem:[%s9] sm:$0x1]
  %v2640 = vlaneseq
  %v2641 = vshrl.u32 %v2640, 7
  %v2642 = vsub.s32 0, %v2641
  %v2643 = vrot.slane %v2638, %v2642
  %v2654 = vunpack.c.l.b16 %v2629
  %v2655 = vunpack.c.l.b16 %v2630
  %v2656 = vunpack.c.l.b16 %v2631
  %v2657 = vunpack.c.l.b16 %v2632
  %v2658 = vunpack.c.l.b16 %v2633
  %v2659 = vunpack.c.l.b16 %v2634
  %v2660 = vunpack.c.l.b16 %v2635
  %v2661 = vunpack.c.l.b16 %v2636
  %v2662 = vunpack.c.l.b16 %v2637
  %v2663 = vpack.c.b16 %v2655, %v2654
  %v2664 = vpack.c.b16 %v2657, %v2656
  %v2665 = vpack.c.b16 %v2659, %v2658
  %v2666 = vpack.c.b16 %v2661, %v2660
  %v2667 = vpack.c.b16 %v2662, %v2662
  %v2673 = vsel %vm1832, %v2627, 0
  %v2676 = vsel %vm1832, %v2628, 0
  %v2679 = vsel %vm1839, %v2667, 0
  %2681 = vmatprep.subr.bf16.mxu0 0
  %2682 = vmatpush1.bf16.msra.mxu0 %v2663
  %2683 = vmatprep.subr.bf16.mxu0 0
  %2684 = vmatpush1.bf16.msra.mxu0 %v2664
  %2685 = vmatprep.subr.bf16.mxu0 0
  %2686 = vmatpush1.bf16.msra.mxu0 %v2665
  %2687 = vmatprep.subr.bf16.mxu0 0
  %2688 = vmatpush1.bf16.msra.mxu0 %v2666
  %2689 = vmatprep.subr.bf16.mxu0 0
  %2690 = vmatpush1.bf16.msra.mxu0 %v2679
  %2691 = vmatprep.subr.bf16.mxu0 0
  %2692 = vmatpush1.bf16.msra.mxu0 0
  %2693 = vmatprep.subr.bf16.mxu0 0
  %2694 = vmatpush1.bf16.msra.mxu0 0
  %2695 = vmatprep.subr.bf16.mxu0 0
  %2696 = vmatpush1.bf16.msra.mxu0 0
  %2697 = vmatprep.subr.bf16.mxu0 0
  %2698 = vmatpush1.bf16.msra.mxu0 0
  %2699 = vmatprep.subr.bf16.mxu0 0
  %2700 = vmatpush1.bf16.msra.mxu0 0
  %2701 = vmatprep.subr.bf16.mxu0 0
  %2702 = vmatpush1.bf16.msra.mxu0 0
  %2703 = vmatprep.subr.bf16.mxu0 0
  %2704 = vmatpush1.bf16.msra.mxu0 0
  %2705 = vmatprep.subr.bf16.mxu0 0
  %2706 = vmatpush1.bf16.msra.mxu0 0
  %2707 = vmatprep.subr.bf16.mxu0 0
  %2708 = vmatpush1.bf16.msra.mxu0 0
  %2709 = vmatprep.subr.bf16.mxu0 0
  %2710 = vmatpush1.bf16.msra.mxu0 0
  %2711 = vmatprep.subr.bf16.mxu0 0
  %2712 = vmatpush1.bf16.msra.mxu0 0
  %2713 = vmatprep.mubr.bf16.mxu0 0
  %2714 = vmatmul.mubr.bf16.gmra.mrb[0].mxu0 %v2673
  %v2715 = vpop.f32.mrb[0].mxu0
  %v2716 = vadd.f32 %v2643, %v2715
  %v2717 = vpop.f32.mrb[0].mxu0
  %v2718 = vpop.f32.mrb[0].mxu0
  %v2719 = vadd.f32 %v2643, %v2718
  %v2720 = vpop.f32.mrb[0].mxu0
  %2721 = vmatprep.mubr.bf16.mxu0 0
  %2722 = vmatmul.mubr.bf16.gmra.mrb[0].mxu0 %v2676
  %v2723 = vpop.f32.mrb[0].mxu0
  %v2724 = vadd.f32 %v2643, %v2723
  %v2725 = vpop.f32.mrb[0].mxu0
  %v2726 = vpop.f32.mrb[0].mxu0
  %v2727 = vadd.f32 %v2643, %v2726
  %v2728 = vpop.f32.mrb[0].mxu0
  %2729 = vdwg.mxu0
  %v2730 = vunpack.c.l.bf16 %v1046
  %v2731 = vunpack.c.h.bf16 %v1046
  %v2732 = vunpack.c.l.bf16 %v1047
  %v2733 = vunpack.c.h.bf16 %v1047
  %v2734 = vadd.f32 %v2716, %v2730
  %v2735 = vadd.f32 %v2719, %v2731
  %v2736 = vadd.f32 %v2724, %v2732
  %v2737 = vadd.f32 %v2727, %v2733
  %v2738 = vmax.f32 %v2734, 0.0
  %v2739 = vmax.f32 %v2735, 0.0
  %v2740 = vmax.f32 %v2736, 0.0
  %v2741 = vmax.f32 %v2737, 0.0
  %v2742 = vpack.c.bf16 %v2739, %v2738
  %v2743 = vpack.c.bf16 %v2741, %v2740
  %v2744 = vld [vmem:[%s10] sm:$0xf]
  %v2746 = vsel %vm1062, %v2744, 0
  %2748 = vmatprep.subr.bf16.mxu0 0
  %2749 = vmatpush1.bf16.msra.mxu0 %v2742
  %2750 = vmatprep.subr.bf16.mxu0 0
  %2751 = vmatpush1.bf16.msra.mxu0 %v2743
  %2752 = vmatprep.subr.bf16.mxu0 0
  %2753 = vmatpush1.bf16.msra.mxu0 0
  %2754 = vmatprep.subr.bf16.mxu0 0
  %2755 = vmatpush1.bf16.msra.mxu0 0
  %2756 = vmatprep.subr.bf16.mxu0 0
  %2757 = vmatpush1.bf16.msra.mxu0 0
  %2758 = vmatprep.subr.bf16.mxu0 0
  %2759 = vmatpush1.bf16.msra.mxu0 0
  %2760 = vmatprep.subr.bf16.mxu0 0
  %2761 = vmatpush1.bf16.msra.mxu0 0
  %2762 = vmatprep.subr.bf16.mxu0 0
  %2763 = vmatpush1.bf16.msra.mxu0 0
  %2764 = vmatprep.subr.bf16.mxu0 0
  %2765 = vmatpush1.bf16.msra.mxu0 0
  %2766 = vmatprep.subr.bf16.mxu0 0
  %2767 = vmatpush1.bf16.msra.mxu0 0
  %2768 = vmatprep.subr.bf16.mxu0 0
  %2769 = vmatpush1.bf16.msra.mxu0 0
  %2770 = vmatprep.subr.bf16.mxu0 0
  %2771 = vmatpush1.bf16.msra.mxu0 0
  %2772 = vmatprep.subr.bf16.mxu0 0
  %2773 = vmatpush1.bf16.msra.mxu0 0
  %2774 = vmatprep.subr.bf16.mxu0 0
  %2775 = vmatpush1.bf16.msra.mxu0 0
  %2776 = vmatprep.subr.bf16.mxu0 0
  %2777 = vmatpush1.bf16.msra.mxu0 0
  %2778 = vmatprep.subr.bf16.mxu0 0
  %2779 = vmatpush1.bf16.msra.mxu0 0
  %2780 = vmatprep.mubr.bf16.mxu0 0
  %2781 = vmatmul.mubr.bf16.gmra.mrb[0].mxu0 %v2746
  %v2782 = vpop.f32.mrb[0].mxu0
  %v2783 = vadd.f32 0.0, %v2782
  %v2784 = vpop.f32.mrb[0].mxu0
  %v2785 = vpop.f32.mrb[0].mxu0
  %v2786 = vpop.f32.mrb[0].mxu0
  %2787 = vdwg.mxu0
  %v2788 = vpack.c.bf16 %v2783, %v2783
  %vm2789 = vcmask 60416
  %2790 = vst.msk [vmem:[#allocation2] sm:$0xf] %vm2789, %v2788
  %s2791 = scalar_lea.vmem %s10, 4
  %v2792 = vld [vmem:[%s2791] sm:$0xf]
  %v2794 = vsel %vm1062, %v2792, 0
  %2796 = vmatprep.subr.bf16.mxu0 0
  %2797 = vmatpush1.bf16.msra.mxu0 %v2742
  %2798 = vmatprep.subr.bf16.mxu0 0
  %2799 = vmatpush1.bf16.msra.mxu0 %v2743
  %2800 = vmatprep.subr.bf16.mxu0 0
  %2801 = vmatpush1.bf16.msra.mxu0 0
  %2802 = vmatprep.subr.bf16.mxu0 0
  %2803 = vmatpush1.bf16.msra.mxu0 0
  %2804 = vmatprep.subr.bf16.mxu0 0
  %2805 = vmatpush1.bf16.msra.mxu0 0
  %2806 = vmatprep.subr.bf16.mxu0 0
  %2807 = vmatpush1.bf16.msra.mxu0 0
  %2808 = vmatprep.subr.bf16.mxu0 0
  %2809 = vmatpush1.bf16.msra.mxu0 0
  %2810 = vmatprep.subr.bf16.mxu0 0
  %2811 = vmatpush1.bf16.msra.mxu0 0
  %2812 = vmatprep.subr.bf16.mxu0 0
  %2813 = vmatpush1.bf16.msra.mxu0 0
  %2814 = vmatprep.subr.bf16.mxu0 0
  %2815 = vmatpush1.bf16.msra.mxu0 0
  %2816 = vmatprep.subr.bf16.mxu0 0
  %2817 = vmatpush1.bf16.msra.mxu0 0
  %2818 = vmatprep.subr.bf16.mxu0 0
  %2819 = vmatpush1.bf16.msra.mxu0 0
  %2820 = vmatprep.subr.bf16.mxu0 0
  %2821 = vmatpush1.bf16.msra.mxu0 0
  %2822 = vmatprep.subr.bf16.mxu0 0
  %2823 = vmatpush1.bf16.msra.mxu0 0
  %2824 = vmatprep.subr.bf16.mxu0 0
  %2825 = vmatpush1.bf16.msra.mxu0 0
  %2826 = vmatprep.subr.bf16.mxu0 0
  %2827 = vmatpush1.bf16.msra.mxu0 0
  %2828 = vmatprep.mubr.bf16.mxu0 0
  %2829 = vmatmul.mubr.bf16.gmra.mrb[0].mxu0 %v2794
  %v2830 = vpop.f32.mrb[0].mxu0
  %v2831 = vadd.f32 0.0, %v2830
  %v2832 = vpop.f32.mrb[0].mxu0
  %v2833 = vpop.f32.mrb[0].mxu0
  %v2834 = vpop.f32.mrb[0].mxu0
  %2835 = vdwg.mxu0
  %v2836 = vpack.c.bf16 %v2831, %v2831
  %2838 = vrot.lane.b32.xlu0 %v2836, 8
  %v2839 = vpop.permute.xlu0 %2838
  %vm2841 = vcmask 126016
  %2842 = vst.msk [vmem:[#allocation2] sm:$0xf] %vm2841, %v2839
  %s2843 = scalar_lea.vmem %s10, 8
  %v2844 = vld [vmem:[%s2843] sm:$0xf]
  %v2846 = vsel %vm1062, %v2844, 0
  %2848 = vmatprep.subr.bf16.mxu0 0
  %2849 = vmatpush1.bf16.msra.mxu0 %v2742
  %2850 = vmatprep.subr.bf16.mxu0 0
  %2851 = vmatpush1.bf16.msra.mxu0 %v2743
  %2852 = vmatprep.subr.bf16.mxu0 0
  %2853 = vmatpush1.bf16.msra.mxu0 0
  %2854 = vmatprep.subr.bf16.mxu0 0
  %2855 = vmatpush1.bf16.msra.mxu0 0
  %2856 = vmatprep.subr.bf16.mxu0 0
  %2857 = vmatpush1.bf16.msra.mxu0 0
  %2858 = vmatprep.subr.bf16.mxu0 0
  %2859 = vmatpush1.bf16.msra.mxu0 0
  %2860 = vmatprep.subr.bf16.mxu0 0
  %2861 = vmatpush1.bf16.msra.mxu0 0
  %2862 = vmatprep.subr.bf16.mxu0 0
  %2863 = vmatpush1.bf16.msra.mxu0 0
  %2864 = vmatprep.subr.bf16.mxu0 0
  %2865 = vmatpush1.bf16.msra.mxu0 0
  %2866 = vmatprep.subr.bf16.mxu0 0
  %2867 = vmatpush1.bf16.msra.mxu0 0
  %2868 = vmatprep.subr.bf16.mxu0 0
  %2869 = vmatpush1.bf16.msra.mxu0 0
  %2870 = vmatprep.subr.bf16.mxu0 0
  %2871 = vmatpush1.bf16.msra.mxu0 0
  %2872 = vmatprep.subr.bf16.mxu0 0
  %2873 = vmatpush1.bf16.msra.mxu0 0
  %2874 = vmatprep.subr.bf16.mxu0 0
  %2875 = vmatpush1.bf16.msra.mxu0 0
  %2876 = vmatprep.subr.bf16.mxu0 0
  %2877 = vmatpush1.bf16.msra.mxu0 0
  %2878 = vmatprep.subr.bf16.mxu0 0
  %2879 = vmatpush1.bf16.msra.mxu0 0
  %2880 = vmatprep.mubr.bf16.mxu0 0
  %2881 = vmatmul.mubr.bf16.gmra.mrb[0].mxu0 %v2846
  %v2882 = vpop.f32.mrb[0].mxu0
  %v2883 = vadd.f32 0.0, %v2882
  %v2884 = vpop.f32.mrb[0].mxu0
  %v2885 = vpop.f32.mrb[0].mxu0
  %v2886 = vpop.f32.mrb[0].mxu0
  %2887 = vdwg.mxu0
  %v2888 = vpack.c.bf16 %v2883, %v2883
  %2890 = vrot.lane.b32.xlu0 %v2888, 16
  %v2891 = vpop.permute.xlu0 %2890
  %vm2893 = vcmask 191616
  %2894 = vst.msk [vmem:[#allocation2] sm:$0xf] %vm2893, %v2891
  %s2895 = scalar_lea.vmem %s10, 12
  %v2896 = vld [vmem:[%s2895] sm:$0xf]
  %v2898 = vsel %vm1062, %v2896, 0
  %2900 = vmatprep.subr.bf16.mxu0 0
  %2901 = vmatpush1.bf16.msra.mxu0 %v2742
  %2902 = vmatprep.subr.bf16.mxu0 0
  %2903 = vmatpush1.bf16.msra.mxu0 %v2743
  %2904 = vmatprep.subr.bf16.mxu0 0
  %2905 = vmatpush1.bf16.msra.mxu0 0
  %2906 = vmatprep.subr.bf16.mxu0 0
  %2907 = vmatpush1.bf16.msra.mxu0 0
  %2908 = vmatprep.subr.bf16.mxu0 0
  %2909 = vmatpush1.bf16.msra.mxu0 0
  %2910 = vmatprep.subr.bf16.mxu0 0
  %2911 = vmatpush1.bf16.msra.mxu0 0
  %2912 = vmatprep.subr.bf16.mxu0 0
  %2913 = vmatpush1.bf16.msra.mxu0 0
  %2914 = vmatprep.subr.bf16.mxu0 0
  %2915 = vmatpush1.bf16.msra.mxu0 0
  %2916 = vmatprep.subr.bf16.mxu0 0
  %2917 = vmatpush1.bf16.msra.mxu0 0
  %2918 = vmatprep.subr.bf16.mxu0 0
  %2919 = vmatpush1.bf16.msra.mxu0 0
  %2920 = vmatprep.subr.bf16.mxu0 0
  %2921 = vmatpush1.bf16.msra.mxu0 0
  %2922 = vmatprep.subr.bf16.mxu0 0
  %2923 = vmatpush1.bf16.msra.mxu0 0
  %2924 = vmatprep.subr.bf16.mxu0 0
  %2925 = vmatpush1.bf16.msra.mxu0 0
  %2926 = vmatprep.subr.bf16.mxu0 0
  %2927 = vmatpush1.bf16.msra.mxu0 0
  %2928 = vmatprep.subr.bf16.mxu0 0
  %2929 = vmatpush1.bf16.msra.mxu0 0
  %2930 = vmatprep.subr.bf16.mxu0 0
  %2931 = vmatpush1.bf16.msra.mxu0 0
  %2932 = vmatprep.mubr.bf16.mxu0 0
  %2933 = vmatmul.mubr.bf16.gmra.mrb[0].mxu0 %v2898
  %v2934 = vpop.f32.mrb[0].mxu0
  %v2935 = vadd.f32 0.0, %v2934
  %v2936 = vpop.f32.mrb[0].mxu0
  %v2937 = vpop.f32.mrb[0].mxu0
  %v2938 = vpop.f32.mrb[0].mxu0
  %2939 = vdwg.mxu0
  %v2940 = vpack.c.bf16 %v2935, %v2935
  %2942 = vrot.lane.b32.xlu0 %v2940, 24
  %v2943 = vpop.permute.xlu0 %2942
  %vm2945 = vcmask 257216
  %2946 = vst.msk [vmem:[#allocation2] sm:$0xf] %vm2945, %v2943
  %s2947 = scalar_lea.vmem %s10, 16
  %v2948 = vld [vmem:[%s2947] sm:$0xf]
  %v2950 = vsel %vm1062, %v2948, 0
  %2952 = vmatprep.subr.bf16.mxu0 0
  %2953 = vmatpush1.bf16.msra.mxu0 %v2742
  %2954 = vmatprep.subr.bf16.mxu0 0
  %2955 = vmatpush1.bf16.msra.mxu0 %v2743
  %2956 = vmatprep.subr.bf16.mxu0 0
  %2957 = vmatpush1.bf16.msra.mxu0 0
  %2958 = vmatprep.subr.bf16.mxu0 0
  %2959 = vmatpush1.bf16.msra.mxu0 0
  %2960 = vmatprep.subr.bf16.mxu0 0
  %2961 = vmatpush1.bf16.msra.mxu0 0
  %2962 = vmatprep.subr.bf16.mxu0 0
  %2963 = vmatpush1.bf16.msra.mxu0 0
  %2964 = vmatprep.subr.bf16.mxu0 0
  %2965 = vmatpush1.bf16.msra.mxu0 0
  %2966 = vmatprep.subr.bf16.mxu0 0
  %2967 = vmatpush1.bf16.msra.mxu0 0
  %2968 = vmatprep.subr.bf16.mxu0 0
  %2969 = vmatpush1.bf16.msra.mxu0 0
  %2970 = vmatprep.subr.bf16.mxu0 0
  %2971 = vmatpush1.bf16.msra.mxu0 0
  %2972 = vmatprep.subr.bf16.mxu0 0
  %2973 = vmatpush1.bf16.msra.mxu0 0
  %2974 = vmatprep.subr.bf16.mxu0 0
  %2975 = vmatpush1.bf16.msra.mxu0 0
  %2976 = vmatprep.subr.bf16.mxu0 0
  %2977 = vmatpush1.bf16.msra.mxu0 0
  %2978 = vmatprep.subr.bf16.mxu0 0
  %2979 = vmatpush1.bf16.msra.mxu0 0
  %2980 = vmatprep.subr.bf16.mxu0 0
  %2981 = vmatpush1.bf16.msra.mxu0 0
  %2982 = vmatprep.subr.bf16.mxu0 0
  %2983 = vmatpush1.bf16.msra.mxu0 0
  %2984 = vmatprep.mubr.bf16.mxu0 0
  %2985 = vmatmul.mubr.bf16.gmra.mrb[0].mxu0 %v2950
  %v2986 = vpop.f32.mrb[0].mxu0
  %v2987 = vadd.f32 0.0, %v2986
  %v2988 = vpop.f32.mrb[0].mxu0
  %v2989 = vpop.f32.mrb[0].mxu0
  %v2990 = vpop.f32.mrb[0].mxu0
  %2991 = vdwg.mxu0
  %v2992 = vpack.c.bf16 %v2987, %v2987
  %2994 = vrot.lane.b32.xlu0 %v2992, 32
  %v2995 = vpop.permute.xlu0 %2994
  %vm2997 = vcmask 322816
  %2998 = vst.msk [vmem:[#allocation2] sm:$0xf] %vm2997, %v2995
  %s2999 = scalar_lea.vmem %s10, 20
  %v3000 = vld [vmem:[%s2999] sm:$0xf]
  %v3002 = vsel %vm1062, %v3000, 0
  %3004 = vmatprep.subr.bf16.mxu0 0
  %3005 = vmatpush1.bf16.msra.mxu0 %v2742
  %3006 = vmatprep.subr.bf16.mxu0 0
  %3007 = vmatpush1.bf16.msra.mxu0 %v2743
  %3008 = vmatprep.subr.bf16.mxu0 0
  %3009 = vmatpush1.bf16.msra.mxu0 0
  %3010 = vmatprep.subr.bf16.mxu0 0
  %3011 = vmatpush1.bf16.msra.mxu0 0
  %3012 = vmatprep.subr.bf16.mxu0 0
  %3013 = vmatpush1.bf16.msra.mxu0 0
  %3014 = vmatprep.subr.bf16.mxu0 0
  %3015 = vmatpush1.bf16.msra.mxu0 0
  %3016 = vmatprep.subr.bf16.mxu0 0
  %3017 = vmatpush1.bf16.msra.mxu0 0
  %3018 = vmatprep.subr.bf16.mxu0 0
  %3019 = vmatpush1.bf16.msra.mxu0 0
  %3020 = vmatprep.subr.bf16.mxu0 0
  %3021 = vmatpush1.bf16.msra.mxu0 0
  %3022 = vmatprep.subr.bf16.mxu0 0
  %3023 = vmatpush1.bf16.msra.mxu0 0
  %3024 = vmatprep.subr.bf16.mxu0 0
  %3025 = vmatpush1.bf16.msra.mxu0 0
  %3026 = vmatprep.subr.bf16.mxu0 0
  %3027 = vmatpush1.bf16.msra.mxu0 0
  %3028 = vmatprep.subr.bf16.mxu0 0
  %3029 = vmatpush1.bf16.msra.mxu0 0
  %3030 = vmatprep.subr.bf16.mxu0 0
  %3031 = vmatpush1.bf16.msra.mxu0 0
  %3032 = vmatprep.subr.bf16.mxu0 0
  %3033 = vmatpush1.bf16.msra.mxu0 0
  %3034 = vmatprep.subr.bf16.mxu0 0
  %3035 = vmatpush1.bf16.msra.mxu0 0
  %3036 = vmatprep.mubr.bf16.mxu0 0
  %3037 = vmatmul.mubr.bf16.gmra.mrb[0].mxu0 %v3002
  %v3038 = vpop.f32.mrb[0].mxu0
  %v3039 = vadd.f32 0.0, %v3038
  %v3040 = vpop.f32.mrb[0].mxu0
  %v3041 = vpop.f32.mrb[0].mxu0
  %v3042 = vpop.f32.mrb[0].mxu0
  %3043 = vdwg.mxu0
  %v3044 = vpack.c.bf16 %v3039, %v3039
  %3046 = vrot.lane.b32.xlu0 %v3044, 40
  %v3047 = vpop.permute.xlu0 %3046
  %vm3049 = vcmask 388416
  %3050 = vst.msk [vmem:[#allocation2] sm:$0xf] %vm3049, %v3047
  %s3051 = scalar_lea.vmem %s10, 24
  %v3052 = vld [vmem:[%s3051] sm:$0xf]
  %v3054 = vsel %vm1062, %v3052, 0
  %3056 = vmatprep.subr.bf16.mxu0 0
  %3057 = vmatpush1.bf16.msra.mxu0 %v2742
  %3058 = vmatprep.subr.bf16.mxu0 0
  %3059 = vmatpush1.bf16.msra.mxu0 %v2743
  %3060 = vmatprep.subr.bf16.mxu0 0
  %3061 = vmatpush1.bf16.msra.mxu0 0
  %3062 = vmatprep.subr.bf16.mxu0 0
  %3063 = vmatpush1.bf16.msra.mxu0 0
  %3064 = vmatprep.subr.bf16.mxu0 0
  %3065 = vmatpush1.bf16.msra.mxu0 0
  %3066 = vmatprep.subr.bf16.mxu0 0
  %3067 = vmatpush1.bf16.msra.mxu0 0
  %3068 = vmatprep.subr.bf16.mxu0 0
  %3069 = vmatpush1.bf16.msra.mxu0 0
  %3070 = vmatprep.subr.bf16.mxu0 0
  %3071 = vmatpush1.bf16.msra.mxu0 0
  %3072 = vmatprep.subr.bf16.mxu0 0
  %3073 = vmatpush1.bf16.msra.mxu0 0
  %3074 = vmatprep.subr.bf16.mxu0 0
  %3075 = vmatpush1.bf16.msra.mxu0 0
  %3076 = vmatprep.subr.bf16.mxu0 0
  %3077 = vmatpush1.bf16.msra.mxu0 0
  %3078 = vmatprep.subr.bf16.mxu0 0
  %3079 = vmatpush1.bf16.msra.mxu0 0
  %3080 = vmatprep.subr.bf16.mxu0 0
  %3081 = vmatpush1.bf16.msra.mxu0 0
  %3082 = vmatprep.subr.bf16.mxu0 0
  %3083 = vmatpush1.bf16.msra.mxu0 0
  %3084 = vmatprep.subr.bf16.mxu0 0
  %3085 = vmatpush1.bf16.msra.mxu0 0
  %3086 = vmatprep.subr.bf16.mxu0 0
  %3087 = vmatpush1.bf16.msra.mxu0 0
  %3088 = vmatprep.mubr.bf16.mxu0 0
  %3089 = vmatmul.mubr.bf16.gmra.mrb[0].mxu0 %v3054
  %v3090 = vpop.f32.mrb[0].mxu0
  %v3091 = vadd.f32 0.0, %v3090
  %v3092 = vpop.f32.mrb[0].mxu0
  %v3093 = vpop.f32.mrb[0].mxu0
  %v3094 = vpop.f32.mrb[0].mxu0
  %3095 = vdwg.mxu0
  %v3096 = vpack.c.bf16 %v3091, %v3091
  %3098 = vrot.lane.b32.xlu0 %v3096, 48
  %v3099 = vpop.permute.xlu0 %3098
  %vm3101 = vcmask 454016
  %3102 = vst.msk [vmem:[#allocation2] sm:$0xf] %vm3101, %v3099
  %s3103 = scalar_lea.vmem %s10, 28
  %v3104 = vld [vmem:[%s3103] sm:$0xf]
  %v3106 = vsel %vm1062, %v3104, 0
  %3108 = vmatprep.subr.bf16.mxu0 0
  %3109 = vmatpush1.bf16.msra.mxu0 %v2742
  %3110 = vmatprep.subr.bf16.mxu0 0
  %3111 = vmatpush1.bf16.msra.mxu0 %v2743
  %3112 = vmatprep.subr.bf16.mxu0 0
  %3113 = vmatpush1.bf16.msra.mxu0 0
  %3114 = vmatprep.subr.bf16.mxu0 0
  %3115 = vmatpush1.bf16.msra.mxu0 0
  %3116 = vmatprep.subr.bf16.mxu0 0
  %3117 = vmatpush1.bf16.msra.mxu0 0
  %3118 = vmatprep.subr.bf16.mxu0 0
  %3119 = vmatpush1.bf16.msra.mxu0 0
  %3120 = vmatprep.subr.bf16.mxu0 0
  %3121 = vmatpush1.bf16.msra.mxu0 0
  %3122 = vmatprep.subr.bf16.mxu0 0
  %3123 = vmatpush1.bf16.msra.mxu0 0
  %3124 = vmatprep.subr.bf16.mxu0 0
  %3125 = vmatpush1.bf16.msra.mxu0 0
  %3126 = vmatprep.subr.bf16.mxu0 0
  %3127 = vmatpush1.bf16.msra.mxu0 0
  %3128 = vmatprep.subr.bf16.mxu0 0
  %3129 = vmatpush1.bf16.msra.mxu0 0
  %3130 = vmatprep.subr.bf16.mxu0 0
  %3131 = vmatpush1.bf16.msra.mxu0 0
  %3132 = vmatprep.subr.bf16.mxu0 0
  %3133 = vmatpush1.bf16.msra.mxu0 0
  %3134 = vmatprep.subr.bf16.mxu0 0
  %3135 = vmatpush1.bf16.msra.mxu0 0
  %3136 = vmatprep.subr.bf16.mxu0 0
  %3137 = vmatpush1.bf16.msra.mxu0 0
  %3138 = vmatprep.subr.bf16.mxu0 0
  %3139 = vmatpush1.bf16.msra.mxu0 0
  %3140 = vmatprep.mubr.bf16.mxu0 0
  %3141 = vmatmul.mubr.bf16.gmra.mrb[0].mxu0 %v3106
  %v3142 = vpop.f32.mrb[0].mxu0
  %v3143 = vadd.f32 0.0, %v3142
  %v3144 = vpop.f32.mrb[0].mxu0
  %v3145 = vpop.f32.mrb[0].mxu0
  %v3146 = vpop.f32.mrb[0].mxu0
  %3147 = vdwg.mxu0
  %v3148 = vpack.c.bf16 %v3143, %v3143
  %3150 = vrot.lane.b32.xlu0 %v3148, 56
  %v3151 = vpop.permute.xlu0 %3150
  %vm3153 = vcmask 519616
  %3154 = vst.msk [vmem:[#allocation2] sm:$0xf] %vm3153, %v3151
  %s3155 = scalar_lea.vmem %s10, 32
  %v3156 = vld [vmem:[%s3155] sm:$0xf]
  %v3158 = vsel %vm1062, %v3156, 0
  %3160 = vmatprep.subr.bf16.mxu0 0
  %3161 = vmatpush1.bf16.msra.mxu0 %v2742
  %3162 = vmatprep.subr.bf16.mxu0 0
  %3163 = vmatpush1.bf16.msra.mxu0 %v2743
  %3164 = vmatprep.subr.bf16.mxu0 0
  %3165 = vmatpush1.bf16.msra.mxu0 0
  %3166 = vmatprep.subr.bf16.mxu0 0
  %3167 = vmatpush1.bf16.msra.mxu0 0
  %3168 = vmatprep.subr.bf16.mxu0 0
  %3169 = vmatpush1.bf16.msra.mxu0 0
  %3170 = vmatprep.subr.bf16.mxu0 0
  %3171 = vmatpush1.bf16.msra.mxu0 0
  %3172 = vmatprep.subr.bf16.mxu0 0
  %3173 = vmatpush1.bf16.msra.mxu0 0
  %3174 = vmatprep.subr.bf16.mxu0 0
  %3175 = vmatpush1.bf16.msra.mxu0 0
  %3176 = vmatprep.subr.bf16.mxu0 0
  %3177 = vmatpush1.bf16.msra.mxu0 0
  %3178 = vmatprep.subr.bf16.mxu0 0
  %3179 = vmatpush1.bf16.msra.mxu0 0
  %3180 = vmatprep.subr.bf16.mxu0 0
  %3181 = vmatpush1.bf16.msra.mxu0 0
  %3182 = vmatprep.subr.bf16.mxu0 0
  %3183 = vmatpush1.bf16.msra.mxu0 0
  %3184 = vmatprep.subr.bf16.mxu0 0
  %3185 = vmatpush1.bf16.msra.mxu0 0
  %3186 = vmatprep.subr.bf16.mxu0 0
  %3187 = vmatpush1.bf16.msra.mxu0 0
  %3188 = vmatprep.subr.bf16.mxu0 0
  %3189 = vmatpush1.bf16.msra.mxu0 0
  %3190 = vmatprep.subr.bf16.mxu0 0
  %3191 = vmatpush1.bf16.msra.mxu0 0
  %3192 = vmatprep.mubr.bf16.mxu0 0
  %3193 = vmatmul.mubr.bf16.gmra.mrb[0].mxu0 %v3158
  %v3194 = vpop.f32.mrb[0].mxu0
  %v3195 = vadd.f32 0.0, %v3194
  %v3196 = vpop.f32.mrb[0].mxu0
  %v3197 = vpop.f32.mrb[0].mxu0
  %v3198 = vpop.f32.mrb[0].mxu0
  %3199 = vdwg.mxu0
  %v3200 = vpack.c.bf16 %v3195, %v3195
  %3202 = vrot.lane.b32.xlu0 %v3200, 64
  %v3203 = vpop.permute.xlu0 %3202
  %vm3205 = vcmask 585216
  %3206 = vst.msk [vmem:[#allocation2] sm:$0xf] %vm3205, %v3203
  %v3207 = vld [vmem:[#allocation2] sm:$0xf]
  %v3208 = vld [vmem:[%s12] sm:$0xf]
  %v3209 = vld [vmem:[%s12 + $0x4] sm:$0xf]
  %v3210 = vld [vmem:[%s12 + $0x8] sm:$0xf]
  %v3211 = vld [vmem:[%s12 + $0xc] sm:$0xf]
  %v3212 = vld [vmem:[%s12 + $0x10] sm:$0xf]
  %v3213 = vld [vmem:[%s12 + $0x14] sm:$0xf]
  %v3214 = vld [vmem:[%s12 + $0x18] sm:$0xf]
  %v3215 = vld [vmem:[%s12 + $0x1c] sm:$0xf]
  %v3216 = vld [vmem:[%s12 + $0x20] sm:$0xf]
  %v3217 = vld [vmem:[%s13] sm:$0x1]
  %v3219 = vlaneseq
  %v3220 = vshrl.u32 %v3219, 7
  %v3221 = vsub.s32 0, %v3220
  %v3222 = vrot.slane %v3217, %v3221
  %v3233 = vunpack.c.l.b16 %v3208
  %v3234 = vunpack.c.l.b16 %v3209
  %v3235 = vunpack.c.l.b16 %v3210
  %v3236 = vunpack.c.l.b16 %v3211
  %v3237 = vunpack.c.l.b16 %v3212
  %v3238 = vunpack.c.l.b16 %v3213
  %v3239 = vunpack.c.l.b16 %v3214
  %v3240 = vunpack.c.l.b16 %v3215
  %v3241 = vunpack.c.l.b16 %v3216
  %v3242 = vpack.c.b16 %v3234, %v3233
  %v3243 = vpack.c.b16 %v3236, %v3235
  %v3244 = vpack.c.b16 %v3238, %v3237
  %v3245 = vpack.c.b16 %v3240, %v3239
  %v3246 = vpack.c.b16 %v3241, %v3241
  %v3252 = vsel %vm1832, %v3207, 0
  %v3255 = vsel %vm1839, %v3246, 0
  %3257 = vmatprep.subr.bf16.mxu0 0
  %3258 = vmatpush1.bf16.msra.mxu0 %v3242
  %3259 = vmatprep.subr.bf16.mxu0 0
  %3260 = vmatpush1.bf16.msra.mxu0 %v3243
  %3261 = vmatprep.subr.bf16.mxu0 0
  %3262 = vmatpush1.bf16.msra.mxu0 %v3244
  %3263 = vmatprep.subr.bf16.mxu0 0
  %3264 = vmatpush1.bf16.msra.mxu0 %v3245
  %3265 = vmatprep.subr.bf16.mxu0 0
  %3266 = vmatpush1.bf16.msra.mxu0 %v3255
  %3267 = vmatprep.subr.bf16.mxu0 0
  %3268 = vmatpush1.bf16.msra.mxu0 0
  %3269 = vmatprep.subr.bf16.mxu0 0
  %3270 = vmatpush1.bf16.msra.mxu0 0
  %3271 = vmatprep.subr.bf16.mxu0 0
  %3272 = vmatpush1.bf16.msra.mxu0 0
  %3273 = vmatprep.subr.bf16.mxu0 0
  %3274 = vmatpush1.bf16.msra.mxu0 0
  %3275 = vmatprep.subr.bf16.mxu0 0
  %3276 = vmatpush1.bf16.msra.mxu0 0
  %3277 = vmatprep.subr.bf16.mxu0 0
  %3278 = vmatpush1.bf16.msra.mxu0 0
  %3279 = vmatprep.subr.bf16.mxu0 0
  %3280 = vmatpush1.bf16.msra.mxu0 0
  %3281 = vmatprep.subr.bf16.mxu0 0
  %3282 = vmatpush1.bf16.msra.mxu0 0
  %3283 = vmatprep.subr.bf16.mxu0 0
  %3284 = vmatpush1.bf16.msra.mxu0 0
  %3285 = vmatprep.subr.bf16.mxu0 0
  %3286 = vmatpush1.bf16.msra.mxu0 0
  %3287 = vmatprep.subr.bf16.mxu0 0
  %3288 = vmatpush1.bf16.msra.mxu0 0
  %3289 = vmatprep.mubr.bf16.mxu0 0
  %3290 = vmatmul.mubr.bf16.gmra.mrb[0].mxu0 %v3252
  %v3291 = vpop.f32.mrb[0].mxu0
  %v3292 = vadd.f32 %v3222, %v3291
  %v3293 = vpop.f32.mrb[0].mxu0
  %v3294 = vpop.f32.mrb[0].mxu0
  %v3295 = vpop.f32.mrb[0].mxu0
  %3296 = vdwg.mxu0
  %v3297 = vmax.f32 %v3292, 0.0
  %v3298 = vpack.c.bf16 %v3297, %v3297
  %v3299 = vld [vmem:[%s11] sm:$0xf]
  %v3301 = vsel %vm1120, %v3299, 0
  %v3304 = vsel %vm1839, %v3298, 0
  %3306 = vmatprep.subr.bf16.mxu0 0
  %3307 = vmatpush1.bf16.msra.mxu0 %v3304
  %3308 = vmatprep.subr.bf16.mxu0 0
  %3309 = vmatpush1.bf16.msra.mxu0 0
  %3310 = vmatprep.subr.bf16.mxu0 0
  %3311 = vmatpush1.bf16.msra.mxu0 0
  %3312 = vmatprep.subr.bf16.mxu0 0
  %3313 = vmatpush1.bf16.msra.mxu0 0
  %3314 = vmatprep.subr.bf16.mxu0 0
  %3315 = vmatpush1.bf16.msra.mxu0 0
  %3316 = vmatprep.subr.bf16.mxu0 0
  %3317 = vmatpush1.bf16.msra.mxu0 0
  %3318 = vmatprep.subr.bf16.mxu0 0
  %3319 = vmatpush1.bf16.msra.mxu0 0
  %3320 = vmatprep.subr.bf16.mxu0 0
  %3321 = vmatpush1.bf16.msra.mxu0 0
  %3322 = vmatprep.subr.bf16.mxu0 0
  %3323 = vmatpush1.bf16.msra.mxu0 0
  %3324 = vmatprep.subr.bf16.mxu0 0
  %3325 = vmatpush1.bf16.msra.mxu0 0
  %3326 = vmatprep.subr.bf16.mxu0 0
  %3327 = vmatpush1.bf16.msra.mxu0 0
  %3328 = vmatprep.subr.bf16.mxu0 0
  %3329 = vmatpush1.bf16.msra.mxu0 0
  %3330 = vmatprep.subr.bf16.mxu0 0
  %3331 = vmatpush1.bf16.msra.mxu0 0
  %3332 = vmatprep.subr.bf16.mxu0 0
  %3333 = vmatpush1.bf16.msra.mxu0 0
  %3334 = vmatprep.subr.bf16.mxu0 0
  %3335 = vmatpush1.bf16.msra.mxu0 0
  %3336 = vmatprep.subr.bf16.mxu0 0
  %3337 = vmatpush1.bf16.msra.mxu0 0
  %3338 = vmatprep.mubr.bf16.mxu0 0
  %3339 = vmatmul.mubr.bf16.gmra.mrb[0].mxu0 %v3301
  %v3340 = vpop.f32.mrb[0].mxu0
  %v3341 = vadd.f32 0.0, %v3340
  %v3342 = vpop.f32.mrb[0].mxu0
  %v3343 = vpop.f32.mrb[0].mxu0
  %v3344 = vpop.f32.mrb[0].mxu0
  %3345 = vdwg.mxu0
  %v3346 = vpack.c.bf16 %v3341, %v3341
  %vm3347 = vcmask 125952
  %3348 = vst.msk [vmem:[#allocation2] sm:$0xf] %vm3347, %v3346
  %s3349 = scalar_lea.vmem %s11, 4
  %v3350 = vld [vmem:[%s3349] sm:$0xf]
  %v3352 = vsel %vm1120, %v3350, 0
  %3354 = vmatprep.subr.bf16.mxu0 0
  %3355 = vmatpush1.bf16.msra.mxu0 %v3304
  %3356 = vmatprep.subr.bf16.mxu0 0
  %3357 = vmatpush1.bf16.msra.mxu0 0
  %3358 = vmatprep.subr.bf16.mxu0 0
  %3359 = vmatpush1.bf16.msra.mxu0 0
  %3360 = vmatprep.subr.bf16.mxu0 0
  %3361 = vmatpush1.bf16.msra.mxu0 0
  %3362 = vmatprep.subr.bf16.mxu0 0
  %3363 = vmatpush1.bf16.msra.mxu0 0
  %3364 = vmatprep.subr.bf16.mxu0 0
  %3365 = vmatpush1.bf16.msra.mxu0 0
  %3366 = vmatprep.subr.bf16.mxu0 0
  %3367 = vmatpush1.bf16.msra.mxu0 0
  %3368 = vmatprep.subr.bf16.mxu0 0
  %3369 = vmatpush1.bf16.msra.mxu0 0
  %3370 = vmatprep.subr.bf16.mxu0 0
  %3371 = vmatpush1.bf16.msra.mxu0 0
  %3372 = vmatprep.subr.bf16.mxu0 0
  %3373 = vmatpush1.bf16.msra.mxu0 0
  %3374 = vmatprep.subr.bf16.mxu0 0
  %3375 = vmatpush1.bf16.msra.mxu0 0
  %3376 = vmatprep.subr.bf16.mxu0 0
  %3377 = vmatpush1.bf16.msra.mxu0 0
  %3378 = vmatprep.subr.bf16.mxu0 0
  %3379 = vmatpush1.bf16.msra.mxu0 0
  %3380 = vmatprep.subr.bf16.mxu0 0
  %3381 = vmatpush1.bf16.msra.mxu0 0
  %3382 = vmatprep.subr.bf16.mxu0 0
  %3383 = vmatpush1.bf16.msra.mxu0 0
  %3384 = vmatprep.subr.bf16.mxu0 0
  %3385 = vmatpush1.bf16.msra.mxu0 0
  %3386 = vmatprep.mubr.bf16.mxu0 0
  %3387 = vmatmul.mubr.bf16.gmra.mrb[0].mxu0 %v3352
  %v3388 = vpop.f32.mrb[0].mxu0
  %v3389 = vadd.f32 0.0, %v3388
  %v3390 = vpop.f32.mrb[0].mxu0
  %v3391 = vpop.f32.mrb[0].mxu0
  %v3392 = vpop.f32.mrb[0].mxu0
  %3393 = vdwg.mxu0
  %v3394 = vpack.c.bf16 %v3389, %v3389
  %3396 = vrot.lane.b32.xlu0 %v3394, 16
  %v3397 = vpop.permute.xlu0 %3396
  %vm3399 = vcmask 257152
  %3400 = vst.msk [vmem:[#allocation2] sm:$0xf] %vm3399, %v3397
  %s3401 = scalar_lea.vmem %s11, 8
  %v3402 = vld [vmem:[%s3401] sm:$0xf]
  %v3404 = vsel %vm1120, %v3402, 0
  %3406 = vmatprep.subr.bf16.mxu0 0
  %3407 = vmatpush1.bf16.msra.mxu0 %v3304
  %3408 = vmatprep.subr.bf16.mxu0 0
  %3409 = vmatpush1.bf16.msra.mxu0 0
  %3410 = vmatprep.subr.bf16.mxu0 0
  %3411 = vmatpush1.bf16.msra.mxu0 0
  %3412 = vmatprep.subr.bf16.mxu0 0
  %3413 = vmatpush1.bf16.msra.mxu0 0
  %3414 = vmatprep.subr.bf16.mxu0 0
  %3415 = vmatpush1.bf16.msra.mxu0 0
  %3416 = vmatprep.subr.bf16.mxu0 0
  %3417 = vmatpush1.bf16.msra.mxu0 0
  %3418 = vmatprep.subr.bf16.mxu0 0
  %3419 = vmatpush1.bf16.msra.mxu0 0
  %3420 = vmatprep.subr.bf16.mxu0 0
  %3421 = vmatpush1.bf16.msra.mxu0 0
  %3422 = vmatprep.subr.bf16.mxu0 0
  %3423 = vmatpush1.bf16.msra.mxu0 0
  %3424 = vmatprep.subr.bf16.mxu0 0
  %3425 = vmatpush1.bf16.msra.mxu0 0
  %3426 = vmatprep.subr.bf16.mxu0 0
  %3427 = vmatpush1.bf16.msra.mxu0 0
  %3428 = vmatprep.subr.bf16.mxu0 0
  %3429 = vmatpush1.bf16.msra.mxu0 0
  %3430 = vmatprep.subr.bf16.mxu0 0
  %3431 = vmatpush1.bf16.msra.mxu0 0
  %3432 = vmatprep.subr.bf16.mxu0 0
  %3433 = vmatpush1.bf16.msra.mxu0 0
  %3434 = vmatprep.subr.bf16.mxu0 0
  %3435 = vmatpush1.bf16.msra.mxu0 0
  %3436 = vmatprep.subr.bf16.mxu0 0
  %3437 = vmatpush1.bf16.msra.mxu0 0
  %3438 = vmatprep.mubr.bf16.mxu0 0
  %3439 = vmatmul.mubr.bf16.gmra.mrb[0].mxu0 %v3404
  %v3440 = vpop.f32.mrb[0].mxu0
  %v3441 = vadd.f32 0.0, %v3440
  %v3442 = vpop.f32.mrb[0].mxu0
  %v3443 = vpop.f32.mrb[0].mxu0
  %v3444 = vpop.f32.mrb[0].mxu0
  %3445 = vdwg.mxu0
  %v3446 = vpack.c.bf16 %v3441, %v3441
  %3448 = vrot.lane.b32.xlu0 %v3446, 32
  %v3449 = vpop.permute.xlu0 %3448
  %vm3451 = vcmask 388352
  %3452 = vst.msk [vmem:[#allocation2] sm:$0xf] %vm3451, %v3449
  %s3453 = scalar_lea.vmem %s11, 12
  %v3454 = vld [vmem:[%s3453] sm:$0xf]
  %v3456 = vsel %vm1120, %v3454, 0
  %3458 = vmatprep.subr.bf16.mxu0 0
  %3459 = vmatpush1.bf16.msra.mxu0 %v3304
  %3460 = vmatprep.subr.bf16.mxu0 0
  %3461 = vmatpush1.bf16.msra.mxu0 0
  %3462 = vmatprep.subr.bf16.mxu0 0
  %3463 = vmatpush1.bf16.msra.mxu0 0
  %3464 = vmatprep.subr.bf16.mxu0 0
  %3465 = vmatpush1.bf16.msra.mxu0 0
  %3466 = vmatprep.subr.bf16.mxu0 0
  %3467 = vmatpush1.bf16.msra.mxu0 0
  %3468 = vmatprep.subr.bf16.mxu0 0
  %3469 = vmatpush1.bf16.msra.mxu0 0
  %3470 = vmatprep.subr.bf16.mxu0 0
  %3471 = vmatpush1.bf16.msra.mxu0 0
  %3472 = vmatprep.subr.bf16.mxu0 0
  %3473 = vmatpush1.bf16.msra.mxu0 0
  %3474 = vmatprep.subr.bf16.mxu0 0
  %3475 = vmatpush1.bf16.msra.mxu0 0
  %3476 = vmatprep.subr.bf16.mxu0 0
  %3477 = vmatpush1.bf16.msra.mxu0 0
  %3478 = vmatprep.subr.bf16.mxu0 0
  %3479 = vmatpush1.bf16.msra.mxu0 0
  %3480 = vmatprep.subr.bf16.mxu0 0
  %3481 = vmatpush1.bf16.msra.mxu0 0
  %3482 = vmatprep.subr.bf16.mxu0 0
  %3483 = vmatpush1.bf16.msra.mxu0 0
  %3484 = vmatprep.subr.bf16.mxu0 0
  %3485 = vmatpush1.bf16.msra.mxu0 0
  %3486 = vmatprep.subr.bf16.mxu0 0
  %3487 = vmatpush1.bf16.msra.mxu0 0
  %3488 = vmatprep.subr.bf16.mxu0 0
  %3489 = vmatpush1.bf16.msra.mxu0 0
  %3490 = vmatprep.mubr.bf16.mxu0 0
  %3491 = vmatmul.mubr.bf16.gmra.mrb[0].mxu0 %v3456
  %v3492 = vpop.f32.mrb[0].mxu0
  %v3493 = vadd.f32 0.0, %v3492
  %v3494 = vpop.f32.mrb[0].mxu0
  %v3495 = vpop.f32.mrb[0].mxu0
  %v3496 = vpop.f32.mrb[0].mxu0
  %3497 = vdwg.mxu0
  %v3498 = vpack.c.bf16 %v3493, %v3493
  %3500 = vrot.lane.b32.xlu0 %v3498, 48
  %v3501 = vpop.permute.xlu0 %3500
  %vm3503 = vcmask 519552
  %3504 = vst.msk [vmem:[#allocation2] sm:$0xf] %vm3503, %v3501
  %s3505 = scalar_lea.vmem %s11, 16
  %v3506 = vld [vmem:[%s3505] sm:$0xf]
  %v3508 = vsel %vm1120, %v3506, 0
  %3510 = vmatprep.subr.bf16.mxu0 0
  %3511 = vmatpush1.bf16.msra.mxu0 %v3304
  %3512 = vmatprep.subr.bf16.mxu0 0
  %3513 = vmatpush1.bf16.msra.mxu0 0
  %3514 = vmatprep.subr.bf16.mxu0 0
  %3515 = vmatpush1.bf16.msra.mxu0 0
  %3516 = vmatprep.subr.bf16.mxu0 0
  %3517 = vmatpush1.bf16.msra.mxu0 0
  %3518 = vmatprep.subr.bf16.mxu0 0
  %3519 = vmatpush1.bf16.msra.mxu0 0
  %3520 = vmatprep.subr.bf16.mxu0 0
  %3521 = vmatpush1.bf16.msra.mxu0 0
  %3522 = vmatprep.subr.bf16.mxu0 0
  %3523 = vmatpush1.bf16.msra.mxu0 0
  %3524 = vmatprep.subr.bf16.mxu0 0
  %3525 = vmatpush1.bf16.msra.mxu0 0
  %3526 = vmatprep.subr.bf16.mxu0 0
  %3527 = vmatpush1.bf16.msra.mxu0 0
  %3528 = vmatprep.subr.bf16.mxu0 0
  %3529 = vmatpush1.bf16.msra.mxu0 0
  %3530 = vmatprep.subr.bf16.mxu0 0
  %3531 = vmatpush1.bf16.msra.mxu0 0
  %3532 = vmatprep.subr.bf16.mxu0 0
  %3533 = vmatpush1.bf16.msra.mxu0 0
  %3534 = vmatprep.subr.bf16.mxu0 0
  %3535 = vmatpush1.bf16.msra.mxu0 0
  %3536 = vmatprep.subr.bf16.mxu0 0
  %3537 = vmatpush1.bf16.msra.mxu0 0
  %3538 = vmatprep.subr.bf16.mxu0 0
  %3539 = vmatpush1.bf16.msra.mxu0 0
  %3540 = vmatprep.subr.bf16.mxu0 0
  %3541 = vmatpush1.bf16.msra.mxu0 0
  %3542 = vmatprep.mubr.bf16.mxu0 0
  %3543 = vmatmul.mubr.bf16.gmra.mrb[0].mxu0 %v3508
  %v3544 = vpop.f32.mrb[0].mxu0
  %v3545 = vadd.f32 0.0, %v3544
  %v3546 = vpop.f32.mrb[0].mxu0
  %v3547 = vpop.f32.mrb[0].mxu0
  %v3548 = vpop.f32.mrb[0].mxu0
  %3549 = vdwg.mxu0
  %v3550 = vpack.c.bf16 %v3545, %v3545
  %3552 = vrot.lane.b32.xlu0 %v3550, 64
  %v3553 = vpop.permute.xlu0 %3552
  %vm3555 = vcmask 650752
  %3556 = vst.msk [vmem:[#allocation2] sm:$0xf] %vm3555, %v3553
  %s3557 = scalar_lea.vmem %s11, 20
  %v3558 = vld [vmem:[%s3557] sm:$0xf]
  %v3560 = vsel %vm1120, %v3558, 0
  %3562 = vmatprep.subr.bf16.mxu0 0
  %3563 = vmatpush1.bf16.msra.mxu0 %v3304
  %3564 = vmatprep.subr.bf16.mxu0 0
  %3565 = vmatpush1.bf16.msra.mxu0 0
  %3566 = vmatprep.subr.bf16.mxu0 0
  %3567 = vmatpush1.bf16.msra.mxu0 0
  %3568 = vmatprep.subr.bf16.mxu0 0
  %3569 = vmatpush1.bf16.msra.mxu0 0
  %3570 = vmatprep.subr.bf16.mxu0 0
  %3571 = vmatpush1.bf16.msra.mxu0 0
  %3572 = vmatprep.subr.bf16.mxu0 0
  %3573 = vmatpush1.bf16.msra.mxu0 0
  %3574 = vmatprep.subr.bf16.mxu0 0
  %3575 = vmatpush1.bf16.msra.mxu0 0
  %3576 = vmatprep.subr.bf16.mxu0 0
  %3577 = vmatpush1.bf16.msra.mxu0 0
  %3578 = vmatprep.subr.bf16.mxu0 0
  %3579 = vmatpush1.bf16.msra.mxu0 0
  %3580 = vmatprep.subr.bf16.mxu0 0
  %3581 = vmatpush1.bf16.msra.mxu0 0
  %3582 = vmatprep.subr.bf16.mxu0 0
  %3583 = vmatpush1.bf16.msra.mxu0 0
  %3584 = vmatprep.subr.bf16.mxu0 0
  %3585 = vmatpush1.bf16.msra.mxu0 0
  %3586 = vmatprep.subr.bf16.mxu0 0
  %3587 = vmatpush1.bf16.msra.mxu0 0
  %3588 = vmatprep.subr.bf16.mxu0 0
  %3589 = vmatpush1.bf16.msra.mxu0 0
  %3590 = vmatprep.subr.bf16.mxu0 0
  %3591 = vmatpush1.bf16.msra.mxu0 0
  %3592 = vmatprep.subr.bf16.mxu0 0
  %3593 = vmatpush1.bf16.msra.mxu0 0
  %3594 = vmatprep.mubr.bf16.mxu0 0
  %3595 = vmatmul.mubr.bf16.gmra.mrb[0].mxu0 %v3560
  %v3596 = vpop.f32.mrb[0].mxu0
  %v3597 = vadd.f32 0.0, %v3596
  %v3598 = vpop.f32.mrb[0].mxu0
  %v3599 = vpop.f32.mrb[0].mxu0
  %v3600 = vpop.f32.mrb[0].mxu0
  %3601 = vdwg.mxu0
  %v3602 = vpack.c.bf16 %v3597, %v3597
  %3604 = vrot.lane.b32.xlu0 %v3602, 80
  %v3605 = vpop.permute.xlu0 %3604
  %vm3607 = vcmask 781952
  %3608 = vst.msk [vmem:[#allocation2] sm:$0xf] %vm3607, %v3605
  %s3609 = scalar_lea.vmem %s11, 24
  %v3610 = vld [vmem:[%s3609] sm:$0xf]
  %v3612 = vsel %vm1120, %v3610, 0
  %3614 = vmatprep.subr.bf16.mxu0 0
  %3615 = vmatpush1.bf16.msra.mxu0 %v3304
  %3616 = vmatprep.subr.bf16.mxu0 0
  %3617 = vmatpush1.bf16.msra.mxu0 0
  %3618 = vmatprep.subr.bf16.mxu0 0
  %3619 = vmatpush1.bf16.msra.mxu0 0
  %3620 = vmatprep.subr.bf16.mxu0 0
  %3621 = vmatpush1.bf16.msra.mxu0 0
  %3622 = vmatprep.subr.bf16.mxu0 0
  %3623 = vmatpush1.bf16.msra.mxu0 0
  %3624 = vmatprep.subr.bf16.mxu0 0
  %3625 = vmatpush1.bf16.msra.mxu0 0
  %3626 = vmatprep.subr.bf16.mxu0 0
  %3627 = vmatpush1.bf16.msra.mxu0 0
  %3628 = vmatprep.subr.bf16.mxu0 0
  %3629 = vmatpush1.bf16.msra.mxu0 0
  %3630 = vmatprep.subr.bf16.mxu0 0
  %3631 = vmatpush1.bf16.msra.mxu0 0
  %3632 = vmatprep.subr.bf16.mxu0 0
  %3633 = vmatpush1.bf16.msra.mxu0 0
  %3634 = vmatprep.subr.bf16.mxu0 0
  %3635 = vmatpush1.bf16.msra.mxu0 0
  %3636 = vmatprep.subr.bf16.mxu0 0
  %3637 = vmatpush1.bf16.msra.mxu0 0
  %3638 = vmatprep.subr.bf16.mxu0 0
  %3639 = vmatpush1.bf16.msra.mxu0 0
  %3640 = vmatprep.subr.bf16.mxu0 0
  %3641 = vmatpush1.bf16.msra.mxu0 0
  %3642 = vmatprep.subr.bf16.mxu0 0
  %3643 = vmatpush1.bf16.msra.mxu0 0
  %3644 = vmatprep.subr.bf16.mxu0 0
  %3645 = vmatpush1.bf16.msra.mxu0 0
  %3646 = vmatprep.mubr.bf16.mxu0 0
  %3647 = vmatmul.mubr.bf16.gmra.mrb[0].mxu0 %v3612
  %v3648 = vpop.f32.mrb[0].mxu0
  %v3649 = vadd.f32 0.0, %v3648
  %v3650 = vpop.f32.mrb[0].mxu0
  %v3651 = vpop.f32.mrb[0].mxu0
  %v3652 = vpop.f32.mrb[0].mxu0
  %3653 = vdwg.mxu0
  %v3654 = vpack.c.bf16 %v3649, %v3649
  %3656 = vrot.lane.b32.xlu0 %v3654, 96
  %v3657 = vpop.permute.xlu0 %3656
  %vm3659 = vcmask 913152
  %3660 = vst.msk [vmem:[#allocation2] sm:$0xf] %vm3659, %v3657
  %s3661 = scalar_lea.vmem %s11, 28
  %v3662 = vld [vmem:[%s3661] sm:$0xf]
  %v3664 = vsel %vm1120, %v3662, 0
  %3666 = vmatprep.subr.bf16.mxu0 0
  %3667 = vmatpush1.bf16.msra.mxu0 %v3304
  %3668 = vmatprep.subr.bf16.mxu0 0
  %3669 = vmatpush1.bf16.msra.mxu0 0
  %3670 = vmatprep.subr.bf16.mxu0 0
  %3671 = vmatpush1.bf16.msra.mxu0 0
  %3672 = vmatprep.subr.bf16.mxu0 0
  %3673 = vmatpush1.bf16.msra.mxu0 0
  %3674 = vmatprep.subr.bf16.mxu0 0
  %3675 = vmatpush1.bf16.msra.mxu0 0
  %3676 = vmatprep.subr.bf16.mxu0 0
  %3677 = vmatpush1.bf16.msra.mxu0 0
  %3678 = vmatprep.subr.bf16.mxu0 0
  %3679 = vmatpush1.bf16.msra.mxu0 0
  %3680 = vmatprep.subr.bf16.mxu0 0
  %3681 = vmatpush1.bf16.msra.mxu0 0
  %3682 = vmatprep.subr.bf16.mxu0 0
  %3683 = vmatpush1.bf16.msra.mxu0 0
  %3684 = vmatprep.subr.bf16.mxu0 0
  %3685 = vmatpush1.bf16.msra.mxu0 0
  %3686 = vmatprep.subr.bf16.mxu0 0
  %3687 = vmatpush1.bf16.msra.mxu0 0
  %3688 = vmatprep.subr.bf16.mxu0 0
  %3689 = vmatpush1.bf16.msra.mxu0 0
  %3690 = vmatprep.subr.bf16.mxu0 0
  %3691 = vmatpush1.bf16.msra.mxu0 0
  %3692 = vmatprep.subr.bf16.mxu0 0
  %3693 = vmatpush1.bf16.msra.mxu0 0
  %3694 = vmatprep.subr.bf16.mxu0 0
  %3695 = vmatpush1.bf16.msra.mxu0 0
  %3696 = vmatprep.subr.bf16.mxu0 0
  %3697 = vmatpush1.bf16.msra.mxu0 0
  %3698 = vmatprep.mubr.bf16.mxu0 0
  %3699 = vmatmul.mubr.bf16.gmra.mrb[0].mxu0 %v3664
  %v3700 = vpop.f32.mrb[0].mxu0
  %v3701 = vadd.f32 0.0, %v3700
  %v3702 = vpop.f32.mrb[0].mxu0
  %v3703 = vpop.f32.mrb[0].mxu0
  %v3704 = vpop.f32.mrb[0].mxu0
  %3705 = vdwg.mxu0
  %v3706 = vpack.c.bf16 %v3701, %v3701
  %3708 = vrot.lane.b32.xlu0 %v3706, 112
  %v3709 = vpop.permute.xlu0 %3708
  %vm3711 = vcmask 1044352
  %3712 = vst.msk [vmem:[#allocation2] sm:$0xf] %vm3711, %v3709
  %s3713 = scalar_lea.vmem %s11, 32
  %v3714 = vld [vmem:[%s3713] sm:$0xf]
  %v3716 = vsel %vm1120, %v3714, 0
  %3718 = vmatprep.subr.bf16.mxu0 0
  %3719 = vmatpush1.bf16.msra.mxu0 %v3304
  %3720 = vmatprep.subr.bf16.mxu0 0
  %3721 = vmatpush1.bf16.msra.mxu0 0
  %3722 = vmatprep.subr.bf16.mxu0 0
  %3723 = vmatpush1.bf16.msra.mxu0 0
  %3724 = vmatprep.subr.bf16.mxu0 0
  %3725 = vmatpush1.bf16.msra.mxu0 0
  %3726 = vmatprep.subr.bf16.mxu0 0
  %3727 = vmatpush1.bf16.msra.mxu0 0
  %3728 = vmatprep.subr.bf16.mxu0 0
  %3729 = vmatpush1.bf16.msra.mxu0 0
  %3730 = vmatprep.subr.bf16.mxu0 0
  %3731 = vmatpush1.bf16.msra.mxu0 0
  %3732 = vmatprep.subr.bf16.mxu0 0
  %3733 = vmatpush1.bf16.msra.mxu0 0
  %3734 = vmatprep.subr.bf16.mxu0 0
  %3735 = vmatpush1.bf16.msra.mxu0 0
  %3736 = vmatprep.subr.bf16.mxu0 0
  %3737 = vmatpush1.bf16.msra.mxu0 0
  %3738 = vmatprep.subr.bf16.mxu0 0
  %3739 = vmatpush1.bf16.msra.mxu0 0
  %3740 = vmatprep.subr.bf16.mxu0 0
  %3741 = vmatpush1.bf16.msra.mxu0 0
  %3742 = vmatprep.subr.bf16.mxu0 0
  %3743 = vmatpush1.bf16.msra.mxu0 0
  %3744 = vmatprep.subr.bf16.mxu0 0
  %3745 = vmatpush1.bf16.msra.mxu0 0
  %3746 = vmatprep.subr.bf16.mxu0 0
  %3747 = vmatpush1.bf16.msra.mxu0 0
  %3748 = vmatprep.subr.bf16.mxu0 0
  %3749 = vmatpush1.bf16.msra.mxu0 0
  %3750 = vmatprep.mubr.bf16.mxu0 0
  %3751 = vmatmul.mubr.bf16.gmra.mrb[0].mxu0 %v3716
  %v3752 = vpop.f32.mrb[0].mxu0
  %v3753 = vadd.f32 0.0, %v3752
  %v3754 = vpop.f32.mrb[0].mxu0
  %v3755 = vpop.f32.mrb[0].mxu0
  %v3756 = vpop.f32.mrb[0].mxu0
  %3757 = vdwg.mxu0
  %v3758 = vpack.c.bf16 %v3753, %v3753
  %3759 = vst.msk [vmem:[#allocation2 + $0x8] sm:$0xf] %vm3347, %v3758
  %v3760 = vld [vmem:[#allocation2] sm:$0xf]
  %v3761 = vld [vmem:[#allocation2 + $0x8] sm:$0xf]
  %v3762 = vld [vmem:[%s14] sm:$0xf]
  %v3763 = vld [vmem:[%s14 + $0x4] sm:$0xf]
  %v3764 = vld [vmem:[%s14 + $0x8] sm:$0xf]
  %v3765 = vld [vmem:[%s14 + $0xc] sm:$0xf]
  %v3766 = vld [vmem:[%s14 + $0x10] sm:$0xf]
  %v3767 = vld [vmem:[%s14 + $0x14] sm:$0xf]
  %v3768 = vld [vmem:[%s14 + $0x18] sm:$0xf]
  %v3769 = vld [vmem:[%s14 + $0x1c] sm:$0xf]
  %v3770 = vld [vmem:[%s14 + $0x20] sm:$0xf]
  %v3771 = vld [vmem:[%s14 + $0x24] sm:$0xf]
  %v3772 = vld [vmem:[%s14 + $0x28] sm:$0xf]
  %v3773 = vld [vmem:[%s14 + $0x2c] sm:$0xf]
  %v3774 = vld [vmem:[%s14 + $0x30] sm:$0xf]
  %v3775 = vld [vmem:[%s14 + $0x34] sm:$0xf]
  %v3776 = vld [vmem:[%s14 + $0x38] sm:$0xf]
  %v3777 = vld [vmem:[%s14 + $0x3c] sm:$0xf]
  %v3778 = vld [vmem:[%s14 + $0x40] sm:$0xf]
  %v3779 = vld [vmem:[%s14 + $0x44] sm:$0xf]
  %v3780 = vld [vmem:[%s15] sm:$0x1]
  %v3782 = vlaneseq
  %v3783 = vshrl.u32 %v3782, 7
  %v3784 = vsub.s32 0, %v3783
  %v3785 = vrot.slane %v3780, %v3784
  %v3805 = vunpack.c.l.b16 %v3762
  %v3806 = vunpack.c.l.b16 %v3763
  %v3807 = vunpack.c.l.b16 %v3764
  %v3808 = vunpack.c.l.b16 %v3765
  %v3809 = vunpack.c.l.b16 %v3766
  %v3810 = vunpack.c.l.b16 %v3767
  %v3811 = vunpack.c.l.b16 %v3768
  %v3812 = vunpack.c.l.b16 %v3769
  %v3813 = vunpack.c.l.b16 %v3770
  %v3814 = vunpack.c.l.b16 %v3771
  %v3815 = vunpack.c.l.b16 %v3772
  %v3816 = vunpack.c.l.b16 %v3773
  %v3817 = vunpack.c.l.b16 %v3774
  %v3818 = vunpack.c.l.b16 %v3775
  %v3819 = vunpack.c.l.b16 %v3776
  %v3820 = vunpack.c.l.b16 %v3777
  %v3821 = vunpack.c.l.b16 %v3778
  %v3822 = vunpack.c.l.b16 %v3779
  %v3823 = vpack.c.b16 %v3806, %v3805
  %v3824 = vpack.c.b16 %v3808, %v3807
  %v3825 = vpack.c.b16 %v3810, %v3809
  %v3826 = vpack.c.b16 %v3812, %v3811
  %v3827 = vpack.c.b16 %v3814, %v3813
  %v3828 = vpack.c.b16 %v3816, %v3815
  %v3829 = vpack.c.b16 %v3818, %v3817
  %v3830 = vpack.c.b16 %v3820, %v3819
  %v3831 = vpack.c.b16 %v3822, %v3821
  %vm3841 = vcmask 130048
  %v3843 = vsel %vm3841, %v3761, 0
  %3845 = vmatprep.subr.bf16.mxu0 0
  %3846 = vmatpush1.bf16.msra.mxu0 %v3823
  %3847 = vmatprep.subr.bf16.mxu0 0
  %3848 = vmatpush1.bf16.msra.mxu0 %v3824
  %3849 = vmatprep.subr.bf16.mxu0 0
  %3850 = vmatpush1.bf16.msra.mxu0 %v3825
  %3851 = vmatprep.subr.bf16.mxu0 0
  %3852 = vmatpush1.bf16.msra.mxu0 %v3826
  %3853 = vmatprep.subr.bf16.mxu0 0
  %3854 = vmatpush1.bf16.msra.mxu0 %v3827
  %3855 = vmatprep.subr.bf16.mxu0 0
  %3856 = vmatpush1.bf16.msra.mxu0 %v3828
  %3857 = vmatprep.subr.bf16.mxu0 0
  %3858 = vmatpush1.bf16.msra.mxu0 %v3829
  %3859 = vmatprep.subr.bf16.mxu0 0
  %3860 = vmatpush1.bf16.msra.mxu0 %v3830
  %3861 = vmatprep.subr.bf16.mxu0 0
  %3862 = vmatpush1.bf16.msra.mxu0 %v3831
  %3863 = vmatprep.subr.bf16.mxu0 0
  %3864 = vmatpush1.bf16.msra.mxu0 0
  %3865 = vmatprep.subr.bf16.mxu0 0
  %3866 = vmatpush1.bf16.msra.mxu0 0
  %3867 = vmatprep.subr.bf16.mxu0 0
  %3868 = vmatpush1.bf16.msra.mxu0 0
  %3869 = vmatprep.subr.bf16.mxu0 0
  %3870 = vmatpush1.bf16.msra.mxu0 0
  %3871 = vmatprep.subr.bf16.mxu0 0
  %3872 = vmatpush1.bf16.msra.mxu0 0
  %3873 = vmatprep.subr.bf16.mxu0 0
  %3874 = vmatpush1.bf16.msra.mxu0 0
  %3875 = vmatprep.subr.bf16.mxu0 0
  %3876 = vmatpush1.bf16.msra.mxu0 0
  %3877 = vmatprep.mubr.bf16.mxu0 %v3843
  %3878 = vmatmul.mubr.bf16.gmra.mrb[0].mxu0 %v3760
  %v3879 = vpop.f32.mrb[0].mxu0
  %v3880 = vadd.f32 %v3785, %v3879
  %v3881 = vpop.f32.mrb[0].mxu0
  %v3882 = vpop.f32.mrb[0].mxu0
  %v3883 = vpop.f32.mrb[0].mxu0
  %3884 = vdwg.mxu0
  %v3885 = vld [vmem:[%s2947] sm:$0xf]
  %v3887 = vsel %vm1062, %v3885, 0
  %3889 = vmatprep.subr.bf16.mxu0 0
  %3890 = vmatpush1.bf16.msra.mxu0 %v2742
  %3891 = vmatprep.subr.bf16.mxu0 0
  %3892 = vmatpush1.bf16.msra.mxu0 %v2743
  %3893 = vmatprep.subr.bf16.mxu0 0
  %3894 = vmatpush1.bf16.msra.mxu0 0
  %3895 = vmatprep.subr.bf16.mxu0 0
  %3896 = vmatpush1.bf16.msra.mxu0 0
  %3897 = vmatprep.subr.bf16.mxu0 0
  %3898 = vmatpush1.bf16.msra.mxu0 0
  %3899 = vmatprep.subr.bf16.mxu0 0
  %3900 = vmatpush1.bf16.msra.mxu0 0
  %3901 = vmatprep.subr.bf16.mxu0 0
  %3902 = vmatpush1.bf16.msra.mxu0 0
  %3903 = vmatprep.subr.bf16.mxu0 0
  %3904 = vmatpush1.bf16.msra.mxu0 0
  %3905 = vmatprep.subr.bf16.mxu0 0
  %3906 = vmatpush1.bf16.msra.mxu0 0
  %3907 = vmatprep.subr.bf16.mxu0 0
  %3908 = vmatpush1.bf16.msra.mxu0 0
  %3909 = vmatprep.subr.bf16.mxu0 0
  %3910 = vmatpush1.bf16.msra.mxu0 0
  %3911 = vmatprep.subr.bf16.mxu0 0
  %3912 = vmatpush1.bf16.msra.mxu0 0
  %3913 = vmatprep.subr.bf16.mxu0 0
  %3914 = vmatpush1.bf16.msra.mxu0 0
  %3915 = vmatprep.subr.bf16.mxu0 0
  %3916 = vmatpush1.bf16.msra.mxu0 0
  %3917 = vmatprep.subr.bf16.mxu0 0
  %3918 = vmatpush1.bf16.msra.mxu0 0
  %3919 = vmatprep.subr.bf16.mxu0 0
  %3920 = vmatpush1.bf16.msra.mxu0 0
  %3921 = vmatprep.mubr.bf16.mxu0 0
  %3922 = vmatmul.mubr.bf16.gmra.mrb[0].mxu0 %v3887
  %v3923 = vpop.f32.mrb[0].mxu0
  %v3924 = vadd.f32 0.0, %v3923
  %v3925 = vpop.f32.mrb[0].mxu0
  %v3926 = vpop.f32.mrb[0].mxu0
  %v3927 = vpop.f32.mrb[0].mxu0
  %3928 = vdwg.mxu0
  %v3929 = vpack.c.bf16 %v3924, %v3924
  %v3930 = vld [vmem:[%s16] sm:$0xf]
  %v3931 = vld [vmem:[%s17] sm:$0x1]
  %v3933 = vlaneseq
  %v3934 = vshrl.u32 %v3933, 7
  %v3935 = vsub.s32 0, %v3934
  %v3936 = vrot.slane %v3931, %v3935
  %v3939 = vsel %vm1120, %v3929, 0
  %v3942 = vsel %vm1839, %v3930, 0
  %3944 = vmatprep.subr.bf16.mxu0 0
  %3945 = vmatpush1.bf16.msra.mxu0 %v3942
  %3946 = vmatprep.subr.bf16.mxu0 0
  %3947 = vmatpush1.bf16.msra.mxu0 0
  %3948 = vmatprep.subr.bf16.mxu0 0
  %3949 = vmatpush1.bf16.msra.mxu0 0
  %3950 = vmatprep.subr.bf16.mxu0 0
  %3951 = vmatpush1.bf16.msra.mxu0 0
  %3952 = vmatprep.subr.bf16.mxu0 0
  %3953 = vmatpush1.bf16.msra.mxu0 0
  %3954 = vmatprep.subr.bf16.mxu0 0
  %3955 = vmatpush1.bf16.msra.mxu0 0
  %3956 = vmatprep.subr.bf16.mxu0 0
  %3957 = vmatpush1.bf16.msra.mxu0 0
  %3958 = vmatprep.subr.bf16.mxu0 0
  %3959 = vmatpush1.bf16.msra.mxu0 0
  %3960 = vmatprep.subr.bf16.mxu0 0
  %3961 = vmatpush1.bf16.msra.mxu0 0
  %3962 = vmatprep.subr.bf16.mxu0 0
  %3963 = vmatpush1.bf16.msra.mxu0 0
  %3964 = vmatprep.subr.bf16.mxu0 0
  %3965 = vmatpush1.bf16.msra.mxu0 0
  %3966 = vmatprep.subr.bf16.mxu0 0
  %3967 = vmatpush1.bf16.msra.mxu0 0
  %3968 = vmatprep.subr.bf16.mxu0 0
  %3969 = vmatpush1.bf16.msra.mxu0 0
  %3970 = vmatprep.subr.bf16.mxu0 0
  %3971 = vmatpush1.bf16.msra.mxu0 0
  %3972 = vmatprep.subr.bf16.mxu0 0
  %3973 = vmatpush1.bf16.msra.mxu0 0
  %3974 = vmatprep.subr.bf16.mxu0 0
  %3975 = vmatpush1.bf16.msra.mxu0 0
  %3976 = vmatprep.mubr.bf16.mxu0 0
  %3977 = vmatmul.mubr.bf16.gmra.mrb[0].mxu0 %v3939
  %v3978 = vpop.f32.mrb[0].mxu0
  %v3979 = vadd.f32 %v3936, %v3978
  %v3980 = vpop.f32.mrb[0].mxu0
  %v3981 = vpop.f32.mrb[0].mxu0
  %v3982 = vpop.f32.mrb[0].mxu0
  %3983 = vdwg.mxu0
  %v3984 = vadd.f32 %v3880, %v3979
  %v3985 = vmax.f32 %v3984, 0.0
  %v3986 = vpack.c.bf16 %v3985, %v3985
  %v3987 = vld [vmem:[%s18] sm:$0xf]
  %v3989 = vsel %vm1120, %v3987, 0
  %v3992 = vsel %vm1839, %v3986, 0
  %3994 = vmatprep.subr.bf16.mxu0 0
  %3995 = vmatpush1.bf16.msra.mxu0 %v3992
  %3996 = vmatprep.subr.bf16.mxu0 0
  %3997 = vmatpush1.bf16.msra.mxu0 0
  %3998 = vmatprep.subr.bf16.mxu0 0
  %3999 = vmatpush1.bf16.msra.mxu0 0
  %4000 = vmatprep.subr.bf16.mxu0 0
  %4001 = vmatpush1.bf16.msra.mxu0 0
  %4002 = vmatprep.subr.bf16.mxu0 0
  %4003 = vmatpush1.bf16.msra.mxu0 0
  %4004 = vmatprep.subr.bf16.mxu0 0
  %4005 = vmatpush1.bf16.msra.mxu0 0
  %4006 = vmatprep.subr.bf16.mxu0 0
  %4007 = vmatpush1.bf16.msra.mxu0 0
  %4008 = vmatprep.subr.bf16.mxu0 0
  %4009 = vmatpush1.bf16.msra.mxu0 0
  %4010 = vmatprep.subr.bf16.mxu0 0
  %4011 = vmatpush1.bf16.msra.mxu0 0
  %4012 = vmatprep.subr.bf16.mxu0 0
  %4013 = vmatpush1.bf16.msra.mxu0 0
  %4014 = vmatprep.subr.bf16.mxu0 0
  %4015 = vmatpush1.bf16.msra.mxu0 0
  %4016 = vmatprep.subr.bf16.mxu0 0
  %4017 = vmatpush1.bf16.msra.mxu0 0
  %4018 = vmatprep.subr.bf16.mxu0 0
  %4019 = vmatpush1.bf16.msra.mxu0 0
  %4020 = vmatprep.subr.bf16.mxu0 0
  %4021 = vmatpush1.bf16.msra.mxu0 0
  %4022 = vmatprep.subr.bf16.mxu0 0
  %4023 = vmatpush1.bf16.msra.mxu0 0
  %4024 = vmatprep.subr.bf16.mxu0 0
  %4025 = vmatpush1.bf16.msra.mxu0 0
  %4026 = vmatprep.mubr.bf16.mxu0 0
  %4027 = vmatmul.mubr.bf16.gmra.mrb[0].mxu0 %v3989
  %v4028 = vpop.f32.mrb[0].mxu0
  %v4029 = vadd.f32 0.0, %v4028
  %v4030 = vpop.f32.mrb[0].mxu0
  %v4031 = vpop.f32.mrb[0].mxu0
  %v4032 = vpop.f32.mrb[0].mxu0
  %4033 = vdwg.mxu0
  %v4034 = vmul.f32 %v4029, 0.25
  %v4035 = vpack.c.bf16 %v4034, %v4034
  %v4036 = vld [vmem:[%s19] sm:$0xf]
  %v4037 = vld [vmem:[%s19 + $0x4] sm:$0xf]
  %v4038 = vld [vmem:[%s20] sm:$0x1]
  %v4040 = vlaneseq
  %v4041 = vshrl.u32 %v4040, 7
  %v4042 = vsub.s32 0, %v4041
  %v4043 = vrot.slane %v4038, %v4042
  %v4047 = vunpack.c.l.b16 %v4036
  %v4048 = vunpack.c.l.b16 %v4037
  %v4049 = vpack.c.b16 %v4048, %v4047
  %v4052 = vsel %vm3841, %v4035, 0
  %4054 = vmatprep.subr.bf16.mxu0 0
  %4055 = vmatpush1.bf16.msra.mxu0 %v4049
  %4056 = vmatprep.subr.bf16.mxu0 0
  %4057 = vmatpush1.bf16.msra.mxu0 0
  %4058 = vmatprep.subr.bf16.mxu0 0
  %4059 = vmatpush1.bf16.msra.mxu0 0
  %4060 = vmatprep.subr.bf16.mxu0 0
  %4061 = vmatpush1.bf16.msra.mxu0 0
  %4062 = vmatprep.subr.bf16.mxu0 0
  %4063 = vmatpush1.bf16.msra.mxu0 0
  %4064 = vmatprep.subr.bf16.mxu0 0
  %4065 = vmatpush1.bf16.msra.mxu0 0
  %4066 = vmatprep.subr.bf16.mxu0 0
  %4067 = vmatpush1.bf16.msra.mxu0 0
  %4068 = vmatprep.subr.bf16.mxu0 0
  %4069 = vmatpush1.bf16.msra.mxu0 0
  %4070 = vmatprep.subr.bf16.mxu0 0
  %4071 = vmatpush1.bf16.msra.mxu0 0
  %4072 = vmatprep.subr.bf16.mxu0 0
  %4073 = vmatpush1.bf16.msra.mxu0 0
  %4074 = vmatprep.subr.bf16.mxu0 0
  %4075 = vmatpush1.bf16.msra.mxu0 0
  %4076 = vmatprep.subr.bf16.mxu0 0
  %4077 = vmatpush1.bf16.msra.mxu0 0
  %4078 = vmatprep.subr.bf16.mxu0 0
  %4079 = vmatpush1.bf16.msra.mxu0 0
  %4080 = vmatprep.subr.bf16.mxu0 0
  %4081 = vmatpush1.bf16.msra.mxu0 0
  %4082 = vmatprep.subr.bf16.mxu0 0
  %4083 = vmatpush1.bf16.msra.mxu0 0
  %4084 = vmatprep.subr.bf16.mxu0 0
  %4085 = vmatpush1.bf16.msra.mxu0 0
  %4086 = vmatprep.mubr.bf16.mxu0 0
  %4087 = vmatmul.mubr.bf16.gmra.mrb[0].mxu0 %v4052
  %v4088 = vpop.f32.mrb[0].mxu0
  %v4089 = vadd.f32 %v4043, %v4088
  %v4090 = vpop.f32.mrb[0].mxu0
  %v4091 = vpop.f32.mrb[0].mxu0
  %v4092 = vpop.f32.mrb[0].mxu0
  %4093 = vdwg.mxu0
  %4094 = vst [vmem:[%s21] sm:$0xff] %v4089
  // Predicated region
  $region86: #{_lambda_.1} parent=0 // pred_check
    _
  $region87: #{_lambda_.1} parent=0 // pred_check_branch
    %4096 = sbr.rel (0) target = $region89
  $region88: #{_lambda_.1} parent=0 // pred_region
    _
  $region89: #{_lambda_.1} parent=0 // pred_fallthru
    _
  // Predicated region
  $region90: #{_lambda_.1} parent=0 // pred_check
    _
  $region91: #{_lambda_.1} parent=0 // pred_check_branch
    %4098 = sbr.rel (0) target = $region93
  $region92: #{_lambda_.1} parent=0 // pred_region
    _
  $region93: #{_lambda_.1} parent=0 // pred_fallthru
    _

</llo_original>
